<compile_context>
chip_gen: v7x
topology: tpu7x:2x2x1
jax: 0.10.0
libtpu: 0.0.40
codegen_flags: <defaults>
</compile_context>

<pallas_src>
import numpy as np
import jax
import jax.numpy as jnp
from jax.experimental import pallas as pl
from jax.experimental.pallas import tpu as pltpu


# ----------------------------- Pallas kernel --------------------------------
def lstmn_kernel(x_ref, ht0_ref, ct0_ref,
                 w1t_ref, wcat_ref, bcat_ref,
                 wh_att_ref, wht_att_ref, v_ref,
                 pwt_ref, pb_ref,
                 out_ref, hs_ref,
                 hbuf, cbuf, scorebuf, htc_ref, ctc_ref):
    TB, S, F = x_ref.shape
    dim = hs_ref.shape[2]
    n_gates = 4 * dim

    # First grid step only: seed the cross-item (ht, ct) carry and clear the memory
    # buffers once (uninitialized VMEM could hold NaN; 0 * NaN would poison the
    # attention sums).  Stale-but-finite rows from later items get exactly-zero weight.
    @pl.when(pl.program_id(0) == 0)
    def _():
        hbuf[...] = jnp.zeros_like(hbuf)
        cbuf[...] = jnp.zeros_like(cbuf)
        htc_ref[...] = ht0_ref[...]
        ctc_ref[...] = ct0_ref[...]

    # ---- block precompute: fused x-side projection for every item/step -------------
    # columns [0:4*dim)  -> gate x-part (+ gate bias folded in)
    # columns [4*dim: )  -> attention x-part (W_x @ x_t)
    x_flat = x_ref[...].reshape(TB * S, F)
    xproj = (jnp.dot(x_flat, wcat_ref[...], preferred_element_type=jnp.float32)
             + bcat_ref[...])                                                  # (TB*S, 4*dim+att)

    # loop-invariant weights (hoisted once per block)
    w1t = w1t_ref[...]                                                         # (dim, 4*dim)
    wh_att = wh_att_ref[...]                                                   # (dim, att)
    wht_att = wht_att_ref[...]                                                 # (dim, att)
    v_row = v_ref[...]                                                         # (1, att)
    pwt = pwt_ref[...]                                                         # (dim, out)
    pb = pb_ref[...]                                                           # (1, out)

    ht_cur = htc_ref[...]                                                      # (1, dim) carry
    ct_cur = ctc_ref[...]                                                      # (1, dim) carry

    for j in range(TB):
        # Per-item reset of the score memory: rows not yet written hold -1e30, so
        # exp(-1e30 - m) underflows to exactly 0 -> no mask needed in the softmax.
        scorebuf[...] = jnp.full_like(scorebuf, -1e30)
        h_new = ht_cur  # placeholder; overwritten at t == 0

        # Time recurrence, fully unrolled (S is static and small) so every slice is
        # static and the t == 0 attention is skipped entirely.
        for t in range(S):
            if t > 0:
                # softmax over the incrementally-maintained scores (rows >= t are -1e30)
                s_all = scorebuf[...]                                          # (S, 1)
                m = jnp.max(s_all, keepdims=True)                              # (1, 1)
                e = jnp.exp(s_all - m)                                         # (S, 1)
                w = e / jnp.sum(e, keepdims=True)                              # (S, 1)
                # weighted sums over the h / c memories: two sublane reduces, no concat
                ht_cur = jnp.sum(w * hbuf[...], axis=0, keepdims=True)         # (1, dim)
                ct_cur = jnp.sum(w * cbuf[...], axis=0, keepdims=True)         # (1, dim)

            r = j * S + t
            xrow = xproj[r:r + 1, :]                                           # (1, 4*dim+att)

            # LSTM gates:  whx = [ht ; x_t] @ W.T + b   (x part + bias precomputed)
            whx = (jnp.dot(ht_cur, w1t, preferred_element_type=jnp.float32)
                   + xrow[:, :n_gates])                                        # (1, 4*dim)
            sig = jax.nn.sigmoid(whx[:, :3 * dim])       # one EUP dispatch for f/o/i
            f_t = sig[:, 0 * dim:1 * dim]
            o_t = sig[:, 1 * dim:2 * dim]
            i_t = sig[:, 2 * dim:3 * dim]
            ch_t = jnp.tanh(whx[:, 3 * dim:])
            c_new = f_t * ct_cur + i_t * ch_t
            h_new = o_t * jnp.tanh(c_new)

            # Append memory rows and the attention score of step t (computed once here;
            # it only depends on step-t quantities).
            hbuf[pl.ds(t, 1), :] = h_new
            cbuf[pl.ds(t, 1), :] = c_new
            pre = jnp.tanh(
                jnp.dot(h_new, wh_att, preferred_element_type=jnp.float32)
                + jnp.dot(ht_cur, wht_att, preferred_element_type=jnp.float32)
                + xrow[:, n_gates:])                                           # (1, att)
            scorebuf[pl.ds(t, 1), :] = jnp.sum(pre * v_row, axis=-1, keepdims=True)

        # ---- per-item heads, written into the block's VMEM output tiles ------------
        logits = jnp.dot(h_new, pwt, preferred_element_type=jnp.float32) + pb  # (1, out)
        logits = logits - jnp.max(logits, keepdims=True)
        p = jnp.exp(logits)
        out_ref[pl.ds(j, 1), :] = p / jnp.sum(p, keepdims=True)
        hs_ref[j, :, :] = hbuf[...]                                            # (S, dim)

    # carry ht/ct to the next block (matches the PyTorch module's self.ht/self.ct)
    htc_ref[...] = ht_cur
    ctc_ref[...] = ct_cur
    # TODO(synk): the PyTorch forward also dumps attention maps via `smp.toimage`
    # / `imsave` (undefined `smp` in the source); image-file side effects are skipped.


# ------------------------------- wrapper -------------------------------------
def lstmn_forward(x, params, tb=None):
    W, b, W_h, W_x, W_ht, v, PW, Pb, ht0, ct0 = params
    B, S, F = x.shape
    dim = ht0.shape[0]
    out_size = Pb.shape[0]
    att = v.shape[0]
    n_gates = 4 * dim

    if tb is None:
        tb = B if B <= 8 else (8 if B % 8 == 0 else B)
    assert B % tb == 0, "batch must be divisible by the per-step block size"

    # weight prep (all folds done once on host/XLA side)
    w1t = W[:, :dim].T                                            # (dim, 4*dim): acts on ht
    wcat = jnp.concatenate([W[:, dim:].T, W_x.T], axis=1)         # (F, 4*dim + att)
    bcat = jnp.concatenate([b, jnp.zeros((att,), b.dtype)]).reshape(1, -1)
    wh_att = W_h.T                                                # (dim, att)
    wht_att = W_ht.T                                              # (dim, att)
    v2 = v.reshape(1, -1)                                         # (1, att)
    pwt = PW.T                                                    # (dim, out_size)
    pb2 = Pb.reshape(1, -1)                                       # (1, out_size)
    ht0r = ht0.reshape(1, -1)
    ct0r = ct0.reshape(1, -1)

    in_specs = [
        pl.BlockSpec((tb, S, F), lambda bi: (bi, 0, 0)),          # x (per-block)
        pl.BlockSpec((1, dim), lambda bi: (0, 0)),                # ht0
        pl.BlockSpec((1, dim), lambda bi: (0, 0)),                # ct0
        pl.BlockSpec((dim, n_gates), lambda bi: (0, 0)),          # W[:, :dim].T
        pl.BlockSpec((F, n_gates + att), lambda bi: (0, 0)),      # [W[:,dim:].T | W_x.T]
        pl.BlockSpec((1, n_gates + att), lambda bi: (0, 0)),      # [b | 0]
        pl.BlockSpec((dim, att), lambda bi: (0, 0)),              # W_h.T
        pl.BlockSpec((dim, att), lambda bi: (0, 0)),              # W_ht.T
        pl.BlockSpec((1, att), lambda bi: (0, 0)),                # v
        pl.BlockSpec((dim, out_size), lambda bi: (0, 0)),         # projection W.T
        pl.BlockSpec((1, out_size), lambda bi: (0, 0)),           # projection b
    ]
    out_specs = (
        pl.BlockSpec((tb, out_size), lambda bi: (bi, 0)),         # outputs
        pl.BlockSpec((tb, S, dim), lambda bi: (bi, 0, 0)),        # hidden states
    )

    outs, hs = pl.pallas_call(
        lstmn_kernel,
        grid=(B // tb,),
        out_shape=(jax.ShapeDtypeStruct((B, out_size), jnp.float32),
                   jax.ShapeDtypeStruct((B, S, dim), jnp.float32)),
        in_specs=in_specs,
        out_specs=out_specs,
        scratch_shapes=[pltpu.VMEM((S, dim), jnp.float32),        # h memory
                        pltpu.VMEM((S, dim), jnp.float32),        # c memory
                        pltpu.VMEM((S, 1), jnp.float32),          # incremental scores
                        pltpu.VMEM((1, dim), jnp.float32),        # ht carry across blocks
                        pltpu.VMEM((1, dim), jnp.float32)],       # ct carry across blocks
        compiler_params=pltpu.CompilerParams(
            # blocks carry self.ht/self.ct state -> the grid axis must stay sequential
            dimension_semantics=("arbitrary",)),
    )(x, ht0r, ct0r, w1t, wcat, bcat, wh_att, wht_att, v2, pwt, pb2)
    return outs, hs


# --------------------------- numpy reference ----------------------------------
def _sigmoid(z):
    return 1.0 / (1.0 + np.exp(-z))


def _softmax(z):
    z = z - np.max(z)
    e = np.exp(z)
    return e / np.sum(e)


def reference_forward(x, params):
    W, b, W_h, W_x, W_ht, v, PW, Pb, ht0, ct0 = [np.asarray(p, np.float32) for p in params]
    x = np.asarray(x, np.float32)
    B, S, F = x.shape
    dim = ht0.shape[0]
    ht = ht0.copy()
    ct = ct0.copy()
    outs = np.zeros((B, Pb.shape[0]), np.float32)
    hs = np.zeros((B, S, dim), np.float32)
    for i in range(B):
        hidden_states, past_ht, past_x, past_c = [], [], [], []
        h = None
        for t in range(S):
            x_t = x[i, t]
            past_x.append(x_t)
            scores = []
            for k, h_k in enumerate(hidden_states):
                scores.append(v @ np.tanh(W_h @ h_k + W_x @ past_x[k] + W_ht @ past_ht[k]))
            if len(hidden_states) > 0:
                sm = _softmax(np.array(scores, np.float32))
                ht = sum(sm[k] * hidden_states[k] for k in range(len(sm)))
                ct = sum(sm[k] * past_c[k] for k in range(len(sm)))
            concat = np.concatenate([ht, x_t])
            whx = W @ concat + b
            f_t = _sigmoid(whx[:dim])
            o_t = _sigmoid(whx[dim:2 * dim])
            i_t = _sigmoid(whx[2 * dim:3 * dim])
            ch_t = np.tanh(whx[3 * dim:])
            c = f_t * ct + i_t * ch_t
            h = o_t * np.tanh(c)
            past_ht.append(ht)
            hidden_states.append(h)
            past_c.append(c)
            hs[i, t] = h
        outs[i] = _softmax(PW @ h + Pb)
    return outs, hs


# --------------------------------- main ---------------------------------------
if __name__ == "__main__":
    DIM, MAX_LEN, OUT, ATT = 32, 10, 10, 10
    B, S = 2, 6

    key = jax.random.PRNGKey(0)
    keys = jax.random.split(key, 11)
    W = jax.random.normal(keys[0], (4 * DIM, MAX_LEN + DIM), jnp.float32)
    b = jax.random.normal(keys[1], (4 * DIM,), jnp.float32).at[:DIM].set(1.0)
    W_h = jax.random.normal(keys[2], (ATT, DIM), jnp.float32)
    W_x = jax.random.normal(keys[3], (ATT, MAX_LEN), jnp.float32)
    W_ht = jax.random.normal(keys[4], (ATT, DIM), jnp.float32)
    v = jax.random.normal(keys[5], (ATT,), jnp.float32)
    PW = jax.random.normal(keys[6], (OUT, DIM), jnp.float32) * 0.1
    Pb = jax.random.normal(keys[7], (OUT,), jnp.float32) * 0.1
    ht0 = jax.random.normal(keys[8], (DIM,), jnp.float32)
    ct0 = jax.random.normal(keys[9], (DIM,), jnp.float32)
    x = jax.random.normal(keys[10], (B, S, MAX_LEN), jnp.float32)

    params = (W, b, W_h, W_x, W_ht, v, PW, Pb, ht0, ct0)

    outs, hs = lstmn_forward(x, params)
    outs = jax.block_until_ready(outs)
    hs = jax.block_until_ready(hs)

    ref_outs, ref_hs = reference_forward(np.asarray(x), params)
    np.testing.assert_allclose(np.asarray(outs), ref_outs, rtol=1e-2, atol=1e-2)
    np.testing.assert_allclose(np.asarray(hs), ref_hs, rtol=1e-2, atol=1e-2)

    print("KERNEL_OK")
</pallas_src>

<mosaic_0001>
module attributes {stable_mosaic.version = 11 : i64} {
  func.func @lstmn_kernel(%arg0: i32, %arg1: memref<2x6x10xf32, #tpu.memory_space<vmem>>, %arg2: memref<1x32xf32, #tpu.memory_space<vmem>>, %arg3: memref<1x32xf32, #tpu.memory_space<vmem>>, %arg4: memref<32x128xf32, #tpu.memory_space<vmem>>, %arg5: memref<10x138xf32, #tpu.memory_space<vmem>>, %arg6: memref<1x138xf32, #tpu.memory_space<vmem>>, %arg7: memref<32x10xf32, #tpu.memory_space<vmem>>, %arg8: memref<32x10xf32, #tpu.memory_space<vmem>>, %arg9: memref<1x10xf32, #tpu.memory_space<vmem>>, %arg10: memref<32x10xf32, #tpu.memory_space<vmem>>, %arg11: memref<1x10xf32, #tpu.memory_space<vmem>>, %arg12: memref<2x10xf32, #tpu.memory_space<vmem>>, %arg13: memref<2x6x32xf32, #tpu.memory_space<vmem>>, %arg14: memref<6x32xf32, #tpu.memory_space<vmem>>, %arg15: memref<6x32xf32, #tpu.memory_space<vmem>>, %arg16: memref<6x1xf32, #tpu.memory_space<vmem>>, %arg17: memref<1x32xf32, #tpu.memory_space<vmem>>, %arg18: memref<1x32xf32, #tpu.memory_space<vmem>>) attributes {dimension_semantics = [#tpu.dimension_semantics<arbitrary>], iteration_bounds = array<i64: 1>, scalar_prefetch = 0 : i64, scratch_operands = 5 : i64, tpu.core_type = #tpu.core_type<tc>, window_params = [{transform_indices = @transform_0, window_bounds = array<i64: 2, 6, 10>}, {pipeline_mode = #tpu.pipeline_mode<synchronous>, transform_indices = @transform_1, window_bounds = array<i64: 1, 32>}, {pipeline_mode = #tpu.pipeline_mode<synchronous>, transform_indices = @transform_2, window_bounds = array<i64: 1, 32>}, {pipeline_mode = #tpu.pipeline_mode<synchronous>, transform_indices = @transform_3, window_bounds = array<i64: 32, 128>}, {pipeline_mode = #tpu.pipeline_mode<synchronous>, transform_indices = @transform_4, window_bounds = array<i64: 10, 138>}, {pipeline_mode = #tpu.pipeline_mode<synchronous>, transform_indices = @transform_5, window_bounds = array<i64: 1, 138>}, {pipeline_mode = #tpu.pipeline_mode<synchronous>, transform_indices = @transform_6, window_bounds = array<i64: 32, 10>}, {pipeline_mode = #tpu.pipeline_mode<synchronous>, transform_indices = @transform_7, window_bounds = array<i64: 32, 10>}, {pipeline_mode = #tpu.pipeline_mode<synchronous>, transform_indices = @transform_8, window_bounds = array<i64: 1, 10>}, {pipeline_mode = #tpu.pipeline_mode<synchronous>, transform_indices = @transform_9, window_bounds = array<i64: 32, 10>}, {pipeline_mode = #tpu.pipeline_mode<synchronous>, transform_indices = @transform_10, window_bounds = array<i64: 1, 10>}, {transform_indices = @transform_11, window_bounds = array<i64: 2, 10>}, {transform_indices = @transform_12, window_bounds = array<i64: 2, 6, 32>}]} {
    %c0_i32 = arith.constant 0 : i32
    %0 = arith.cmpi eq, %arg0, %c0_i32 : i32
    %1 = arith.extui %0 : i1 to i32
    %c0_i32_0 = arith.constant 0 : i32
    %2 = arith.cmpi ne, %1, %c0_i32_0 : i32
    scf.if %2 {
      %cst_280 = arith.constant 0.000000e+00 : f32
      %712 = vector.broadcast %cst_280 : f32 to vector<6x32xf32>
      %c0_281 = arith.constant 0 : index
      %c0_282 = arith.constant 0 : index
      %713 = vector.load %arg14[%c0_281, %c0_282] : memref<6x32xf32, #tpu.memory_space<vmem>>, vector<6x32xf32>
      tpu.vector_store %arg14[%c0_281, %c0_282], %712 {strides = array<i32>} : memref<6x32xf32, #tpu.memory_space<vmem>>, vector<6x32xf32>,
      %cst_283 = arith.constant 0.000000e+00 : f32
      %714 = vector.broadcast %cst_283 : f32 to vector<6x32xf32>
      %c0_284 = arith.constant 0 : index
      %c0_285 = arith.constant 0 : index
      %715 = vector.load %arg15[%c0_284, %c0_285] : memref<6x32xf32, #tpu.memory_space<vmem>>, vector<6x32xf32>
      tpu.vector_store %arg15[%c0_284, %c0_285], %714 {strides = array<i32>} : memref<6x32xf32, #tpu.memory_space<vmem>>, vector<6x32xf32>,
      %c0_286 = arith.constant 0 : index
      %c0_287 = arith.constant 0 : index
      %716 = vector.load %arg2[%c0_286, %c0_287] : memref<1x32xf32, #tpu.memory_space<vmem>>, vector<1x32xf32>
      %c0_288 = arith.constant 0 : index
      %c0_289 = arith.constant 0 : index
      %717 = vector.load %arg17[%c0_288, %c0_289] : memref<1x32xf32, #tpu.memory_space<vmem>>, vector<1x32xf32>
      tpu.vector_store %arg17[%c0_288, %c0_289], %716 {strides = array<i32>} : memref<1x32xf32, #tpu.memory_space<vmem>>, vector<1x32xf32>,
      %c0_290 = arith.constant 0 : index
      %c0_291 = arith.constant 0 : index
      %718 = vector.load %arg3[%c0_290, %c0_291] : memref<1x32xf32, #tpu.memory_space<vmem>>, vector<1x32xf32>
      %c0_292 = arith.constant 0 : index
      %c0_293 = arith.constant 0 : index
      %719 = vector.load %arg18[%c0_292, %c0_293] : memref<1x32xf32, #tpu.memory_space<vmem>>, vector<1x32xf32>
      tpu.vector_store %arg18[%c0_292, %c0_293], %718 {strides = array<i32>} : memref<1x32xf32, #tpu.memory_space<vmem>>, vector<1x32xf32>,
    } else {
    }
    %c0 = arith.constant 0 : index
    %c0_1 = arith.constant 0 : index
    %c0_2 = arith.constant 0 : index
    %3 = vector.load %arg1[%c0, %c0_1, %c0_2] : memref<2x6x10xf32, #tpu.memory_space<vmem>>, vector<2x6x10xf32>
    %4 = vector.shape_cast %3 : vector<2x6x10xf32> to vector<12x10xf32>
    %c0_3 = arith.constant 0 : index
    %c0_4 = arith.constant 0 : index
    %5 = vector.load %arg5[%c0_3, %c0_4] : memref<10x138xf32, #tpu.memory_space<vmem>>, vector<10x138xf32>
    %cst = arith.constant dense<0.000000e+00> : vector<12x138xf32>
    %6 = tpu.matmul %4, %5, %cst {dimension_numbers = #tpu.dot_dimension_numbers<[1], [0], [0], [1], [0, 0, 1, 1], [], []>} : vector<12x10xf32>, vector<10x138xf32>, vector<12x138xf32> -> vector<12x138xf32>
    %c0_5 = arith.constant 0 : index
    %c0_6 = arith.constant 0 : index
    %7 = vector.load %arg6[%c0_5, %c0_6] : memref<1x138xf32, #tpu.memory_space<vmem>>, vector<1x138xf32>
    %8 = vector.broadcast %7 : vector<1x138xf32> to vector<12x138xf32>
    %9 = arith.addf %6, %8 : vector<12x138xf32>
    %c0_7 = arith.constant 0 : index
    %c0_8 = arith.constant 0 : index
    %10 = vector.load %arg4[%c0_7, %c0_8] : memref<32x128xf32, #tpu.memory_space<vmem>>, vector<32x128xf32>
    %c0_9 = arith.constant 0 : index
    %c0_10 = arith.constant 0 : index
    %11 = vector.load %arg7[%c0_9, %c0_10] : memref<32x10xf32, #tpu.memory_space<vmem>>, vector<32x10xf32>
    %c0_11 = arith.constant 0 : index
    %c0_12 = arith.constant 0 : index
    %12 = vector.load %arg8[%c0_11, %c0_12] : memref<32x10xf32, #tpu.memory_space<vmem>>, vector<32x10xf32>
    %c0_13 = arith.constant 0 : index
    %c0_14 = arith.constant 0 : index
    %13 = vector.load %arg9[%c0_13, %c0_14] : memref<1x10xf32, #tpu.memory_space<vmem>>, vector<1x10xf32>
    %c0_15 = arith.constant 0 : index
    %c0_16 = arith.constant 0 : index
    %14 = vector.load %arg10[%c0_15, %c0_16] : memref<32x10xf32, #tpu.memory_space<vmem>>, vector<32x10xf32>
    %c0_17 = arith.constant 0 : index
    %c0_18 = arith.constant 0 : index
    %15 = vector.load %arg11[%c0_17, %c0_18] : memref<1x10xf32, #tpu.memory_space<vmem>>, vector<1x10xf32>
    %c0_19 = arith.constant 0 : index
    %c0_20 = arith.constant 0 : index
    %16 = vector.load %arg17[%c0_19, %c0_20] : memref<1x32xf32, #tpu.memory_space<vmem>>, vector<1x32xf32>
    %c0_21 = arith.constant 0 : index
    %c0_22 = arith.constant 0 : index
    %17 = vector.load %arg18[%c0_21, %c0_22] : memref<1x32xf32, #tpu.memory_space<vmem>>, vector<1x32xf32>
    %cst_23 = arith.constant -1.000000e+30 : f32
    %18 = vector.broadcast %cst_23 : f32 to vector<6x1xf32>
    %c0_24 = arith.constant 0 : index
    %c0_25 = arith.constant 0 : index
    %19 = vector.load %arg16[%c0_24, %c0_25] : memref<6x1xf32, #tpu.memory_space<vmem>>, vector<6x1xf32>
    tpu.vector_store %arg16[%c0_24, %c0_25], %18 {strides = array<i32>} : memref<6x1xf32, #tpu.memory_space<vmem>>, vector<6x1xf32>,
    %20 = vector.extract_strided_slice %9 {offsets = [0, 0], sizes = [1, 138], strides = [1, 1]} : vector<12x138xf32> to vector<1x138xf32>
    %cst_26 = arith.constant dense<0.000000e+00> : vector<1x128xf32>
    %21 = tpu.matmul %16, %10, %cst_26 {dimension_numbers = #tpu.dot_dimension_numbers<[1], [0], [0], [1], [0, 0, 1, 1], [], []>} : vector<1x32xf32>, vector<32x128xf32>, vector<1x128xf32> -> vector<1x128xf32>
    %22 = vector.extract_strided_slice %20 {offsets = [0, 0], sizes = [1, 128], strides = [1, 1]} : vector<1x138xf32> to vector<1x128xf32>
    %23 = arith.addf %21, %22 : vector<1x128xf32>
    %24 = vector.extract_strided_slice %23 {offsets = [0, 0], sizes = [1, 96], strides = [1, 1]} : vector<1x128xf32> to vector<1x96xf32>
    %25 = arith.negf %24 : vector<1x96xf32>
    %26 = math.exp %25 : vector<1x96xf32>
    %cst_27 = arith.constant 1.000000e+00 : f32
    %27 = vector.broadcast %cst_27 : f32 to vector<1x96xf32>
    %28 = arith.addf %27, %26 : vector<1x96xf32>
    %29 = arith.divf %27, %28 : vector<1x96xf32>
    %30 = vector.extract_strided_slice %29 {offsets = [0, 0], sizes = [1, 32], strides = [1, 1]} : vector<1x96xf32> to vector<1x32xf32>
    %31 = vector.extract_strided_slice %29 {offsets = [0, 32], sizes = [1, 32], strides = [1, 1]} : vector<1x96xf32> to vector<1x32xf32>
    %32 = vector.extract_strided_slice %29 {offsets = [0, 64], sizes = [1, 32], strides = [1, 1]} : vector<1x96xf32> to vector<1x32xf32>
    %33 = vector.extract_strided_slice %23 {offsets = [0, 96], sizes = [1, 32], strides = [1, 1]} : vector<1x128xf32> to vector<1x32xf32>
    %34 = math.tanh %33 : vector<1x32xf32>
    %35 = arith.mulf %30, %17 : vector<1x32xf32>
    %36 = arith.mulf %32, %34 : vector<1x32xf32>
    %37 = arith.addf %35, %36 : vector<1x32xf32>
    %38 = math.tanh %37 : vector<1x32xf32>
    %39 = arith.mulf %31, %38 : vector<1x32xf32>
    %c0_28 = arith.constant 0 : index
    %c0_29 = arith.constant 0 : index
    %40 = vector.load %arg14[%c0_28, %c0_29] : memref<6x32xf32, #tpu.memory_space<vmem>>, vector<1x32xf32>
    tpu.vector_store %arg14[%c0_28, %c0_29], %39 {strides = array<i32>} : memref<6x32xf32, #tpu.memory_space<vmem>>, vector<1x32xf32>,
    %c0_30 = arith.constant 0 : index
    %c0_31 = arith.constant 0 : index
    %41 = vector.load %arg15[%c0_30, %c0_31] : memref<6x32xf32, #tpu.memory_space<vmem>>, vector<1x32xf32>
    tpu.vector_store %arg15[%c0_30, %c0_31], %37 {strides = array<i32>} : memref<6x32xf32, #tpu.memory_space<vmem>>, vector<1x32xf32>,
    %cst_32 = arith.constant dense<0.000000e+00> : vector<1x10xf32>
    %42 = tpu.matmul %39, %11, %cst_32 {dimension_numbers = #tpu.dot_dimension_numbers<[1], [0], [0], [1], [0, 0, 1, 1], [], []>} : vector<1x32xf32>, vector<32x10xf32>, vector<1x10xf32> -> vector<1x10xf32>
    %cst_33 = arith.constant dense<0.000000e+00> : vector<1x10xf32>
    %43 = tpu.matmul %16, %12, %cst_33 {dimension_numbers = #tpu.dot_dimension_numbers<[1], [0], [0], [1], [0, 0, 1, 1], [], []>} : vector<1x32xf32>, vector<32x10xf32>, vector<1x10xf32> -> vector<1x10xf32>
    %44 = arith.addf %42, %43 : vector<1x10xf32>
    %45 = vector.extract_strided_slice %20 {offsets = [0, 128], sizes = [1, 10], strides = [1, 1]} : vector<1x138xf32> to vector<1x10xf32>
    %46 = arith.addf %44, %45 : vector<1x10xf32>
    %47 = math.tanh %46 : vector<1x10xf32>
    %48 = arith.mulf %47, %13 : vector<1x10xf32>
    %cst_34 = arith.constant dense<0.000000e+00> : vector<1xf32>
    %49 = vector.multi_reduction <add>, %48, %cst_34 [1] : vector<1x10xf32> to vector<1xf32>
    %50 = vector.shape_cast %49 : vector<1xf32> to vector<1x1xf32>
    %c0_35 = arith.constant 0 : index
    %c0_36 = arith.constant 0 : index
    %51 = vector.load %arg16[%c0_35, %c0_36] : memref<6x1xf32, #tpu.memory_space<vmem>>, vector<1x1xf32>
    tpu.vector_store %arg16[%c0_35, %c0_36], %50 {strides = array<i32>} : memref<6x1xf32, #tpu.memory_space<vmem>>, vector<1x1xf32>,
    %c0_37 = arith.constant 0 : index
    %c0_38 = arith.constant 0 : index
    %52 = vector.load %arg16[%c0_37, %c0_38] : memref<6x1xf32, #tpu.memory_space<vmem>>, vector<6x1xf32>
    %53 = vector.shape_cast %52 : vector<6x1xf32> to vector<1x6x1xf32>
    %cst_39 = arith.constant dense<0xFF800000> : vector<1xf32>
    %54 = vector.multi_reduction <maximumf>, %53, %cst_39 [1, 2] : vector<1x6x1xf32> to vector<1xf32>
    %55 = vector.shape_cast %54 : vector<1xf32> to vector<1x1x1xf32>
    %56 = vector.extract %55[0, 0, 0] : f32 from vector<1x1x1xf32>
    %57 = vector.broadcast %56 : f32 to vector<1x1xf32>
    %58 = vector.broadcast %57 : vector<1x1xf32> to vector<6x1xf32>
    %59 = arith.subf %52, %58 : vector<6x1xf32>
    %60 = math.exp %59 : vector<6x1xf32>
    %61 = vector.shape_cast %60 : vector<6x1xf32> to vector<1x6x1xf32>
    %cst_40 = arith.constant dense<0.000000e+00> : vector<1xf32>
    %62 = vector.multi_reduction <add>, %61, %cst_40 [1, 2] : vector<1x6x1xf32> to vector<1xf32>
    %63 = vector.shape_cast %62 : vector<1xf32> to vector<1x1x1xf32>
    %64 = vector.extract %63[0, 0, 0] : f32 from vector<1x1x1xf32>
    %65 = vector.broadcast %64 : f32 to vector<1x1xf32>
    %66 = vector.broadcast %65 : vector<1x1xf32> to vector<6x1xf32>
    %67 = arith.divf %60, %66 : vector<6x1xf32>
    %c0_41 = arith.constant 0 : index
    %c0_42 = arith.constant 0 : index
    %68 = vector.load %arg14[%c0_41, %c0_42] : memref<6x32xf32, #tpu.memory_space<vmem>>, vector<6x32xf32>
    %69 = vector.broadcast %67 : vector<6x1xf32> to vector<6x32xf32>
    %70 = arith.mulf %69, %68 : vector<6x32xf32>
    %cst_43 = arith.constant dense<0.000000e+00> : vector<32xf32>
    %71 = vector.multi_reduction <add>, %70, %cst_43 [0] : vector<6x32xf32> to vector<32xf32>
    %72 = vector.shape_cast %71 : vector<32xf32> to vector<1x32xf32>
    %c0_44 = arith.constant 0 : index
    %c0_45 = arith.constant 0 : index
    %73 = vector.load %arg15[%c0_44, %c0_45] : memref<6x32xf32, #tpu.memory_space<vmem>>, vector<6x32xf32>
    %74 = vector.broadcast %67 : vector<6x1xf32> to vector<6x32xf32>
    %75 = arith.mulf %74, %73 : vector<6x32xf32>
    %cst_46 = arith.constant dense<0.000000e+00> : vector<32xf32>
    %76 = vector.multi_reduction <add>, %75, %cst_46 [0] : vector<6x32xf32> to vector<32xf32>
    %77 = vector.shape_cast %76 : vector<32xf32> to vector<1x32xf32>
    %78 = vector.extract_strided_slice %9 {offsets = [1, 0], sizes = [1, 138], strides = [1, 1]} : vector<12x138xf32> to vector<1x138xf32>
    %cst_47 = arith.constant dense<0.000000e+00> : vector<1x128xf32>
    %79 = tpu.matmul %72, %10, %cst_47 {dimension_numbers = #tpu.dot_dimension_numbers<[1], [0], [0], [1], [0, 0, 1, 1], [], []>} : vector<1x32xf32>, vector<32x128xf32>, vector<1x128xf32> -> vector<1x128xf32>
    %80 = vector.extract_strided_slice %78 {offsets = [0, 0], sizes = [1, 128], strides = [1, 1]} : vector<1x138xf32> to vector<1x128xf32>
    %81 = arith.addf %79, %80 : vector<1x128xf32>
    %82 = vector.extract_strided_slice %81 {offsets = [0, 0], sizes = [1, 96], strides = [1, 1]} : vector<1x128xf32> to vector<1x96xf32>
    %83 = arith.negf %82 : vector<1x96xf32>
    %84 = math.exp %83 : vector<1x96xf32>
    %cst_48 = arith.constant 1.000000e+00 : f32
    %85 = vector.broadcast %cst_48 : f32 to vector<1x96xf32>
    %86 = arith.addf %85, %84 : vector<1x96xf32>
    %87 = arith.divf %85, %86 : vector<1x96xf32>
    %88 = vector.extract_strided_slice %87 {offsets = [0, 0], sizes = [1, 32], strides = [1, 1]} : vector<1x96xf32> to vector<1x32xf32>
    %89 = vector.extract_strided_slice %87 {offsets = [0, 32], sizes = [1, 32], strides = [1, 1]} : vector<1x96xf32> to vector<1x32xf32>
    %90 = vector.extract_strided_slice %87 {offsets = [0, 64], sizes = [1, 32], strides = [1, 1]} : vector<1x96xf32> to vector<1x32xf32>
    %91 = vector.extract_strided_slice %81 {offsets = [0, 96], sizes = [1, 32], strides = [1, 1]} : vector<1x128xf32> to vector<1x32xf32>
    %92 = math.tanh %91 : vector<1x32xf32>
    %93 = arith.mulf %88, %77 : vector<1x32xf32>
    %94 = arith.mulf %90, %92 : vector<1x32xf32>
    %95 = arith.addf %93, %94 : vector<1x32xf32>
    %96 = math.tanh %95 : vector<1x32xf32>
    %97 = arith.mulf %89, %96 : vector<1x32xf32>
    %c1 = arith.constant 1 : index
    %c0_49 = arith.constant 0 : index
    %98 = vector.load %arg14[%c1, %c0_49] : memref<6x32xf32, #tpu.memory_space<vmem>>, vector<1x32xf32>
    tpu.vector_store %arg14[%c1, %c0_49], %97 {strides = array<i32>} : memref<6x32xf32, #tpu.memory_space<vmem>>, vector<1x32xf32>,
    %c1_50 = arith.constant 1 : index
    %c0_51 = arith.constant 0 : index
    %99 = vector.load %arg15[%c1_50, %c0_51] : memref<6x32xf32, #tpu.memory_space<vmem>>, vector<1x32xf32>
    tpu.vector_store %arg15[%c1_50, %c0_51], %95 {strides = array<i32>} : memref<6x32xf32, #tpu.memory_space<vmem>>, vector<1x32xf32>,
    %cst_52 = arith.constant dense<0.000000e+00> : vector<1x10xf32>
    %100 = tpu.matmul %97, %11, %cst_52 {dimension_numbers = #tpu.dot_dimension_numbers<[1], [0], [0], [1], [0, 0, 1, 1], [], []>} : vector<1x32xf32>, vector<32x10xf32>, vector<1x10xf32> -> vector<1x10xf32>
    %cst_53 = arith.constant dense<0.000000e+00> : vector<1x10xf32>
    %101 = tpu.matmul %72, %12, %cst_53 {dimension_numbers = #tpu.dot_dimension_numbers<[1], [0], [0], [1], [0, 0, 1, 1], [], []>} : vector<1x32xf32>, vector<32x10xf32>, vector<1x10xf32> -> vector<1x10xf32>
    %102 = arith.addf %100, %101 : vector<1x10xf32>
    %103 = vector.extract_strided_slice %78 {offsets = [0, 128], sizes = [1, 10], strides = [1, 1]} : vector<1x138xf32> to vector<1x10xf32>
    %104 = arith.addf %102, %103 : vector<1x10xf32>
    %105 = math.tanh %104 : vector<1x10xf32>
    %106 = arith.mulf %105, %13 : vector<1x10xf32>
    %cst_54 = arith.constant dense<0.000000e+00> : vector<1xf32>
    %107 = vector.multi_reduction <add>, %106, %cst_54 [1] : vector<1x10xf32> to vector<1xf32>
    %108 = vector.shape_cast %107 : vector<1xf32> to vector<1x1xf32>
    %c1_55 = arith.constant 1 : index
    %c0_56 = arith.constant 0 : index
    %109 = vector.load %arg16[%c1_55, %c0_56] : memref<6x1xf32, #tpu.memory_space<vmem>>, vector<1x1xf32>
    tpu.vector_store %arg16[%c1_55, %c0_56], %108 {strides = array<i32>} : memref<6x1xf32, #tpu.memory_space<vmem>>, vector<1x1xf32>,
    %c0_57 = arith.constant 0 : index
    %c0_58 = arith.constant 0 : index
    %110 = vector.load %arg16[%c0_57, %c0_58] : memref<6x1xf32, #tpu.memory_space<vmem>>, vector<6x1xf32>
    %111 = vector.shape_cast %110 : vector<6x1xf32> to vector<1x6x1xf32>
    %cst_59 = arith.constant dense<0xFF800000> : vector<1xf32>
    %112 = vector.multi_reduction <maximumf>, %111, %cst_59 [1, 2] : vector<1x6x1xf32> to vector<1xf32>
    %113 = vector.shape_cast %112 : vector<1xf32> to vector<1x1x1xf32>
    %114 = vector.extract %113[0, 0, 0] : f32 from vector<1x1x1xf32>
    %115 = vector.broadcast %114 : f32 to vector<1x1xf32>
    %116 = vector.broadcast %115 : vector<1x1xf32> to vector<6x1xf32>
    %117 = arith.subf %110, %116 : vector<6x1xf32>
    %118 = math.exp %117 : vector<6x1xf32>
    %119 = vector.shape_cast %118 : vector<6x1xf32> to vector<1x6x1xf32>
    %cst_60 = arith.constant dense<0.000000e+00> : vector<1xf32>
    %120 = vector.multi_reduction <add>, %119, %cst_60 [1, 2] : vector<1x6x1xf32> to vector<1xf32>
    %121 = vector.shape_cast %120 : vector<1xf32> to vector<1x1x1xf32>
    %122 = vector.extract %121[0, 0, 0] : f32 from vector<1x1x1xf32>
    %123 = vector.broadcast %122 : f32 to vector<1x1xf32>
    %124 = vector.broadcast %123 : vector<1x1xf32> to vector<6x1xf32>
    %125 = arith.divf %118, %124 : vector<6x1xf32>
    %c0_61 = arith.constant 0 : index
    %c0_62 = arith.constant 0 : index
    %126 = vector.load %arg14[%c0_61, %c0_62] : memref<6x32xf32, #tpu.memory_space<vmem>>, vector<6x32xf32>
    %127 = vector.broadcast %125 : vector<6x1xf32> to vector<6x32xf32>
    %128 = arith.mulf %127, %126 : vector<6x32xf32>
    %cst_63 = arith.constant dense<0.000000e+00> : vector<32xf32>
    %129 = vector.multi_reduction <add>, %128, %cst_63 [0] : vector<6x32xf32> to vector<32xf32>
    %130 = vector.shape_cast %129 : vector<32xf32> to vector<1x32xf32>
    %c0_64 = arith.constant 0 : index
    %c0_65 = arith.constant 0 : index
    %131 = vector.load %arg15[%c0_64, %c0_65] : memref<6x32xf32, #tpu.memory_space<vmem>>, vector<6x32xf32>
    %132 = vector.broadcast %125 : vector<6x1xf32> to vector<6x32xf32>
    %133 = arith.mulf %132, %131 : vector<6x32xf32>
    %cst_66 = arith.constant dense<0.000000e+00> : vector<32xf32>
    %134 = vector.multi_reduction <add>, %133, %cst_66 [0] : vector<6x32xf32> to vector<32xf32>
    %135 = vector.shape_cast %134 : vector<32xf32> to vector<1x32xf32>
    %136 = vector.extract_strided_slice %9 {offsets = [2, 0], sizes = [1, 138], strides = [1, 1]} : vector<12x138xf32> to vector<1x138xf32>
    %cst_67 = arith.constant dense<0.000000e+00> : vector<1x128xf32>
    %137 = tpu.matmul %130, %10, %cst_67 {dimension_numbers = #tpu.dot_dimension_numbers<[1], [0], [0], [1], [0, 0, 1, 1], [], []>} : vector<1x32xf32>, vector<32x128xf32>, vector<1x128xf32> -> vector<1x128xf32>
    %138 = vector.extract_strided_slice %136 {offsets = [0, 0], sizes = [1, 128], strides = [1, 1]} : vector<1x138xf32> to vector<1x128xf32>
    %139 = arith.addf %137, %138 : vector<1x128xf32>
    %140 = vector.extract_strided_slice %139 {offsets = [0, 0], sizes = [1, 96], strides = [1, 1]} : vector<1x128xf32> to vector<1x96xf32>
    %141 = arith.negf %140 : vector<1x96xf32>
    %142 = math.exp %141 : vector<1x96xf32>
    %cst_68 = arith.constant 1.000000e+00 : f32
    %143 = vector.broadcast %cst_68 : f32 to vector<1x96xf32>
    %144 = arith.addf %143, %142 : vector<1x96xf32>
    %145 = arith.divf %143, %144 : vector<1x96xf32>
    %146 = vector.extract_strided_slice %145 {offsets = [0, 0], sizes = [1, 32], strides = [1, 1]} : vector<1x96xf32> to vector<1x32xf32>
    %147 = vector.extract_strided_slice %145 {offsets = [0, 32], sizes = [1, 32], strides = [1, 1]} : vector<1x96xf32> to vector<1x32xf32>
    %148 = vector.extract_strided_slice %145 {offsets = [0, 64], sizes = [1, 32], strides = [1, 1]} : vector<1x96xf32> to vector<1x32xf32>
    %149 = vector.extract_strided_slice %139 {offsets = [0, 96], sizes = [1, 32], strides = [1, 1]} : vector<1x128xf32> to vector<1x32xf32>
    %150 = math.tanh %149 : vector<1x32xf32>
    %151 = arith.mulf %146, %135 : vector<1x32xf32>
    %152 = arith.mulf %148, %150 : vector<1x32xf32>
    %153 = arith.addf %151, %152 : vector<1x32xf32>
    %154 = math.tanh %153 : vector<1x32xf32>
    %155 = arith.mulf %147, %154 : vector<1x32xf32>
    %c2 = arith.constant 2 : index
    %c0_69 = arith.constant 0 : index
    %156 = vector.load %arg14[%c2, %c0_69] : memref<6x32xf32, #tpu.memory_space<vmem>>, vector<1x32xf32>
    tpu.vector_store %arg14[%c2, %c0_69], %155 {strides = array<i32>} : memref<6x32xf32, #tpu.memory_space<vmem>>, vector<1x32xf32>,
    %c2_70 = arith.constant 2 : index
    %c0_71 = arith.constant 0 : index
    %157 = vector.load %arg15[%c2_70, %c0_71] : memref<6x32xf32, #tpu.memory_space<vmem>>, vector<1x32xf32>
    tpu.vector_store %arg15[%c2_70, %c0_71], %153 {strides = array<i32>} : memref<6x32xf32, #tpu.memory_space<vmem>>, vector<1x32xf32>,
    %cst_72 = arith.constant dense<0.000000e+00> : vector<1x10xf32>
    %158 = tpu.matmul %155, %11, %cst_72 {dimension_numbers = #tpu.dot_dimension_numbers<[1], [0], [0], [1], [0, 0, 1, 1], [], []>} : vector<1x32xf32>, vector<32x10xf32>, vector<1x10xf32> -> vector<1x10xf32>
    %cst_73 = arith.constant dense<0.000000e+00> : vector<1x10xf32>
    %159 = tpu.matmul %130, %12, %cst_73 {dimension_numbers = #tpu.dot_dimension_numbers<[1], [0], [0], [1], [0, 0, 1, 1], [], []>} : vector<1x32xf32>, vector<32x10xf32>, vector<1x10xf32> -> vector<1x10xf32>
    %160 = arith.addf %158, %159 : vector<1x10xf32>
    %161 = vector.extract_strided_slice %136 {offsets = [0, 128], sizes = [1, 10], strides = [1, 1]} : vector<1x138xf32> to vector<1x10xf32>
    %162 = arith.addf %160, %161 : vector<1x10xf32>
    %163 = math.tanh %162 : vector<1x10xf32>
    %164 = arith.mulf %163, %13 : vector<1x10xf32>
    %cst_74 = arith.constant dense<0.000000e+00> : vector<1xf32>
    %165 = vector.multi_reduction <add>, %164, %cst_74 [1] : vector<1x10xf32> to vector<1xf32>
    %166 = vector.shape_cast %165 : vector<1xf32> to vector<1x1xf32>
    %c2_75 = arith.constant 2 : index
    %c0_76 = arith.constant 0 : index
    %167 = vector.load %arg16[%c2_75, %c0_76] : memref<6x1xf32, #tpu.memory_space<vmem>>, vector<1x1xf32>
    tpu.vector_store %arg16[%c2_75, %c0_76], %166 {strides = array<i32>} : memref<6x1xf32, #tpu.memory_space<vmem>>, vector<1x1xf32>,
    %c0_77 = arith.constant 0 : index
    %c0_78 = arith.constant 0 : index
    %168 = vector.load %arg16[%c0_77, %c0_78] : memref<6x1xf32, #tpu.memory_space<vmem>>, vector<6x1xf32>
    %169 = vector.shape_cast %168 : vector<6x1xf32> to vector<1x6x1xf32>
    %cst_79 = arith.constant dense<0xFF800000> : vector<1xf32>
    %170 = vector.multi_reduction <maximumf>, %169, %cst_79 [1, 2] : vector<1x6x1xf32> to vector<1xf32>
    %171 = vector.shape_cast %170 : vector<1xf32> to vector<1x1x1xf32>
    %172 = vector.extract %171[0, 0, 0] : f32 from vector<1x1x1xf32>
    %173 = vector.broadcast %172 : f32 to vector<1x1xf32>
    %174 = vector.broadcast %173 : vector<1x1xf32> to vector<6x1xf32>
    %175 = arith.subf %168, %174 : vector<6x1xf32>
    %176 = math.exp %175 : vector<6x1xf32>
    %177 = vector.shape_cast %176 : vector<6x1xf32> to vector<1x6x1xf32>
    %cst_80 = arith.constant dense<0.000000e+00> : vector<1xf32>
    %178 = vector.multi_reduction <add>, %177, %cst_80 [1, 2] : vector<1x6x1xf32> to vector<1xf32>
    %179 = vector.shape_cast %178 : vector<1xf32> to vector<1x1x1xf32>
    %180 = vector.extract %179[0, 0, 0] : f32 from vector<1x1x1xf32>
    %181 = vector.broadcast %180 : f32 to vector<1x1xf32>
    %182 = vector.broadcast %181 : vector<1x1xf32> to vector<6x1xf32>
    %183 = arith.divf %176, %182 : vector<6x1xf32>
    %c0_81 = arith.constant 0 : index
    %c0_82 = arith.constant 0 : index
    %184 = vector.load %arg14[%c0_81, %c0_82] : memref<6x32xf32, #tpu.memory_space<vmem>>, vector<6x32xf32>
    %185 = vector.broadcast %183 : vector<6x1xf32> to vector<6x32xf32>
    %186 = arith.mulf %185, %184 : vector<6x32xf32>
    %cst_83 = arith.constant dense<0.000000e+00> : vector<32xf32>
    %187 = vector.multi_reduction <add>, %186, %cst_83 [0] : vector<6x32xf32> to vector<32xf32>
    %188 = vector.shape_cast %187 : vector<32xf32> to vector<1x32xf32>
    %c0_84 = arith.constant 0 : index
    %c0_85 = arith.constant 0 : index
    %189 = vector.load %arg15[%c0_84, %c0_85] : memref<6x32xf32, #tpu.memory_space<vmem>>, vector<6x32xf32>
    %190 = vector.broadcast %183 : vector<6x1xf32> to vector<6x32xf32>
    %191 = arith.mulf %190, %189 : vector<6x32xf32>
    %cst_86 = arith.constant dense<0.000000e+00> : vector<32xf32>
    %192 = vector.multi_reduction <add>, %191, %cst_86 [0] : vector<6x32xf32> to vector<32xf32>
    %193 = vector.shape_cast %192 : vector<32xf32> to vector<1x32xf32>
    %194 = vector.extract_strided_slice %9 {offsets = [3, 0], sizes = [1, 138], strides = [1, 1]} : vector<12x138xf32> to vector<1x138xf32>
    %cst_87 = arith.constant dense<0.000000e+00> : vector<1x128xf32>
    %195 = tpu.matmul %188, %10, %cst_87 {dimension_numbers = #tpu.dot_dimension_numbers<[1], [0], [0], [1], [0, 0, 1, 1], [], []>} : vector<1x32xf32>, vector<32x128xf32>, vector<1x128xf32> -> vector<1x128xf32>
    %196 = vector.extract_strided_slice %194 {offsets = [0, 0], sizes = [1, 128], strides = [1, 1]} : vector<1x138xf32> to vector<1x128xf32>
    %197 = arith.addf %195, %196 : vector<1x128xf32>
    %198 = vector.extract_strided_slice %197 {offsets = [0, 0], sizes = [1, 96], strides = [1, 1]} : vector<1x128xf32> to vector<1x96xf32>
    %199 = arith.negf %198 : vector<1x96xf32>
    %200 = math.exp %199 : vector<1x96xf32>
    %cst_88 = arith.constant 1.000000e+00 : f32
    %201 = vector.broadcast %cst_88 : f32 to vector<1x96xf32>
    %202 = arith.addf %201, %200 : vector<1x96xf32>
    %203 = arith.divf %201, %202 : vector<1x96xf32>
    %204 = vector.extract_strided_slice %203 {offsets = [0, 0], sizes = [1, 32], strides = [1, 1]} : vector<1x96xf32> to vector<1x32xf32>
    %205 = vector.extract_strided_slice %203 {offsets = [0, 32], sizes = [1, 32], strides = [1, 1]} : vector<1x96xf32> to vector<1x32xf32>
    %206 = vector.extract_strided_slice %203 {offsets = [0, 64], sizes = [1, 32], strides = [1, 1]} : vector<1x96xf32> to vector<1x32xf32>
    %207 = vector.extract_strided_slice %197 {offsets = [0, 96], sizes = [1, 32], strides = [1, 1]} : vector<1x128xf32> to vector<1x32xf32>
    %208 = math.tanh %207 : vector<1x32xf32>
    %209 = arith.mulf %204, %193 : vector<1x32xf32>
    %210 = arith.mulf %206, %208 : vector<1x32xf32>
    %211 = arith.addf %209, %210 : vector<1x32xf32>
    %212 = math.tanh %211 : vector<1x32xf32>
    %213 = arith.mulf %205, %212 : vector<1x32xf32>
    %c3 = arith.constant 3 : index
    %c0_89 = arith.constant 0 : index
    %214 = vector.load %arg14[%c3, %c0_89] : memref<6x32xf32, #tpu.memory_space<vmem>>, vector<1x32xf32>
    tpu.vector_store %arg14[%c3, %c0_89], %213 {strides = array<i32>} : memref<6x32xf32, #tpu.memory_space<vmem>>, vector<1x32xf32>,
    %c3_90 = arith.constant 3 : index
    %c0_91 = arith.constant 0 : index
    %215 = vector.load %arg15[%c3_90, %c0_91] : memref<6x32xf32, #tpu.memory_space<vmem>>, vector<1x32xf32>
    tpu.vector_store %arg15[%c3_90, %c0_91], %211 {strides = array<i32>} : memref<6x32xf32, #tpu.memory_space<vmem>>, vector<1x32xf32>,
    %cst_92 = arith.constant dense<0.000000e+00> : vector<1x10xf32>
    %216 = tpu.matmul %213, %11, %cst_92 {dimension_numbers = #tpu.dot_dimension_numbers<[1], [0], [0], [1], [0, 0, 1, 1], [], []>} : vector<1x32xf32>, vector<32x10xf32>, vector<1x10xf32> -> vector<1x10xf32>
    %cst_93 = arith.constant dense<0.000000e+00> : vector<1x10xf32>
    %217 = tpu.matmul %188, %12, %cst_93 {dimension_numbers = #tpu.dot_dimension_numbers<[1], [0], [0], [1], [0, 0, 1, 1], [], []>} : vector<1x32xf32>, vector<32x10xf32>, vector<1x10xf32> -> vector<1x10xf32>
    %218 = arith.addf %216, %217 : vector<1x10xf32>
    %219 = vector.extract_strided_slice %194 {offsets = [0, 128], sizes = [1, 10], strides = [1, 1]} : vector<1x138xf32> to vector<1x10xf32>
    %220 = arith.addf %218, %219 : vector<1x10xf32>
    %221 = math.tanh %220 : vector<1x10xf32>
    %222 = arith.mulf %221, %13 : vector<1x10xf32>
    %cst_94 = arith.constant dense<0.000000e+00> : vector<1xf32>
    %223 = vector.multi_reduction <add>, %222, %cst_94 [1] : vector<1x10xf32> to vector<1xf32>
    %224 = vector.shape_cast %223 : vector<1xf32> to vector<1x1xf32>
    %c3_95 = arith.constant 3 : index
    %c0_96 = arith.constant 0 : index
    %225 = vector.load %arg16[%c3_95, %c0_96] : memref<6x1xf32, #tpu.memory_space<vmem>>, vector<1x1xf32>
    tpu.vector_store %arg16[%c3_95, %c0_96], %224 {strides = array<i32>} : memref<6x1xf32, #tpu.memory_space<vmem>>, vector<1x1xf32>,
    %c0_97 = arith.constant 0 : index
    %c0_98 = arith.constant 0 : index
    %226 = vector.load %arg16[%c0_97, %c0_98] : memref<6x1xf32, #tpu.memory_space<vmem>>, vector<6x1xf32>
    %227 = vector.shape_cast %226 : vector<6x1xf32> to vector<1x6x1xf32>
    %cst_99 = arith.constant dense<0xFF800000> : vector<1xf32>
    %228 = vector.multi_reduction <maximumf>, %227, %cst_99 [1, 2] : vector<1x6x1xf32> to vector<1xf32>
    %229 = vector.shape_cast %228 : vector<1xf32> to vector<1x1x1xf32>
    %230 = vector.extract %229[0, 0, 0] : f32 from vector<1x1x1xf32>
    %231 = vector.broadcast %230 : f32 to vector<1x1xf32>
    %232 = vector.broadcast %231 : vector<1x1xf32> to vector<6x1xf32>
    %233 = arith.subf %226, %232 : vector<6x1xf32>
    %234 = math.exp %233 : vector<6x1xf32>
    %235 = vector.shape_cast %234 : vector<6x1xf32> to vector<1x6x1xf32>
    %cst_100 = arith.constant dense<0.000000e+00> : vector<1xf32>
    %236 = vector.multi_reduction <add>, %235, %cst_100 [1, 2] : vector<1x6x1xf32> to vector<1xf32>
    %237 = vector.shape_cast %236 : vector<1xf32> to vector<1x1x1xf32>
    %238 = vector.extract %237[0, 0, 0] : f32 from vector<1x1x1xf32>
    %239 = vector.broadcast %238 : f32 to vector<1x1xf32>
    %240 = vector.broadcast %239 : vector<1x1xf32> to vector<6x1xf32>
    %241 = arith.divf %234, %240 : vector<6x1xf32>
    %c0_101 = arith.constant 0 : index
    %c0_102 = arith.constant 0 : index
    %242 = vector.load %arg14[%c0_101, %c0_102] : memref<6x32xf32, #tpu.memory_space<vmem>>, vector<6x32xf32>
    %243 = vector.broadcast %241 : vector<6x1xf32> to vector<6x32xf32>
    %244 = arith.mulf %243, %242 : vector<6x32xf32>
    %cst_103 = arith.constant dense<0.000000e+00> : vector<32xf32>
    %245 = vector.multi_reduction <add>, %244, %cst_103 [0] : vector<6x32xf32> to vector<32xf32>
    %246 = vector.shape_cast %245 : vector<32xf32> to vector<1x32xf32>
    %c0_104 = arith.constant 0 : index
    %c0_105 = arith.constant 0 : index
    %247 = vector.load %arg15[%c0_104, %c0_105] : memref<6x32xf32, #tpu.memory_space<vmem>>, vector<6x32xf32>
    %248 = vector.broadcast %241 : vector<6x1xf32> to vector<6x32xf32>
    %249 = arith.mulf %248, %247 : vector<6x32xf32>
    %cst_106 = arith.constant dense<0.000000e+00> : vector<32xf32>
    %250 = vector.multi_reduction <add>, %249, %cst_106 [0] : vector<6x32xf32> to vector<32xf32>
    %251 = vector.shape_cast %250 : vector<32xf32> to vector<1x32xf32>
    %252 = vector.extract_strided_slice %9 {offsets = [4, 0], sizes = [1, 138], strides = [1, 1]} : vector<12x138xf32> to vector<1x138xf32>
    %cst_107 = arith.constant dense<0.000000e+00> : vector<1x128xf32>
    %253 = tpu.matmul %246, %10, %cst_107 {dimension_numbers = #tpu.dot_dimension_numbers<[1], [0], [0], [1], [0, 0, 1, 1], [], []>} : vector<1x32xf32>, vector<32x128xf32>, vector<1x128xf32> -> vector<1x128xf32>
    %254 = vector.extract_strided_slice %252 {offsets = [0, 0], sizes = [1, 128], strides = [1, 1]} : vector<1x138xf32> to vector<1x128xf32>
    %255 = arith.addf %253, %254 : vector<1x128xf32>
    %256 = vector.extract_strided_slice %255 {offsets = [0, 0], sizes = [1, 96], strides = [1, 1]} : vector<1x128xf32> to vector<1x96xf32>
    %257 = arith.negf %256 : vector<1x96xf32>
    %258 = math.exp %257 : vector<1x96xf32>
    %cst_108 = arith.constant 1.000000e+00 : f32
    %259 = vector.broadcast %cst_108 : f32 to vector<1x96xf32>
    %260 = arith.addf %259, %258 : vector<1x96xf32>
    %261 = arith.divf %259, %260 : vector<1x96xf32>
    %262 = vector.extract_strided_slice %261 {offsets = [0, 0], sizes = [1, 32], strides = [1, 1]} : vector<1x96xf32> to vector<1x32xf32>
    %263 = vector.extract_strided_slice %261 {offsets = [0, 32], sizes = [1, 32], strides = [1, 1]} : vector<1x96xf32> to vector<1x32xf32>
    %264 = vector.extract_strided_slice %261 {offsets = [0, 64], sizes = [1, 32], strides = [1, 1]} : vector<1x96xf32> to vector<1x32xf32>
    %265 = vector.extract_strided_slice %255 {offsets = [0, 96], sizes = [1, 32], strides = [1, 1]} : vector<1x128xf32> to vector<1x32xf32>
    %266 = math.tanh %265 : vector<1x32xf32>
    %267 = arith.mulf %262, %251 : vector<1x32xf32>
    %268 = arith.mulf %264, %266 : vector<1x32xf32>
    %269 = arith.addf %267, %268 : vector<1x32xf32>
    %270 = math.tanh %269 : vector<1x32xf32>
    %271 = arith.mulf %263, %270 : vector<1x32xf32>
    %c4 = arith.constant 4 : index
    %c0_109 = arith.constant 0 : index
    %272 = vector.load %arg14[%c4, %c0_109] : memref<6x32xf32, #tpu.memory_space<vmem>>, vector<1x32xf32>
    tpu.vector_store %arg14[%c4, %c0_109], %271 {strides = array<i32>} : memref<6x32xf32, #tpu.memory_space<vmem>>, vector<1x32xf32>,
    %c4_110 = arith.constant 4 : index
    %c0_111 = arith.constant 0 : index
    %273 = vector.load %arg15[%c4_110, %c0_111] : memref<6x32xf32, #tpu.memory_space<vmem>>, vector<1x32xf32>
    tpu.vector_store %arg15[%c4_110, %c0_111], %269 {strides = array<i32>} : memref<6x32xf32, #tpu.memory_space<vmem>>, vector<1x32xf32>,
    %cst_112 = arith.constant dense<0.000000e+00> : vector<1x10xf32>
    %274 = tpu.matmul %271, %11, %cst_112 {dimension_numbers = #tpu.dot_dimension_numbers<[1], [0], [0], [1], [0, 0, 1, 1], [], []>} : vector<1x32xf32>, vector<32x10xf32>, vector<1x10xf32> -> vector<1x10xf32>
    %cst_113 = arith.constant dense<0.000000e+00> : vector<1x10xf32>
    %275 = tpu.matmul %246, %12, %cst_113 {dimension_numbers = #tpu.dot_dimension_numbers<[1], [0], [0], [1], [0, 0, 1, 1], [], []>} : vector<1x32xf32>, vector<32x10xf32>, vector<1x10xf32> -> vector<1x10xf32>
    %276 = arith.addf %274, %275 : vector<1x10xf32>
    %277 = vector.extract_strided_slice %252 {offsets = [0, 128], sizes = [1, 10], strides = [1, 1]} : vector<1x138xf32> to vector<1x10xf32>
    %278 = arith.addf %276, %277 : vector<1x10xf32>
    %279 = math.tanh %278 : vector<1x10xf32>
    %280 = arith.mulf %279, %13 : vector<1x10xf32>
    %cst_114 = arith.constant dense<0.000000e+00> : vector<1xf32>
    %281 = vector.multi_reduction <add>, %280, %cst_114 [1] : vector<1x10xf32> to vector<1xf32>
    %282 = vector.shape_cast %281 : vector<1xf32> to vector<1x1xf32>
    %c4_115 = arith.constant 4 : index
    %c0_116 = arith.constant 0 : index
    %283 = vector.load %arg16[%c4_115, %c0_116] : memref<6x1xf32, #tpu.memory_space<vmem>>, vector<1x1xf32>
    tpu.vector_store %arg16[%c4_115, %c0_116], %282 {strides = array<i32>} : memref<6x1xf32, #tpu.memory_space<vmem>>, vector<1x1xf32>,
    %c0_117 = arith.constant 0 : index
    %c0_118 = arith.constant 0 : index
    %284 = vector.load %arg16[%c0_117, %c0_118] : memref<6x1xf32, #tpu.memory_space<vmem>>, vector<6x1xf32>
    %285 = vector.shape_cast %284 : vector<6x1xf32> to vector<1x6x1xf32>
    %cst_119 = arith.constant dense<0xFF800000> : vector<1xf32>
    %286 = vector.multi_reduction <maximumf>, %285, %cst_119 [1, 2] : vector<1x6x1xf32> to vector<1xf32>
    %287 = vector.shape_cast %286 : vector<1xf32> to vector<1x1x1xf32>
    %288 = vector.extract %287[0, 0, 0] : f32 from vector<1x1x1xf32>
    %289 = vector.broadcast %288 : f32 to vector<1x1xf32>
    %290 = vector.broadcast %289 : vector<1x1xf32> to vector<6x1xf32>
    %291 = arith.subf %284, %290 : vector<6x1xf32>
    %292 = math.exp %291 : vector<6x1xf32>
    %293 = vector.shape_cast %292 : vector<6x1xf32> to vector<1x6x1xf32>
    %cst_120 = arith.constant dense<0.000000e+00> : vector<1xf32>
    %294 = vector.multi_reduction <add>, %293, %cst_120 [1, 2] : vector<1x6x1xf32> to vector<1xf32>
    %295 = vector.shape_cast %294 : vector<1xf32> to vector<1x1x1xf32>
    %296 = vector.extract %295[0, 0, 0] : f32 from vector<1x1x1xf32>
    %297 = vector.broadcast %296 : f32 to vector<1x1xf32>
    %298 = vector.broadcast %297 : vector<1x1xf32> to vector<6x1xf32>
    %299 = arith.divf %292, %298 : vector<6x1xf32>
    %c0_121 = arith.constant 0 : index
    %c0_122 = arith.constant 0 : index
    %300 = vector.load %arg14[%c0_121, %c0_122] : memref<6x32xf32, #tpu.memory_space<vmem>>, vector<6x32xf32>
    %301 = vector.broadcast %299 : vector<6x1xf32> to vector<6x32xf32>
    %302 = arith.mulf %301, %300 : vector<6x32xf32>
    %cst_123 = arith.constant dense<0.000000e+00> : vector<32xf32>
    %303 = vector.multi_reduction <add>, %302, %cst_123 [0] : vector<6x32xf32> to vector<32xf32>
    %304 = vector.shape_cast %303 : vector<32xf32> to vector<1x32xf32>
    %c0_124 = arith.constant 0 : index
    %c0_125 = arith.constant 0 : index
    %305 = vector.load %arg15[%c0_124, %c0_125] : memref<6x32xf32, #tpu.memory_space<vmem>>, vector<6x32xf32>
    %306 = vector.broadcast %299 : vector<6x1xf32> to vector<6x32xf32>
    %307 = arith.mulf %306, %305 : vector<6x32xf32>
    %cst_126 = arith.constant dense<0.000000e+00> : vector<32xf32>
    %308 = vector.multi_reduction <add>, %307, %cst_126 [0] : vector<6x32xf32> to vector<32xf32>
    %309 = vector.shape_cast %308 : vector<32xf32> to vector<1x32xf32>
    %310 = vector.extract_strided_slice %9 {offsets = [5, 0], sizes = [1, 138], strides = [1, 1]} : vector<12x138xf32> to vector<1x138xf32>
    %cst_127 = arith.constant dense<0.000000e+00> : vector<1x128xf32>
    %311 = tpu.matmul %304, %10, %cst_127 {dimension_numbers = #tpu.dot_dimension_numbers<[1], [0], [0], [1], [0, 0, 1, 1], [], []>} : vector<1x32xf32>, vector<32x128xf32>, vector<1x128xf32> -> vector<1x128xf32>
    %312 = vector.extract_strided_slice %310 {offsets = [0, 0], sizes = [1, 128], strides = [1, 1]} : vector<1x138xf32> to vector<1x128xf32>
    %313 = arith.addf %311, %312 : vector<1x128xf32>
    %314 = vector.extract_strided_slice %313 {offsets = [0, 0], sizes = [1, 96], strides = [1, 1]} : vector<1x128xf32> to vector<1x96xf32>
    %315 = arith.negf %314 : vector<1x96xf32>
    %316 = math.exp %315 : vector<1x96xf32>
    %cst_128 = arith.constant 1.000000e+00 : f32
    %317 = vector.broadcast %cst_128 : f32 to vector<1x96xf32>
    %318 = arith.addf %317, %316 : vector<1x96xf32>
    %319 = arith.divf %317, %318 : vector<1x96xf32>
    %320 = vector.extract_strided_slice %319 {offsets = [0, 0], sizes = [1, 32], strides = [1, 1]} : vector<1x96xf32> to vector<1x32xf32>
    %321 = vector.extract_strided_slice %319 {offsets = [0, 32], sizes = [1, 32], strides = [1, 1]} : vector<1x96xf32> to vector<1x32xf32>
    %322 = vector.extract_strided_slice %319 {offsets = [0, 64], sizes = [1, 32], strides = [1, 1]} : vector<1x96xf32> to vector<1x32xf32>
    %323 = vector.extract_strided_slice %313 {offsets = [0, 96], sizes = [1, 32], strides = [1, 1]} : vector<1x128xf32> to vector<1x32xf32>
    %324 = math.tanh %323 : vector<1x32xf32>
    %325 = arith.mulf %320, %309 : vector<1x32xf32>
    %326 = arith.mulf %322, %324 : vector<1x32xf32>
    %327 = arith.addf %325, %326 : vector<1x32xf32>
    %328 = math.tanh %327 : vector<1x32xf32>
    %329 = arith.mulf %321, %328 : vector<1x32xf32>
    %c5 = arith.constant 5 : index
    %c0_129 = arith.constant 0 : index
    %330 = vector.load %arg14[%c5, %c0_129] : memref<6x32xf32, #tpu.memory_space<vmem>>, vector<1x32xf32>
    tpu.vector_store %arg14[%c5, %c0_129], %329 {strides = array<i32>} : memref<6x32xf32, #tpu.memory_space<vmem>>, vector<1x32xf32>,
    %c5_130 = arith.constant 5 : index
    %c0_131 = arith.constant 0 : index
    %331 = vector.load %arg15[%c5_130, %c0_131] : memref<6x32xf32, #tpu.memory_space<vmem>>, vector<1x32xf32>
    tpu.vector_store %arg15[%c5_130, %c0_131], %327 {strides = array<i32>} : memref<6x32xf32, #tpu.memory_space<vmem>>, vector<1x32xf32>,
    %cst_132 = arith.constant dense<0.000000e+00> : vector<1x10xf32>
    %332 = tpu.matmul %329, %11, %cst_132 {dimension_numbers = #tpu.dot_dimension_numbers<[1], [0], [0], [1], [0, 0, 1, 1], [], []>} : vector<1x32xf32>, vector<32x10xf32>, vector<1x10xf32> -> vector<1x10xf32>
    %cst_133 = arith.constant dense<0.000000e+00> : vector<1x10xf32>
    %333 = tpu.matmul %304, %12, %cst_133 {dimension_numbers = #tpu.dot_dimension_numbers<[1], [0], [0], [1], [0, 0, 1, 1], [], []>} : vector<1x32xf32>, vector<32x10xf32>, vector<1x10xf32> -> vector<1x10xf32>
    %334 = arith.addf %332, %333 : vector<1x10xf32>
    %335 = vector.extract_strided_slice %310 {offsets = [0, 128], sizes = [1, 10], strides = [1, 1]} : vector<1x138xf32> to vector<1x10xf32>
    %336 = arith.addf %334, %335 : vector<1x10xf32>
    %337 = math.tanh %336 : vector<1x10xf32>
    %338 = arith.mulf %337, %13 : vector<1x10xf32>
    %cst_134 = arith.constant dense<0.000000e+00> : vector<1xf32>
    %339 = vector.multi_reduction <add>, %338, %cst_134 [1] : vector<1x10xf32> to vector<1xf32>
    %340 = vector.shape_cast %339 : vector<1xf32> to vector<1x1xf32>
    %c5_135 = arith.constant 5 : index
    %c0_136 = arith.constant 0 : index
    %341 = vector.load %arg16[%c5_135, %c0_136] : memref<6x1xf32, #tpu.memory_space<vmem>>, vector<1x1xf32>
    tpu.vector_store %arg16[%c5_135, %c0_136], %340 {strides = array<i32>} : memref<6x1xf32, #tpu.memory_space<vmem>>, vector<1x1xf32>,
    %cst_137 = arith.constant dense<0.000000e+00> : vector<1x10xf32>
    %342 = tpu.matmul %329, %14, %cst_137 {dimension_numbers = #tpu.dot_dimension_numbers<[1], [0], [0], [1], [0, 0, 1, 1], [], []>} : vector<1x32xf32>, vector<32x10xf32>, vector<1x10xf32> -> vector<1x10xf32>
    %343 = arith.addf %342, %15 : vector<1x10xf32>
    %344 = vector.shape_cast %343 : vector<1x10xf32> to vector<1x1x10xf32>
    %cst_138 = arith.constant dense<0xFF800000> : vector<1xf32>
    %345 = vector.multi_reduction <maximumf>, %344, %cst_138 [1, 2] : vector<1x1x10xf32> to vector<1xf32>
    %346 = vector.shape_cast %345 : vector<1xf32> to vector<1x1x1xf32>
    %347 = vector.extract %346[0, 0, 0] : f32 from vector<1x1x1xf32>
    %348 = vector.broadcast %347 : f32 to vector<1x1xf32>
    %349 = vector.broadcast %348 : vector<1x1xf32> to vector<1x10xf32>
    %350 = arith.subf %343, %349 : vector<1x10xf32>
    %351 = math.exp %350 : vector<1x10xf32>
    %352 = vector.shape_cast %351 : vector<1x10xf32> to vector<1x1x10xf32>
    %cst_139 = arith.constant dense<0.000000e+00> : vector<1xf32>
    %353 = vector.multi_reduction <add>, %352, %cst_139 [1, 2] : vector<1x1x10xf32> to vector<1xf32>
    %354 = vector.shape_cast %353 : vector<1xf32> to vector<1x1x1xf32>
    %355 = vector.extract %354[0, 0, 0] : f32 from vector<1x1x1xf32>
    %356 = vector.broadcast %355 : f32 to vector<1x1xf32>
    %357 = vector.broadcast %356 : vector<1x1xf32> to vector<1x10xf32>
    %358 = arith.divf %351, %357 : vector<1x10xf32>
    %c0_140 = arith.constant 0 : index
    %c0_141 = arith.constant 0 : index
    %359 = vector.load %arg12[%c0_140, %c0_141] : memref<2x10xf32, #tpu.memory_space<vmem>>, vector<1x10xf32>
    tpu.vector_store %arg12[%c0_140, %c0_141], %358 {strides = array<i32>} : memref<2x10xf32, #tpu.memory_space<vmem>>, vector<1x10xf32>,
    %c0_142 = arith.constant 0 : index
    %c0_143 = arith.constant 0 : index
    %360 = vector.load %arg14[%c0_142, %c0_143] : memref<6x32xf32, #tpu.memory_space<vmem>>, vector<6x32xf32>
    %c0_144 = arith.constant 0 : index
    %c0_145 = arith.constant 0 : index
    %c0_146 = arith.constant 0 : index
    %361 = vector.load %arg13[%c0_144, %c0_145, %c0_146] : memref<2x6x32xf32, #tpu.memory_space<vmem>>, vector<1x6x32xf32>
    %362 = vector.shape_cast %361 : vector<1x6x32xf32> to vector<6x32xf32>
    %363 = vector.shape_cast %360 : vector<6x32xf32> to vector<1x6x32xf32>
    tpu.vector_store %arg13[%c0_144, %c0_145, %c0_146], %363 {strides = array<i32>} : memref<2x6x32xf32, #tpu.memory_space<vmem>>, vector<1x6x32xf32>,
    %cst_147 = arith.constant -1.000000e+30 : f32
    %364 = vector.broadcast %cst_147 : f32 to vector<6x1xf32>
    %c0_148 = arith.constant 0 : index
    %c0_149 = arith.constant 0 : index
    %365 = vector.load %arg16[%c0_148, %c0_149] : memref<6x1xf32, #tpu.memory_space<vmem>>, vector<6x1xf32>
    tpu.vector_store %arg16[%c0_148, %c0_149], %364 {strides = array<i32>} : memref<6x1xf32, #tpu.memory_space<vmem>>, vector<6x1xf32>,
    %366 = vector.extract_strided_slice %9 {offsets = [6, 0], sizes = [1, 138], strides = [1, 1]} : vector<12x138xf32> to vector<1x138xf32>
    %cst_150 = arith.constant dense<0.000000e+00> : vector<1x128xf32>
    %367 = tpu.matmul %304, %10, %cst_150 {dimension_numbers = #tpu.dot_dimension_numbers<[1], [0], [0], [1], [0, 0, 1, 1], [], []>} : vector<1x32xf32>, vector<32x128xf32>, vector<1x128xf32> -> vector<1x128xf32>
    %368 = vector.extract_strided_slice %366 {offsets = [0, 0], sizes = [1, 128], strides = [1, 1]} : vector<1x138xf32> to vector<1x128xf32>
    %369 = arith.addf %367, %368 : vector<1x128xf32>
    %370 = vector.extract_strided_slice %369 {offsets = [0, 0], sizes = [1, 96], strides = [1, 1]} : vector<1x128xf32> to vector<1x96xf32>
    %371 = arith.negf %370 : vector<1x96xf32>
    %372 = math.exp %371 : vector<1x96xf32>
    %cst_151 = arith.constant 1.000000e+00 : f32
    %373 = vector.broadcast %cst_151 : f32 to vector<1x96xf32>
    %374 = arith.addf %373, %372 : vector<1x96xf32>
    %375 = arith.divf %373, %374 : vector<1x96xf32>
    %376 = vector.extract_strided_slice %375 {offsets = [0, 0], sizes = [1, 32], strides = [1, 1]} : vector<1x96xf32> to vector<1x32xf32>
    %377 = vector.extract_strided_slice %375 {offsets = [0, 32], sizes = [1, 32], strides = [1, 1]} : vector<1x96xf32> to vector<1x32xf32>
    %378 = vector.extract_strided_slice %375 {offsets = [0, 64], sizes = [1, 32], strides = [1, 1]} : vector<1x96xf32> to vector<1x32xf32>
    %379 = vector.extract_strided_slice %369 {offsets = [0, 96], sizes = [1, 32], strides = [1, 1]} : vector<1x128xf32> to vector<1x32xf32>
    %380 = math.tanh %379 : vector<1x32xf32>
    %381 = arith.mulf %376, %309 : vector<1x32xf32>
    %382 = arith.mulf %378, %380 : vector<1x32xf32>
    %383 = arith.addf %381, %382 : vector<1x32xf32>
    %384 = math.tanh %383 : vector<1x32xf32>
    %385 = arith.mulf %377, %384 : vector<1x32xf32>
    %c0_152 = arith.constant 0 : index
    %c0_153 = arith.constant 0 : index
    %386 = vector.load %arg14[%c0_152, %c0_153] : memref<6x32xf32, #tpu.memory_space<vmem>>, vector<1x32xf32>
    tpu.vector_store %arg14[%c0_152, %c0_153], %385 {strides = array<i32>} : memref<6x32xf32, #tpu.memory_space<vmem>>, vector<1x32xf32>,
    %c0_154 = arith.constant 0 : index
    %c0_155 = arith.constant 0 : index
    %387 = vector.load %arg15[%c0_154, %c0_155] : memref<6x32xf32, #tpu.memory_space<vmem>>, vector<1x32xf32>
    tpu.vector_store %arg15[%c0_154, %c0_155], %383 {strides = array<i32>} : memref<6x32xf32, #tpu.memory_space<vmem>>, vector<1x32xf32>,
    %cst_156 = arith.constant dense<0.000000e+00> : vector<1x10xf32>
    %388 = tpu.matmul %385, %11, %cst_156 {dimension_numbers = #tpu.dot_dimension_numbers<[1], [0], [0], [1], [0, 0, 1, 1], [], []>} : vector<1x32xf32>, vector<32x10xf32>, vector<1x10xf32> -> vector<1x10xf32>
    %cst_157 = arith.constant dense<0.000000e+00> : vector<1x10xf32>
    %389 = tpu.matmul %304, %12, %cst_157 {dimension_numbers = #tpu.dot_dimension_numbers<[1], [0], [0], [1], [0, 0, 1, 1], [], []>} : vector<1x32xf32>, vector<32x10xf32>, vector<1x10xf32> -> vector<1x10xf32>
    %390 = arith.addf %388, %389 : vector<1x10xf32>
    %391 = vector.extract_strided_slice %366 {offsets = [0, 128], sizes = [1, 10], strides = [1, 1]} : vector<1x138xf32> to vector<1x10xf32>
    %392 = arith.addf %390, %391 : vector<1x10xf32>
    %393 = math.tanh %392 : vector<1x10xf32>
    %394 = arith.mulf %393, %13 : vector<1x10xf32>
    %cst_158 = arith.constant dense<0.000000e+00> : vector<1xf32>
    %395 = vector.multi_reduction <add>, %394, %cst_158 [1] : vector<1x10xf32> to vector<1xf32>
    %396 = vector.shape_cast %395 : vector<1xf32> to vector<1x1xf32>
    %c0_159 = arith.constant 0 : index
    %c0_160 = arith.constant 0 : index
    %397 = vector.load %arg16[%c0_159, %c0_160] : memref<6x1xf32, #tpu.memory_space<vmem>>, vector<1x1xf32>
    tpu.vector_store %arg16[%c0_159, %c0_160], %396 {strides = array<i32>} : memref<6x1xf32, #tpu.memory_space<vmem>>, vector<1x1xf32>,
    %c0_161 = arith.constant 0 : index
    %c0_162 = arith.constant 0 : index
    %398 = vector.load %arg16[%c0_161, %c0_162] : memref<6x1xf32, #tpu.memory_space<vmem>>, vector<6x1xf32>
    %399 = vector.shape_cast %398 : vector<6x1xf32> to vector<1x6x1xf32>
    %cst_163 = arith.constant dense<0xFF800000> : vector<1xf32>
    %400 = vector.multi_reduction <maximumf>, %399, %cst_163 [1, 2] : vector<1x6x1xf32> to vector<1xf32>
    %401 = vector.shape_cast %400 : vector<1xf32> to vector<1x1x1xf32>
    %402 = vector.extract %401[0, 0, 0] : f32 from vector<1x1x1xf32>
    %403 = vector.broadcast %402 : f32 to vector<1x1xf32>
    %404 = vector.broadcast %403 : vector<1x1xf32> to vector<6x1xf32>
    %405 = arith.subf %398, %404 : vector<6x1xf32>
    %406 = math.exp %405 : vector<6x1xf32>
    %407 = vector.shape_cast %406 : vector<6x1xf32> to vector<1x6x1xf32>
    %cst_164 = arith.constant dense<0.000000e+00> : vector<1xf32>
    %408 = vector.multi_reduction <add>, %407, %cst_164 [1, 2] : vector<1x6x1xf32> to vector<1xf32>
    %409 = vector.shape_cast %408 : vector<1xf32> to vector<1x1x1xf32>
    %410 = vector.extract %409[0, 0, 0] : f32 from vector<1x1x1xf32>
    %411 = vector.broadcast %410 : f32 to vector<1x1xf32>
    %412 = vector.broadcast %411 : vector<1x1xf32> to vector<6x1xf32>
    %413 = arith.divf %406, %412 : vector<6x1xf32>
    %c0_165 = arith.constant 0 : index
    %c0_166 = arith.constant 0 : index
    %414 = vector.load %arg14[%c0_165, %c0_166] : memref<6x32xf32, #tpu.memory_space<vmem>>, vector<6x32xf32>
    %415 = vector.broadcast %413 : vector<6x1xf32> to vector<6x32xf32>
    %416 = arith.mulf %415, %414 : vector<6x32xf32>
    %cst_167 = arith.constant dense<0.000000e+00> : vector<32xf32>
    %417 = vector.multi_reduction <add>, %416, %cst_167 [0] : vector<6x32xf32> to vector<32xf32>
    %418 = vector.shape_cast %417 : vector<32xf32> to vector<1x32xf32>
    %c0_168 = arith.constant 0 : index
    %c0_169 = arith.constant 0 : index
    %419 = vector.load %arg15[%c0_168, %c0_169] : memref<6x32xf32, #tpu.memory_space<vmem>>, vector<6x32xf32>
    %420 = vector.broadcast %413 : vector<6x1xf32> to vector<6x32xf32>
    %421 = arith.mulf %420, %419 : vector<6x32xf32>
    %cst_170 = arith.constant dense<0.000000e+00> : vector<32xf32>
    %422 = vector.multi_reduction <add>, %421, %cst_170 [0] : vector<6x32xf32> to vector<32xf32>
    %423 = vector.shape_cast %422 : vector<32xf32> to vector<1x32xf32>
    %424 = vector.extract_strided_slice %9 {offsets = [7, 0], sizes = [1, 138], strides = [1, 1]} : vector<12x138xf32> to vector<1x138xf32>
    %cst_171 = arith.constant dense<0.000000e+00> : vector<1x128xf32>
    %425 = tpu.matmul %418, %10, %cst_171 {dimension_numbers = #tpu.dot_dimension_numbers<[1], [0], [0], [1], [0, 0, 1, 1], [], []>} : vector<1x32xf32>, vector<32x128xf32>, vector<1x128xf32> -> vector<1x128xf32>
    %426 = vector.extract_strided_slice %424 {offsets = [0, 0], sizes = [1, 128], strides = [1, 1]} : vector<1x138xf32> to vector<1x128xf32>
    %427 = arith.addf %425, %426 : vector<1x128xf32>
    %428 = vector.extract_strided_slice %427 {offsets = [0, 0], sizes = [1, 96], strides = [1, 1]} : vector<1x128xf32> to vector<1x96xf32>
    %429 = arith.negf %428 : vector<1x96xf32>
    %430 = math.exp %429 : vector<1x96xf32>
    %cst_172 = arith.constant 1.000000e+00 : f32
    %431 = vector.broadcast %cst_172 : f32 to vector<1x96xf32>
    %432 = arith.addf %431, %430 : vector<1x96xf32>
    %433 = arith.divf %431, %432 : vector<1x96xf32>
    %434 = vector.extract_strided_slice %433 {offsets = [0, 0], sizes = [1, 32], strides = [1, 1]} : vector<1x96xf32> to vector<1x32xf32>
    %435 = vector.extract_strided_slice %433 {offsets = [0, 32], sizes = [1, 32], strides = [1, 1]} : vector<1x96xf32> to vector<1x32xf32>
    %436 = vector.extract_strided_slice %433 {offsets = [0, 64], sizes = [1, 32], strides = [1, 1]} : vector<1x96xf32> to vector<1x32xf32>
    %437 = vector.extract_strided_slice %427 {offsets = [0, 96], sizes = [1, 32], strides = [1, 1]} : vector<1x128xf32> to vector<1x32xf32>
    %438 = math.tanh %437 : vector<1x32xf32>
    %439 = arith.mulf %434, %423 : vector<1x32xf32>
    %440 = arith.mulf %436, %438 : vector<1x32xf32>
    %441 = arith.addf %439, %440 : vector<1x32xf32>
    %442 = math.tanh %441 : vector<1x32xf32>
    %443 = arith.mulf %435, %442 : vector<1x32xf32>
    %c1_173 = arith.constant 1 : index
    %c0_174 = arith.constant 0 : index
    %444 = vector.load %arg14[%c1_173, %c0_174] : memref<6x32xf32, #tpu.memory_space<vmem>>, vector<1x32xf32>
    tpu.vector_store %arg14[%c1_173, %c0_174], %443 {strides = array<i32>} : memref<6x32xf32, #tpu.memory_space<vmem>>, vector<1x32xf32>,
    %c1_175 = arith.constant 1 : index
    %c0_176 = arith.constant 0 : index
    %445 = vector.load %arg15[%c1_175, %c0_176] : memref<6x32xf32, #tpu.memory_space<vmem>>, vector<1x32xf32>
    tpu.vector_store %arg15[%c1_175, %c0_176], %441 {strides = array<i32>} : memref<6x32xf32, #tpu.memory_space<vmem>>, vector<1x32xf32>,
    %cst_177 = arith.constant dense<0.000000e+00> : vector<1x10xf32>
    %446 = tpu.matmul %443, %11, %cst_177 {dimension_numbers = #tpu.dot_dimension_numbers<[1], [0], [0], [1], [0, 0, 1, 1], [], []>} : vector<1x32xf32>, vector<32x10xf32>, vector<1x10xf32> -> vector<1x10xf32>
    %cst_178 = arith.constant dense<0.000000e+00> : vector<1x10xf32>
    %447 = tpu.matmul %418, %12, %cst_178 {dimension_numbers = #tpu.dot_dimension_numbers<[1], [0], [0], [1], [0, 0, 1, 1], [], []>} : vector<1x32xf32>, vector<32x10xf32>, vector<1x10xf32> -> vector<1x10xf32>
    %448 = arith.addf %446, %447 : vector<1x10xf32>
    %449 = vector.extract_strided_slice %424 {offsets = [0, 128], sizes = [1, 10], strides = [1, 1]} : vector<1x138xf32> to vector<1x10xf32>
    %450 = arith.addf %448, %449 : vector<1x10xf32>
    %451 = math.tanh %450 : vector<1x10xf32>
    %452 = arith.mulf %451, %13 : vector<1x10xf32>
    %cst_179 = arith.constant dense<0.000000e+00> : vector<1xf32>
    %453 = vector.multi_reduction <add>, %452, %cst_179 [1] : vector<1x10xf32> to vector<1xf32>
    %454 = vector.shape_cast %453 : vector<1xf32> to vector<1x1xf32>
    %c1_180 = arith.constant 1 : index
    %c0_181 = arith.constant 0 : index
    %455 = vector.load %arg16[%c1_180, %c0_181] : memref<6x1xf32, #tpu.memory_space<vmem>>, vector<1x1xf32>
    tpu.vector_store %arg16[%c1_180, %c0_181], %454 {strides = array<i32>} : memref<6x1xf32, #tpu.memory_space<vmem>>, vector<1x1xf32>,
    %c0_182 = arith.constant 0 : index
    %c0_183 = arith.constant 0 : index
    %456 = vector.load %arg16[%c0_182, %c0_183] : memref<6x1xf32, #tpu.memory_space<vmem>>, vector<6x1xf32>
    %457 = vector.shape_cast %456 : vector<6x1xf32> to vector<1x6x1xf32>
    %cst_184 = arith.constant dense<0xFF800000> : vector<1xf32>
    %458 = vector.multi_reduction <maximumf>, %457, %cst_184 [1, 2] : vector<1x6x1xf32> to vector<1xf32>
    %459 = vector.shape_cast %458 : vector<1xf32> to vector<1x1x1xf32>
    %460 = vector.extract %459[0, 0, 0] : f32 from vector<1x1x1xf32>
    %461 = vector.broadcast %460 : f32 to vector<1x1xf32>
    %462 = vector.broadcast %461 : vector<1x1xf32> to vector<6x1xf32>
    %463 = arith.subf %456, %462 : vector<6x1xf32>
    %464 = math.exp %463 : vector<6x1xf32>
    %465 = vector.shape_cast %464 : vector<6x1xf32> to vector<1x6x1xf32>
    %cst_185 = arith.constant dense<0.000000e+00> : vector<1xf32>
    %466 = vector.multi_reduction <add>, %465, %cst_185 [1, 2] : vector<1x6x1xf32> to vector<1xf32>
    %467 = vector.shape_cast %466 : vector<1xf32> to vector<1x1x1xf32>
    %468 = vector.extract %467[0, 0, 0] : f32 from vector<1x1x1xf32>
    %469 = vector.broadcast %468 : f32 to vector<1x1xf32>
    %470 = vector.broadcast %469 : vector<1x1xf32> to vector<6x1xf32>
    %471 = arith.divf %464, %470 : vector<6x1xf32>
    %c0_186 = arith.constant 0 : index
    %c0_187 = arith.constant 0 : index
    %472 = vector.load %arg14[%c0_186, %c0_187] : memref<6x32xf32, #tpu.memory_space<vmem>>, vector<6x32xf32>
    %473 = vector.broadcast %471 : vector<6x1xf32> to vector<6x32xf32>
    %474 = arith.mulf %473, %472 : vector<6x32xf32>
    %cst_188 = arith.constant dense<0.000000e+00> : vector<32xf32>
    %475 = vector.multi_reduction <add>, %474, %cst_188 [0] : vector<6x32xf32> to vector<32xf32>
    %476 = vector.shape_cast %475 : vector<32xf32> to vector<1x32xf32>
    %c0_189 = arith.constant 0 : index
    %c0_190 = arith.constant 0 : index
    %477 = vector.load %arg15[%c0_189, %c0_190] : memref<6x32xf32, #tpu.memory_space<vmem>>, vector<6x32xf32>
    %478 = vector.broadcast %471 : vector<6x1xf32> to vector<6x32xf32>
    %479 = arith.mulf %478, %477 : vector<6x32xf32>
    %cst_191 = arith.constant dense<0.000000e+00> : vector<32xf32>
    %480 = vector.multi_reduction <add>, %479, %cst_191 [0] : vector<6x32xf32> to vector<32xf32>
    %481 = vector.shape_cast %480 : vector<32xf32> to vector<1x32xf32>
    %482 = vector.extract_strided_slice %9 {offsets = [8, 0], sizes = [1, 138], strides = [1, 1]} : vector<12x138xf32> to vector<1x138xf32>
    %cst_192 = arith.constant dense<0.000000e+00> : vector<1x128xf32>
    %483 = tpu.matmul %476, %10, %cst_192 {dimension_numbers = #tpu.dot_dimension_numbers<[1], [0], [0], [1], [0, 0, 1, 1], [], []>} : vector<1x32xf32>, vector<32x128xf32>, vector<1x128xf32> -> vector<1x128xf32>
    %484 = vector.extract_strided_slice %482 {offsets = [0, 0], sizes = [1, 128], strides = [1, 1]} : vector<1x138xf32> to vector<1x128xf32>
    %485 = arith.addf %483, %484 : vector<1x128xf32>
    %486 = vector.extract_strided_slice %485 {offsets = [0, 0], sizes = [1, 96], strides = [1, 1]} : vector<1x128xf32> to vector<1x96xf32>
    %487 = arith.negf %486 : vector<1x96xf32>
    %488 = math.exp %487 : vector<1x96xf32>
    %cst_193 = arith.constant 1.000000e+00 : f32
    %489 = vector.broadcast %cst_193 : f32 to vector<1x96xf32>
    %490 = arith.addf %489, %488 : vector<1x96xf32>
    %491 = arith.divf %489, %490 : vector<1x96xf32>
    %492 = vector.extract_strided_slice %491 {offsets = [0, 0], sizes = [1, 32], strides = [1, 1]} : vector<1x96xf32> to vector<1x32xf32>
    %493 = vector.extract_strided_slice %491 {offsets = [0, 32], sizes = [1, 32], strides = [1, 1]} : vector<1x96xf32> to vector<1x32xf32>
    %494 = vector.extract_strided_slice %491 {offsets = [0, 64], sizes = [1, 32], strides = [1, 1]} : vector<1x96xf32> to vector<1x32xf32>
    %495 = vector.extract_strided_slice %485 {offsets = [0, 96], sizes = [1, 32], strides = [1, 1]} : vector<1x128xf32> to vector<1x32xf32>
    %496 = math.tanh %495 : vector<1x32xf32>
    %497 = arith.mulf %492, %481 : vector<1x32xf32>
    %498 = arith.mulf %494, %496 : vector<1x32xf32>
    %499 = arith.addf %497, %498 : vector<1x32xf32>
    %500 = math.tanh %499 : vector<1x32xf32>
    %501 = arith.mulf %493, %500 : vector<1x32xf32>
    %c2_194 = arith.constant 2 : index
    %c0_195 = arith.constant 0 : index
    %502 = vector.load %arg14[%c2_194, %c0_195] : memref<6x32xf32, #tpu.memory_space<vmem>>, vector<1x32xf32>
    tpu.vector_store %arg14[%c2_194, %c0_195], %501 {strides = array<i32>} : memref<6x32xf32, #tpu.memory_space<vmem>>, vector<1x32xf32>,
    %c2_196 = arith.constant 2 : index
    %c0_197 = arith.constant 0 : index
    %503 = vector.load %arg15[%c2_196, %c0_197] : memref<6x32xf32, #tpu.memory_space<vmem>>, vector<1x32xf32>
    tpu.vector_store %arg15[%c2_196, %c0_197], %499 {strides = array<i32>} : memref<6x32xf32, #tpu.memory_space<vmem>>, vector<1x32xf32>,
    %cst_198 = arith.constant dense<0.000000e+00> : vector<1x10xf32>
    %504 = tpu.matmul %501, %11, %cst_198 {dimension_numbers = #tpu.dot_dimension_numbers<[1], [0], [0], [1], [0, 0, 1, 1], [], []>} : vector<1x32xf32>, vector<32x10xf32>, vector<1x10xf32> -> vector<1x10xf32>
    %cst_199 = arith.constant dense<0.000000e+00> : vector<1x10xf32>
    %505 = tpu.matmul %476, %12, %cst_199 {dimension_numbers = #tpu.dot_dimension_numbers<[1], [0], [0], [1], [0, 0, 1, 1], [], []>} : vector<1x32xf32>, vector<32x10xf32>, vector<1x10xf32> -> vector<1x10xf32>
    %506 = arith.addf %504, %505 : vector<1x10xf32>
    %507 = vector.extract_strided_slice %482 {offsets = [0, 128], sizes = [1, 10], strides = [1, 1]} : vector<1x138xf32> to vector<1x10xf32>
    %508 = arith.addf %506, %507 : vector<1x10xf32>
    %509 = math.tanh %508 : vector<1x10xf32>
    %510 = arith.mulf %509, %13 : vector<1x10xf32>
    %cst_200 = arith.constant dense<0.000000e+00> : vector<1xf32>
    %511 = vector.multi_reduction <add>, %510, %cst_200 [1] : vector<1x10xf32> to vector<1xf32>
    %512 = vector.shape_cast %511 : vector<1xf32> to vector<1x1xf32>
    %c2_201 = arith.constant 2 : index
    %c0_202 = arith.constant 0 : index
    %513 = vector.load %arg16[%c2_201, %c0_202] : memref<6x1xf32, #tpu.memory_space<vmem>>, vector<1x1xf32>
    tpu.vector_store %arg16[%c2_201, %c0_202], %512 {strides = array<i32>} : memref<6x1xf32, #tpu.memory_space<vmem>>, vector<1x1xf32>,
    %c0_203 = arith.constant 0 : index
    %c0_204 = arith.constant 0 : index
    %514 = vector.load %arg16[%c0_203, %c0_204] : memref<6x1xf32, #tpu.memory_space<vmem>>, vector<6x1xf32>
    %515 = vector.shape_cast %514 : vector<6x1xf32> to vector<1x6x1xf32>
    %cst_205 = arith.constant dense<0xFF800000> : vector<1xf32>
    %516 = vector.multi_reduction <maximumf>, %515, %cst_205 [1, 2] : vector<1x6x1xf32> to vector<1xf32>
    %517 = vector.shape_cast %516 : vector<1xf32> to vector<1x1x1xf32>
    %518 = vector.extract %517[0, 0, 0] : f32 from vector<1x1x1xf32>
    %519 = vector.broadcast %518 : f32 to vector<1x1xf32>
    %520 = vector.broadcast %519 : vector<1x1xf32> to vector<6x1xf32>
    %521 = arith.subf %514, %520 : vector<6x1xf32>
    %522 = math.exp %521 : vector<6x1xf32>
    %523 = vector.shape_cast %522 : vector<6x1xf32> to vector<1x6x1xf32>
    %cst_206 = arith.constant dense<0.000000e+00> : vector<1xf32>
    %524 = vector.multi_reduction <add>, %523, %cst_206 [1, 2] : vector<1x6x1xf32> to vector<1xf32>
    %525 = vector.shape_cast %524 : vector<1xf32> to vector<1x1x1xf32>
    %526 = vector.extract %525[0, 0, 0] : f32 from vector<1x1x1xf32>
    %527 = vector.broadcast %526 : f32 to vector<1x1xf32>
    %528 = vector.broadcast %527 : vector<1x1xf32> to vector<6x1xf32>
    %529 = arith.divf %522, %528 : vector<6x1xf32>
    %c0_207 = arith.constant 0 : index
    %c0_208 = arith.constant 0 : index
    %530 = vector.load %arg14[%c0_207, %c0_208] : memref<6x32xf32, #tpu.memory_space<vmem>>, vector<6x32xf32>
    %531 = vector.broadcast %529 : vector<6x1xf32> to vector<6x32xf32>
    %532 = arith.mulf %531, %530 : vector<6x32xf32>
    %cst_209 = arith.constant dense<0.000000e+00> : vector<32xf32>
    %533 = vector.multi_reduction <add>, %532, %cst_209 [0] : vector<6x32xf32> to vector<32xf32>
    %534 = vector.shape_cast %533 : vector<32xf32> to vector<1x32xf32>
    %c0_210 = arith.constant 0 : index
    %c0_211 = arith.constant 0 : index
    %535 = vector.load %arg15[%c0_210, %c0_211] : memref<6x32xf32, #tpu.memory_space<vmem>>, vector<6x32xf32>
    %536 = vector.broadcast %529 : vector<6x1xf32> to vector<6x32xf32>
    %537 = arith.mulf %536, %535 : vector<6x32xf32>
    %cst_212 = arith.constant dense<0.000000e+00> : vector<32xf32>
    %538 = vector.multi_reduction <add>, %537, %cst_212 [0] : vector<6x32xf32> to vector<32xf32>
    %539 = vector.shape_cast %538 : vector<32xf32> to vector<1x32xf32>
    %540 = vector.extract_strided_slice %9 {offsets = [9, 0], sizes = [1, 138], strides = [1, 1]} : vector<12x138xf32> to vector<1x138xf32>
    %cst_213 = arith.constant dense<0.000000e+00> : vector<1x128xf32>
    %541 = tpu.matmul %534, %10, %cst_213 {dimension_numbers = #tpu.dot_dimension_numbers<[1], [0], [0], [1], [0, 0, 1, 1], [], []>} : vector<1x32xf32>, vector<32x128xf32>, vector<1x128xf32> -> vector<1x128xf32>
    %542 = vector.extract_strided_slice %540 {offsets = [0, 0], sizes = [1, 128], strides = [1, 1]} : vector<1x138xf32> to vector<1x128xf32>
    %543 = arith.addf %541, %542 : vector<1x128xf32>
    %544 = vector.extract_strided_slice %543 {offsets = [0, 0], sizes = [1, 96], strides = [1, 1]} : vector<1x128xf32> to vector<1x96xf32>
    %545 = arith.negf %544 : vector<1x96xf32>
    %546 = math.exp %545 : vector<1x96xf32>
    %cst_214 = arith.constant 1.000000e+00 : f32
    %547 = vector.broadcast %cst_214 : f32 to vector<1x96xf32>
    %548 = arith.addf %547, %546 : vector<1x96xf32>
    %549 = arith.divf %547, %548 : vector<1x96xf32>
    %550 = vector.extract_strided_slice %549 {offsets = [0, 0], sizes = [1, 32], strides = [1, 1]} : vector<1x96xf32> to vector<1x32xf32>
    %551 = vector.extract_strided_slice %549 {offsets = [0, 32], sizes = [1, 32], strides = [1, 1]} : vector<1x96xf32> to vector<1x32xf32>
    %552 = vector.extract_strided_slice %549 {offsets = [0, 64], sizes = [1, 32], strides = [1, 1]} : vector<1x96xf32> to vector<1x32xf32>
    %553 = vector.extract_strided_slice %543 {offsets = [0, 96], sizes = [1, 32], strides = [1, 1]} : vector<1x128xf32> to vector<1x32xf32>
    %554 = math.tanh %553 : vector<1x32xf32>
    %555 = arith.mulf %550, %539 : vector<1x32xf32>
    %556 = arith.mulf %552, %554 : vector<1x32xf32>
    %557 = arith.addf %555, %556 : vector<1x32xf32>
    %558 = math.tanh %557 : vector<1x32xf32>
    %559 = arith.mulf %551, %558 : vector<1x32xf32>
    %c3_215 = arith.constant 3 : index
    %c0_216 = arith.constant 0 : index
    %560 = vector.load %arg14[%c3_215, %c0_216] : memref<6x32xf32, #tpu.memory_space<vmem>>, vector<1x32xf32>
    tpu.vector_store %arg14[%c3_215, %c0_216], %559 {strides = array<i32>} : memref<6x32xf32, #tpu.memory_space<vmem>>, vector<1x32xf32>,
    %c3_217 = arith.constant 3 : index
    %c0_218 = arith.constant 0 : index
    %561 = vector.load %arg15[%c3_217, %c0_218] : memref<6x32xf32, #tpu.memory_space<vmem>>, vector<1x32xf32>
    tpu.vector_store %arg15[%c3_217, %c0_218], %557 {strides = array<i32>} : memref<6x32xf32, #tpu.memory_space<vmem>>, vector<1x32xf32>,
    %cst_219 = arith.constant dense<0.000000e+00> : vector<1x10xf32>
    %562 = tpu.matmul %559, %11, %cst_219 {dimension_numbers = #tpu.dot_dimension_numbers<[1], [0], [0], [1], [0, 0, 1, 1], [], []>} : vector<1x32xf32>, vector<32x10xf32>, vector<1x10xf32> -> vector<1x10xf32>
    %cst_220 = arith.constant dense<0.000000e+00> : vector<1x10xf32>
    %563 = tpu.matmul %534, %12, %cst_220 {dimension_numbers = #tpu.dot_dimension_numbers<[1], [0], [0], [1], [0, 0, 1, 1], [], []>} : vector<1x32xf32>, vector<32x10xf32>, vector<1x10xf32> -> vector<1x10xf32>
    %564 = arith.addf %562, %563 : vector<1x10xf32>
    %565 = vector.extract_strided_slice %540 {offsets = [0, 128], sizes = [1, 10], strides = [1, 1]} : vector<1x138xf32> to vector<1x10xf32>
    %566 = arith.addf %564, %565 : vector<1x10xf32>
    %567 = math.tanh %566 : vector<1x10xf32>
    %568 = arith.mulf %567, %13 : vector<1x10xf32>
    %cst_221 = arith.constant dense<0.000000e+00> : vector<1xf32>
    %569 = vector.multi_reduction <add>, %568, %cst_221 [1] : vector<1x10xf32> to vector<1xf32>
    %570 = vector.shape_cast %569 : vector<1xf32> to vector<1x1xf32>
    %c3_222 = arith.constant 3 : index
    %c0_223 = arith.constant 0 : index
    %571 = vector.load %arg16[%c3_222, %c0_223] : memref<6x1xf32, #tpu.memory_space<vmem>>, vector<1x1xf32>
    tpu.vector_store %arg16[%c3_222, %c0_223], %570 {strides = array<i32>} : memref<6x1xf32, #tpu.memory_space<vmem>>, vector<1x1xf32>,
    %c0_224 = arith.constant 0 : index
    %c0_225 = arith.constant 0 : index
    %572 = vector.load %arg16[%c0_224, %c0_225] : memref<6x1xf32, #tpu.memory_space<vmem>>, vector<6x1xf32>
    %573 = vector.shape_cast %572 : vector<6x1xf32> to vector<1x6x1xf32>
    %cst_226 = arith.constant dense<0xFF800000> : vector<1xf32>
    %574 = vector.multi_reduction <maximumf>, %573, %cst_226 [1, 2] : vector<1x6x1xf32> to vector<1xf32>
    %575 = vector.shape_cast %574 : vector<1xf32> to vector<1x1x1xf32>
    %576 = vector.extract %575[0, 0, 0] : f32 from vector<1x1x1xf32>
    %577 = vector.broadcast %576 : f32 to vector<1x1xf32>
    %578 = vector.broadcast %577 : vector<1x1xf32> to vector<6x1xf32>
    %579 = arith.subf %572, %578 : vector<6x1xf32>
    %580 = math.exp %579 : vector<6x1xf32>
    %581 = vector.shape_cast %580 : vector<6x1xf32> to vector<1x6x1xf32>
    %cst_227 = arith.constant dense<0.000000e+00> : vector<1xf32>
    %582 = vector.multi_reduction <add>, %581, %cst_227 [1, 2] : vector<1x6x1xf32> to vector<1xf32>
    %583 = vector.shape_cast %582 : vector<1xf32> to vector<1x1x1xf32>
    %584 = vector.extract %583[0, 0, 0] : f32 from vector<1x1x1xf32>
    %585 = vector.broadcast %584 : f32 to vector<1x1xf32>
    %586 = vector.broadcast %585 : vector<1x1xf32> to vector<6x1xf32>
    %587 = arith.divf %580, %586 : vector<6x1xf32>
    %c0_228 = arith.constant 0 : index
    %c0_229 = arith.constant 0 : index
    %588 = vector.load %arg14[%c0_228, %c0_229] : memref<6x32xf32, #tpu.memory_space<vmem>>, vector<6x32xf32>
    %589 = vector.broadcast %587 : vector<6x1xf32> to vector<6x32xf32>
    %590 = arith.mulf %589, %588 : vector<6x32xf32>
    %cst_230 = arith.constant dense<0.000000e+00> : vector<32xf32>
    %591 = vector.multi_reduction <add>, %590, %cst_230 [0] : vector<6x32xf32> to vector<32xf32>
    %592 = vector.shape_cast %591 : vector<32xf32> to vector<1x32xf32>
    %c0_231 = arith.constant 0 : index
    %c0_232 = arith.constant 0 : index
    %593 = vector.load %arg15[%c0_231, %c0_232] : memref<6x32xf32, #tpu.memory_space<vmem>>, vector<6x32xf32>
    %594 = vector.broadcast %587 : vector<6x1xf32> to vector<6x32xf32>
    %595 = arith.mulf %594, %593 : vector<6x32xf32>
    %cst_233 = arith.constant dense<0.000000e+00> : vector<32xf32>
    %596 = vector.multi_reduction <add>, %595, %cst_233 [0] : vector<6x32xf32> to vector<32xf32>
    %597 = vector.shape_cast %596 : vector<32xf32> to vector<1x32xf32>
    %598 = vector.extract_strided_slice %9 {offsets = [10, 0], sizes = [1, 138], strides = [1, 1]} : vector<12x138xf32> to vector<1x138xf32>
    %cst_234 = arith.constant dense<0.000000e+00> : vector<1x128xf32>
    %599 = tpu.matmul %592, %10, %cst_234 {dimension_numbers = #tpu.dot_dimension_numbers<[1], [0], [0], [1], [0, 0, 1, 1], [], []>} : vector<1x32xf32>, vector<32x128xf32>, vector<1x128xf32> -> vector<1x128xf32>
    %600 = vector.extract_strided_slice %598 {offsets = [0, 0], sizes = [1, 128], strides = [1, 1]} : vector<1x138xf32> to vector<1x128xf32>
    %601 = arith.addf %599, %600 : vector<1x128xf32>
    %602 = vector.extract_strided_slice %601 {offsets = [0, 0], sizes = [1, 96], strides = [1, 1]} : vector<1x128xf32> to vector<1x96xf32>
    %603 = arith.negf %602 : vector<1x96xf32>
    %604 = math.exp %603 : vector<1x96xf32>
    %cst_235 = arith.constant 1.000000e+00 : f32
    %605 = vector.broadcast %cst_235 : f32 to vector<1x96xf32>
    %606 = arith.addf %605, %604 : vector<1x96xf32>
    %607 = arith.divf %605, %606 : vector<1x96xf32>
    %608 = vector.extract_strided_slice %607 {offsets = [0, 0], sizes = [1, 32], strides = [1, 1]} : vector<1x96xf32> to vector<1x32xf32>
    %609 = vector.extract_strided_slice %607 {offsets = [0, 32], sizes = [1, 32], strides = [1, 1]} : vector<1x96xf32> to vector<1x32xf32>
    %610 = vector.extract_strided_slice %607 {offsets = [0, 64], sizes = [1, 32], strides = [1, 1]} : vector<1x96xf32> to vector<1x32xf32>
    %611 = vector.extract_strided_slice %601 {offsets = [0, 96], sizes = [1, 32], strides = [1, 1]} : vector<1x128xf32> to vector<1x32xf32>
    %612 = math.tanh %611 : vector<1x32xf32>
    %613 = arith.mulf %608, %597 : vector<1x32xf32>
    %614 = arith.mulf %610, %612 : vector<1x32xf32>
    %615 = arith.addf %613, %614 : vector<1x32xf32>
    %616 = math.tanh %615 : vector<1x32xf32>
    %617 = arith.mulf %609, %616 : vector<1x32xf32>
    %c4_236 = arith.constant 4 : index
    %c0_237 = arith.constant 0 : index
    %618 = vector.load %arg14[%c4_236, %c0_237] : memref<6x32xf32, #tpu.memory_space<vmem>>, vector<1x32xf32>
    tpu.vector_store %arg14[%c4_236, %c0_237], %617 {strides = array<i32>} : memref<6x32xf32, #tpu.memory_space<vmem>>, vector<1x32xf32>,
    %c4_238 = arith.constant 4 : index
    %c0_239 = arith.constant 0 : index
    %619 = vector.load %arg15[%c4_238, %c0_239] : memref<6x32xf32, #tpu.memory_space<vmem>>, vector<1x32xf32>
    tpu.vector_store %arg15[%c4_238, %c0_239], %615 {strides = array<i32>} : memref<6x32xf32, #tpu.memory_space<vmem>>, vector<1x32xf32>,
    %cst_240 = arith.constant dense<0.000000e+00> : vector<1x10xf32>
    %620 = tpu.matmul %617, %11, %cst_240 {dimension_numbers = #tpu.dot_dimension_numbers<[1], [0], [0], [1], [0, 0, 1, 1], [], []>} : vector<1x32xf32>, vector<32x10xf32>, vector<1x10xf32> -> vector<1x10xf32>
    %cst_241 = arith.constant dense<0.000000e+00> : vector<1x10xf32>
    %621 = tpu.matmul %592, %12, %cst_241 {dimension_numbers = #tpu.dot_dimension_numbers<[1], [0], [0], [1], [0, 0, 1, 1], [], []>} : vector<1x32xf32>, vector<32x10xf32>, vector<1x10xf32> -> vector<1x10xf32>
    %622 = arith.addf %620, %621 : vector<1x10xf32>
    %623 = vector.extract_strided_slice %598 {offsets = [0, 128], sizes = [1, 10], strides = [1, 1]} : vector<1x138xf32> to vector<1x10xf32>
    %624 = arith.addf %622, %623 : vector<1x10xf32>
    %625 = math.tanh %624 : vector<1x10xf32>
    %626 = arith.mulf %625, %13 : vector<1x10xf32>
    %cst_242 = arith.constant dense<0.000000e+00> : vector<1xf32>
    %627 = vector.multi_reduction <add>, %626, %cst_242 [1] : vector<1x10xf32> to vector<1xf32>
    %628 = vector.shape_cast %627 : vector<1xf32> to vector<1x1xf32>
    %c4_243 = arith.constant 4 : index
    %c0_244 = arith.constant 0 : index
    %629 = vector.load %arg16[%c4_243, %c0_244] : memref<6x1xf32, #tpu.memory_space<vmem>>, vector<1x1xf32>
    tpu.vector_store %arg16[%c4_243, %c0_244], %628 {strides = array<i32>} : memref<6x1xf32, #tpu.memory_space<vmem>>, vector<1x1xf32>,
    %c0_245 = arith.constant 0 : index
    %c0_246 = arith.constant 0 : index
    %630 = vector.load %arg16[%c0_245, %c0_246] : memref<6x1xf32, #tpu.memory_space<vmem>>, vector<6x1xf32>
    %631 = vector.shape_cast %630 : vector<6x1xf32> to vector<1x6x1xf32>
    %cst_247 = arith.constant dense<0xFF800000> : vector<1xf32>
    %632 = vector.multi_reduction <maximumf>, %631, %cst_247 [1, 2] : vector<1x6x1xf32> to vector<1xf32>
    %633 = vector.shape_cast %632 : vector<1xf32> to vector<1x1x1xf32>
    %634 = vector.extract %633[0, 0, 0] : f32 from vector<1x1x1xf32>
    %635 = vector.broadcast %634 : f32 to vector<1x1xf32>
    %636 = vector.broadcast %635 : vector<1x1xf32> to vector<6x1xf32>
    %637 = arith.subf %630, %636 : vector<6x1xf32>
    %638 = math.exp %637 : vector<6x1xf32>
    %639 = vector.shape_cast %638 : vector<6x1xf32> to vector<1x6x1xf32>
    %cst_248 = arith.constant dense<0.000000e+00> : vector<1xf32>
    %640 = vector.multi_reduction <add>, %639, %cst_248 [1, 2] : vector<1x6x1xf32> to vector<1xf32>
    %641 = vector.shape_cast %640 : vector<1xf32> to vector<1x1x1xf32>
    %642 = vector.extract %641[0, 0, 0] : f32 from vector<1x1x1xf32>
    %643 = vector.broadcast %642 : f32 to vector<1x1xf32>
    %644 = vector.broadcast %643 : vector<1x1xf32> to vector<6x1xf32>
    %645 = arith.divf %638, %644 : vector<6x1xf32>
    %c0_249 = arith.constant 0 : index
    %c0_250 = arith.constant 0 : index
    %646 = vector.load %arg14[%c0_249, %c0_250] : memref<6x32xf32, #tpu.memory_space<vmem>>, vector<6x32xf32>
    %647 = vector.broadcast %645 : vector<6x1xf32> to vector<6x32xf32>
    %648 = arith.mulf %647, %646 : vector<6x32xf32>
    %cst_251 = arith.constant dense<0.000000e+00> : vector<32xf32>
    %649 = vector.multi_reduction <add>, %648, %cst_251 [0] : vector<6x32xf32> to vector<32xf32>
    %650 = vector.shape_cast %649 : vector<32xf32> to vector<1x32xf32>
    %c0_252 = arith.constant 0 : index
    %c0_253 = arith.constant 0 : index
    %651 = vector.load %arg15[%c0_252, %c0_253] : memref<6x32xf32, #tpu.memory_space<vmem>>, vector<6x32xf32>
    %652 = vector.broadcast %645 : vector<6x1xf32> to vector<6x32xf32>
    %653 = arith.mulf %652, %651 : vector<6x32xf32>
    %cst_254 = arith.constant dense<0.000000e+00> : vector<32xf32>
    %654 = vector.multi_reduction <add>, %653, %cst_254 [0] : vector<6x32xf32> to vector<32xf32>
    %655 = vector.shape_cast %654 : vector<32xf32> to vector<1x32xf32>
    %656 = vector.extract_strided_slice %9 {offsets = [11, 0], sizes = [1, 138], strides = [1, 1]} : vector<12x138xf32> to vector<1x138xf32>
    %cst_255 = arith.constant dense<0.000000e+00> : vector<1x128xf32>
    %657 = tpu.matmul %650, %10, %cst_255 {dimension_numbers = #tpu.dot_dimension_numbers<[1], [0], [0], [1], [0, 0, 1, 1], [], []>} : vector<1x32xf32>, vector<32x128xf32>, vector<1x128xf32> -> vector<1x128xf32>
    %658 = vector.extract_strided_slice %656 {offsets = [0, 0], sizes = [1, 128], strides = [1, 1]} : vector<1x138xf32> to vector<1x128xf32>
    %659 = arith.addf %657, %658 : vector<1x128xf32>
    %660 = vector.extract_strided_slice %659 {offsets = [0, 0], sizes = [1, 96], strides = [1, 1]} : vector<1x128xf32> to vector<1x96xf32>
    %661 = arith.negf %660 : vector<1x96xf32>
    %662 = math.exp %661 : vector<1x96xf32>
    %cst_256 = arith.constant 1.000000e+00 : f32
    %663 = vector.broadcast %cst_256 : f32 to vector<1x96xf32>
    %664 = arith.addf %663, %662 : vector<1x96xf32>
    %665 = arith.divf %663, %664 : vector<1x96xf32>
    %666 = vector.extract_strided_slice %665 {offsets = [0, 0], sizes = [1, 32], strides = [1, 1]} : vector<1x96xf32> to vector<1x32xf32>
    %667 = vector.extract_strided_slice %665 {offsets = [0, 32], sizes = [1, 32], strides = [1, 1]} : vector<1x96xf32> to vector<1x32xf32>
    %668 = vector.extract_strided_slice %665 {offsets = [0, 64], sizes = [1, 32], strides = [1, 1]} : vector<1x96xf32> to vector<1x32xf32>
    %669 = vector.extract_strided_slice %659 {offsets = [0, 96], sizes = [1, 32], strides = [1, 1]} : vector<1x128xf32> to vector<1x32xf32>
    %670 = math.tanh %669 : vector<1x32xf32>
    %671 = arith.mulf %666, %655 : vector<1x32xf32>
    %672 = arith.mulf %668, %670 : vector<1x32xf32>
    %673 = arith.addf %671, %672 : vector<1x32xf32>
    %674 = math.tanh %673 : vector<1x32xf32>
    %675 = arith.mulf %667, %674 : vector<1x32xf32>
    %c5_257 = arith.constant 5 : index
    %c0_258 = arith.constant 0 : index
    %676 = vector.load %arg14[%c5_257, %c0_258] : memref<6x32xf32, #tpu.memory_space<vmem>>, vector<1x32xf32>
    tpu.vector_store %arg14[%c5_257, %c0_258], %675 {strides = array<i32>} : memref<6x32xf32, #tpu.memory_space<vmem>>, vector<1x32xf32>,
    %c5_259 = arith.constant 5 : index
    %c0_260 = arith.constant 0 : index
    %677 = vector.load %arg15[%c5_259, %c0_260] : memref<6x32xf32, #tpu.memory_space<vmem>>, vector<1x32xf32>
    tpu.vector_store %arg15[%c5_259, %c0_260], %673 {strides = array<i32>} : memref<6x32xf32, #tpu.memory_space<vmem>>, vector<1x32xf32>,
    %cst_261 = arith.constant dense<0.000000e+00> : vector<1x10xf32>
    %678 = tpu.matmul %675, %11, %cst_261 {dimension_numbers = #tpu.dot_dimension_numbers<[1], [0], [0], [1], [0, 0, 1, 1], [], []>} : vector<1x32xf32>, vector<32x10xf32>, vector<1x10xf32> -> vector<1x10xf32>
    %cst_262 = arith.constant dense<0.000000e+00> : vector<1x10xf32>
    %679 = tpu.matmul %650, %12, %cst_262 {dimension_numbers = #tpu.dot_dimension_numbers<[1], [0], [0], [1], [0, 0, 1, 1], [], []>} : vector<1x32xf32>, vector<32x10xf32>, vector<1x10xf32> -> vector<1x10xf32>
    %680 = arith.addf %678, %679 : vector<1x10xf32>
    %681 = vector.extract_strided_slice %656 {offsets = [0, 128], sizes = [1, 10], strides = [1, 1]} : vector<1x138xf32> to vector<1x10xf32>
    %682 = arith.addf %680, %681 : vector<1x10xf32>
    %683 = math.tanh %682 : vector<1x10xf32>
    %684 = arith.mulf %683, %13 : vector<1x10xf32>
    %cst_263 = arith.constant dense<0.000000e+00> : vector<1xf32>
    %685 = vector.multi_reduction <add>, %684, %cst_263 [1] : vector<1x10xf32> to vector<1xf32>
    %686 = vector.shape_cast %685 : vector<1xf32> to vector<1x1xf32>
    %c5_264 = arith.constant 5 : index
    %c0_265 = arith.constant 0 : index
    %687 = vector.load %arg16[%c5_264, %c0_265] : memref<6x1xf32, #tpu.memory_space<vmem>>, vector<1x1xf32>
    tpu.vector_store %arg16[%c5_264, %c0_265], %686 {strides = array<i32>} : memref<6x1xf32, #tpu.memory_space<vmem>>, vector<1x1xf32>,
    %cst_266 = arith.constant dense<0.000000e+00> : vector<1x10xf32>
    %688 = tpu.matmul %675, %14, %cst_266 {dimension_numbers = #tpu.dot_dimension_numbers<[1], [0], [0], [1], [0, 0, 1, 1], [], []>} : vector<1x32xf32>, vector<32x10xf32>, vector<1x10xf32> -> vector<1x10xf32>
    %689 = arith.addf %688, %15 : vector<1x10xf32>
    %690 = vector.shape_cast %689 : vector<1x10xf32> to vector<1x1x10xf32>
    %cst_267 = arith.constant dense<0xFF800000> : vector<1xf32>
    %691 = vector.multi_reduction <maximumf>, %690, %cst_267 [1, 2] : vector<1x1x10xf32> to vector<1xf32>
    %692 = vector.shape_cast %691 : vector<1xf32> to vector<1x1x1xf32>
    %693 = vector.extract %692[0, 0, 0] : f32 from vector<1x1x1xf32>
    %694 = vector.broadcast %693 : f32 to vector<1x1xf32>
    %695 = vector.broadcast %694 : vector<1x1xf32> to vector<1x10xf32>
    %696 = arith.subf %689, %695 : vector<1x10xf32>
    %697 = math.exp %696 : vector<1x10xf32>
    %698 = vector.shape_cast %697 : vector<1x10xf32> to vector<1x1x10xf32>
    %cst_268 = arith.constant dense<0.000000e+00> : vector<1xf32>
    %699 = vector.multi_reduction <add>, %698, %cst_268 [1, 2] : vector<1x1x10xf32> to vector<1xf32>
    %700 = vector.shape_cast %699 : vector<1xf32> to vector<1x1x1xf32>
    %701 = vector.extract %700[0, 0, 0] : f32 from vector<1x1x1xf32>
    %702 = vector.broadcast %701 : f32 to vector<1x1xf32>
    %703 = vector.broadcast %702 : vector<1x1xf32> to vector<1x10xf32>
    %704 = arith.divf %697, %703 : vector<1x10xf32>
    %c1_269 = arith.constant 1 : index
    %c0_270 = arith.constant 0 : index
    %705 = vector.load %arg12[%c1_269, %c0_270] : memref<2x10xf32, #tpu.memory_space<vmem>>, vector<1x10xf32>
    tpu.vector_store %arg12[%c1_269, %c0_270], %704 {strides = array<i32>} : memref<2x10xf32, #tpu.memory_space<vmem>>, vector<1x10xf32>,
    %c0_271 = arith.constant 0 : index
    %c0_272 = arith.constant 0 : index
    %706 = vector.load %arg14[%c0_271, %c0_272] : memref<6x32xf32, #tpu.memory_space<vmem>>, vector<6x32xf32>
    %c1_273 = arith.constant 1 : index
    %c0_274 = arith.constant 0 : index
    %c0_275 = arith.constant 0 : index
    %707 = vector.load %arg13[%c1_273, %c0_274, %c0_275] : memref<2x6x32xf32, #tpu.memory_space<vmem>>, vector<1x6x32xf32>
    %708 = vector.shape_cast %707 : vector<1x6x32xf32> to vector<6x32xf32>
    %709 = vector.shape_cast %706 : vector<6x32xf32> to vector<1x6x32xf32>
    tpu.vector_store %arg13[%c1_273, %c0_274, %c0_275], %709 {strides = array<i32>} : memref<2x6x32xf32, #tpu.memory_space<vmem>>, vector<1x6x32xf32>,
    %c0_276 = arith.constant 0 : index
    %c0_277 = arith.constant 0 : index
    %710 = vector.load %arg17[%c0_276, %c0_277] : memref<1x32xf32, #tpu.memory_space<vmem>>, vector<1x32xf32>
    tpu.vector_store %arg17[%c0_276, %c0_277], %650 {strides = array<i32>} : memref<1x32xf32, #tpu.memory_space<vmem>>, vector<1x32xf32>,
    %c0_278 = arith.constant 0 : index
    %c0_279 = arith.constant 0 : index
    %711 = vector.load %arg18[%c0_278, %c0_279] : memref<1x32xf32, #tpu.memory_space<vmem>>, vector<1x32xf32>
    tpu.vector_store %arg18[%c0_278, %c0_279], %655 {strides = array<i32>} : memref<1x32xf32, #tpu.memory_space<vmem>>, vector<1x32xf32>,
    return
  }
  func.func @transform_0(%arg0: i32) -> (i32, i32, i32) {
    %c0_i32 = arith.constant 0 : i32
    %c0_i32_0 = arith.constant 0 : i32
    %c0_i32_1 = arith.constant 0 : i32
    return %arg0, %c0_i32, %c0_i32_0 : i32, i32, i32
  }
  func.func @transform_1(%arg0: i32) -> (i32, i32) {
    %c0_i32 = arith.constant 0 : i32
    %c0_i32_0 = arith.constant 0 : i32
    %c0_i32_1 = arith.constant 0 : i32
    return %c0_i32, %c0_i32_0 : i32, i32
  }
  func.func @transform_2(%arg0: i32) -> (i32, i32) {
    %c0_i32 = arith.constant 0 : i32
    %c0_i32_0 = arith.constant 0 : i32
    %c0_i32_1 = arith.constant 0 : i32
    return %c0_i32, %c0_i32_0 : i32, i32
  }
  func.func @transform_3(%arg0: i32) -> (i32, i32) {
    %c0_i32 = arith.constant 0 : i32
    %c0_i32_0 = arith.constant 0 : i32
    %c0_i32_1 = arith.constant 0 : i32
    return %c0_i32, %c0_i32_0 : i32, i32
  }
  func.func @transform_4(%arg0: i32) -> (i32, i32) {
    %c0_i32 = arith.constant 0 : i32
    %c0_i32_0 = arith.constant 0 : i32
    %c0_i32_1 = arith.constant 0 : i32
    return %c0_i32, %c0_i32_0 : i32, i32
  }
  func.func @transform_5(%arg0: i32) -> (i32, i32) {
    %c0_i32 = arith.constant 0 : i32
    %c0_i32_0 = arith.constant 0 : i32
    %c0_i32_1 = arith.constant 0 : i32
    return %c0_i32, %c0_i32_0 : i32, i32
  }
  func.func @transform_6(%arg0: i32) -> (i32, i32) {
    %c0_i32 = arith.constant 0 : i32
    %c0_i32_0 = arith.constant 0 : i32
    %c0_i32_1 = arith.constant 0 : i32
    return %c0_i32, %c0_i32_0 : i32, i32
  }
  func.func @transform_7(%arg0: i32) -> (i32, i32) {
    %c0_i32 = arith.constant 0 : i32
    %c0_i32_0 = arith.constant 0 : i32
    %c0_i32_1 = arith.constant 0 : i32
    return %c0_i32, %c0_i32_0 : i32, i32
  }
  func.func @transform_8(%arg0: i32) -> (i32, i32) {
    %c0_i32 = arith.constant 0 : i32
    %c0_i32_0 = arith.constant 0 : i32
    %c0_i32_1 = arith.constant 0 : i32
    return %c0_i32, %c0_i32_0 : i32, i32
  }
  func.func @transform_9(%arg0: i32) -> (i32, i32) {
    %c0_i32 = arith.constant 0 : i32
    %c0_i32_0 = arith.constant 0 : i32
    %c0_i32_1 = arith.constant 0 : i32
    return %c0_i32, %c0_i32_0 : i32, i32
  }
  func.func @transform_10(%arg0: i32) -> (i32, i32) {
    %c0_i32 = arith.constant 0 : i32
    %c0_i32_0 = arith.constant 0 : i32
    %c0_i32_1 = arith.constant 0 : i32
    return %c0_i32, %c0_i32_0 : i32, i32
  }
  func.func @transform_11(%arg0: i32) -> (i32, i32) {
    %c0_i32 = arith.constant 0 : i32
    %c0_i32_0 = arith.constant 0 : i32
    return %arg0, %c0_i32 : i32, i32
  }
  func.func @transform_12(%arg0: i32) -> (i32, i32, i32) {
    %c0_i32 = arith.constant 0 : i32
    %c0_i32_0 = arith.constant 0 : i32
    %c0_i32_1 = arith.constant 0 : i32
    return %arg0, %c0_i32, %c0_i32_0 : i32, i32, i32
  }
}

</mosaic_0001>

<llo_original>
// kernel: tpu_custom_call.1
$region0: #{tpu_custom_call.1}
  #allocation0 [shape = 'u32[]', space=smem, size = 0x4, offset = 0x4, fixed_abs, tag = 'smem constant byte address 0x4 - core index']
  #allocation1 [shape = 'u32[144,128]{1,0:T(1,128)}', space=vmem, size = 0x12000, scoped, tag = 'internal scratch']
  #allocation2 [shape = 'f32[6,32]{1,0:T(8,128)}', space=vmem, size = 0x1000, scoped, tag = 'scratch operand']
  #allocation3 [shape = 'f32[6,32]{1,0:T(8,128)}', space=vmem, size = 0x1000, scoped, tag = 'scratch operand']
  #allocation4 [shape = 'f32[6,1]{1,0:T(8,128)}', space=vmem, size = 0x1000, scoped, tag = 'scratch operand']
  #allocation5 [shape = 'f32[1,32]{1,0:T(1,128)}', space=vmem, size = 0x200, scoped, tag = 'scratch operand']
  #allocation6 [shape = 'f32[1,32]{1,0:T(1,128)}', space=vmem, size = 0x200, scoped, tag = 'scratch operand']
  %s0 = inlined_call_operand.vmem [shape: f32[2,6,10], index: 0, kind: input, shape index: {}]
  %s1 = inlined_call_operand.vmem [shape: f32[1,32], index: 1, kind: input, shape index: {}]
  %s2 = inlined_call_operand.vmem [shape: f32[1,32], index: 2, kind: input, shape index: {}]
  %s3 = inlined_call_operand.vmem [shape: f32[32,128], index: 3, kind: input, shape index: {}]
  %s4 = inlined_call_operand.vmem [shape: f32[10,138], index: 4, kind: input, shape index: {}]
  %s5 = inlined_call_operand.vmem [shape: f32[1,138], index: 5, kind: input, shape index: {}]
  %s6 = inlined_call_operand.vmem [shape: f32[32,10], index: 6, kind: input, shape index: {}]
  %s7 = inlined_call_operand.vmem [shape: f32[32,10], index: 7, kind: input, shape index: {}]
  %s8 = inlined_call_operand.vmem [shape: f32[1,10], index: 8, kind: input, shape index: {}]
  %s9 = inlined_call_operand.vmem [shape: f32[32,10], index: 9, kind: input, shape index: {}]
  %s10 = inlined_call_operand.vmem [shape: f32[1,10], index: 10, kind: input, shape index: {}]
  %s11 = inlined_call_operand.hbm [shape: f32[2,10], index: 11, kind: output, shape index: {0}]
  %s12 = inlined_call_operand.vmem [shape: f32[2,6,32], index: 12, kind: output, shape index: {1}]
  %13 = xla_tuple %s11, %s12
  %s14 = sld [smem:[#allocation0]]
  $region66: #{tpu_custom_call.1} parent=0
    _
  %s16 = ssub.s32 1, %s14
  %s17 = scalar_select 0, %s16, %s14
  $region1: #{tpu_custom_call.1} parent=0
    #allocation7 [shape = 'u8[1024]{0}', space=vmem, size = 0x400, scoped, tag = 'output window, operand 0, single buffered']
    #allocation8 [shape = 's32[1]{0}', space=sflag, size = 0x4, scoped, tag = 'scoped memory for tpu_custom_call.1']
    %18 = vsyncpa [#allocation8], 0
    // Predicated region
    $region2: #{tpu_custom_call.1} parent=1 // pred_check
      _
    $region3: #{tpu_custom_call.1} parent=1 // pred_check_branch
      %20 = sbr.rel (0) target = $region5
    $region4: #{tpu_custom_call.1} parent=1 // pred_region
      _
    $region5: #{tpu_custom_call.1} parent=1 // pred_fallthru
      _
    // Predicated region
    $region6: #{tpu_custom_call.1} parent=1 // pred_check
      _
    $region7: #{tpu_custom_call.1} parent=1 // pred_check_branch
      %22 = sbr.rel (0) target = $region9
    $region8: #{tpu_custom_call.1} parent=1 // pred_region
      _
    $region9: #{tpu_custom_call.1} parent=1 // pred_fallthru
      _
    // Predicated region
    $region10: #{tpu_custom_call.1} parent=1 // pred_check
      _
    $region11: #{tpu_custom_call.1} parent=1 // pred_check_branch
      %24 = sbr.rel (0) target = $region13
    $region12: #{tpu_custom_call.1} parent=1 // pred_region
      _
    $region13: #{tpu_custom_call.1} parent=1 // pred_fallthru
      _
    // Predicated region
    $region14: #{tpu_custom_call.1} parent=1 // pred_check
      _
    $region15: #{tpu_custom_call.1} parent=1 // pred_check_branch
      %26 = sbr.rel (0) target = $region17
    $region16: #{tpu_custom_call.1} parent=1 // pred_region
      _
    $region17: #{tpu_custom_call.1} parent=1 // pred_fallthru
      _
    // Predicated region
    $region18: #{tpu_custom_call.1} parent=1 // pred_check
      _
    $region19: #{tpu_custom_call.1} parent=1 // pred_check_branch
      %28 = sbr.rel (0) target = $region21
    $region20: #{tpu_custom_call.1} parent=1 // pred_region
      _
    $region21: #{tpu_custom_call.1} parent=1 // pred_fallthru
      _
    // Predicated region
    $region22: #{tpu_custom_call.1} parent=1 // pred_check
      _
    $region23: #{tpu_custom_call.1} parent=1 // pred_check_branch
      %30 = sbr.rel (0) target = $region25
    $region24: #{tpu_custom_call.1} parent=1 // pred_region
      _
    $region25: #{tpu_custom_call.1} parent=1 // pred_fallthru
      _
    // Predicated region
    $region26: #{tpu_custom_call.1} parent=1 // pred_check
      _
    $region27: #{tpu_custom_call.1} parent=1 // pred_check_branch
      %32 = sbr.rel (0) target = $region29
    $region28: #{tpu_custom_call.1} parent=1 // pred_region
      _
    $region29: #{tpu_custom_call.1} parent=1 // pred_fallthru
      _
    // Predicated region
    $region30: #{tpu_custom_call.1} parent=1 // pred_check
      _
    $region31: #{tpu_custom_call.1} parent=1 // pred_check_branch
      %34 = sbr.rel (0) target = $region33
    $region32: #{tpu_custom_call.1} parent=1 // pred_region
      _
    $region33: #{tpu_custom_call.1} parent=1 // pred_fallthru
      _
    // Predicated region
    $region34: #{tpu_custom_call.1} parent=1 // pred_check
      _
    $region35: #{tpu_custom_call.1} parent=1 // pred_check_branch
      %36 = sbr.rel (0) target = $region37
    $region36: #{tpu_custom_call.1} parent=1 // pred_region
      _
    $region37: #{tpu_custom_call.1} parent=1 // pred_fallthru
      _
    // Predicated region
    $region38: #{tpu_custom_call.1} parent=1 // pred_check
      _
    $region39: #{tpu_custom_call.1} parent=1 // pred_check_branch
      %38 = sbr.rel (0) target = $region41
    $region40: #{tpu_custom_call.1} parent=1 // pred_region
      _
    $region41: #{tpu_custom_call.1} parent=1 // pred_fallthru
      _
    // Predicated region
    $region42: #{tpu_custom_call.1} parent=1 // pred_check
      _
    $region43: #{tpu_custom_call.1} parent=1 // pred_check_branch
      %40 = sbr.rel (0) target = $region45
    $region44: #{tpu_custom_call.1} parent=1 // pred_region
      _
    $region45: #{tpu_custom_call.1} parent=1 // pred_fallthru
      _
    %p41 = scmp.eq.s32.totalorder 0, 0
    // Predicated region
    $region46: #{tpu_custom_call.1} parent=1 // pred_check
      %p42 = pneg %p41
    $region47: #{tpu_custom_call.1} parent=1 // pred_check_branch
      %44 = sbr.rel (%p42) target = $region49
    $region48: #{tpu_custom_call.1} parent=1 // pred_region
      %vm45 = vcmask 259072
      %46 = vst.msk [vmem:[#allocation2] sm:$0x3f] %vm45, 0.0
      %47 = vst.msk [vmem:[#allocation3] sm:$0x3f] %vm45, 0.0
      %v48 = vld [vmem:[%s1] sm:$0x1]
      %vm49 = vcmask 253952
      %50 = vst.msk [vmem:[#allocation5] sm:$0x1] %vm49, %v48
      %v51 = vld [vmem:[%s2] sm:$0x1]
      %52 = vst.msk [vmem:[#allocation6] sm:$0x1] %vm49, %v51
    $region49: #{tpu_custom_call.1} parent=1 // pred_fallthru
      _
    %v53 = vld [vmem:[%s0] sm:$0x3f]
    %v54 = vld [vmem:[%s0 + $0x8] sm:$0x3f]
    %v57 = vcombine.high %v53, %v53
    %v59 = vunpack.c.l.s4 1983009808
    %v60 = vunpack.c.0.s8 %v59
    %v61 = vlaneseq
    %v62 = vshrl.u32 %v61, 7
    %v63 = vsub.s32 %v60, %v62
    %v64 = vrot.slane %v53, %v63
    %v66 = vunpack.c.l.s4 1983009808
    %v67 = vunpack.c.0.s8 %v66
    %v68 = vlaneseq
    %v69 = vshrl.u32 %v68, 7
    %v70 = vsub.s32 %v67, %v69
    %v71 = vrot.slane %v57, %v70
    %v72 = vcombine.high %v64, %v64
    %v73 = vcombine.high %v54, %v54
    %v75 = vunpack.c.l.s4 1983009808
    %v76 = vunpack.c.0.s8 %v75
    %v77 = vlaneseq
    %v78 = vshrl.u32 %v77, 7
    %v79 = vsub.s32 %v76, %v78
    %v80 = vrot.slane %v54, %v79
    %v82 = vunpack.c.l.s4 1983009808
    %v83 = vunpack.c.0.s8 %v82
    %v84 = vlaneseq
    %v85 = vshrl.u32 %v84, 7
    %v86 = vsub.s32 %v83, %v85
    %v87 = vrot.slane %v73, %v86
    %v88 = vcombine.high %v80, %v80
    %v89 = vld [vmem:[%s4] sm:$0xff]
    %v90 = vld [vmem:[%s4 + $0x8] sm:$0xff]
    %v91 = vld [vmem:[%s4 + $0x10] sm:$0x3]
    %v92 = vld [vmem:[%s4 + $0x18] sm:$0x3]
    %v93 = vld [vmem:[%s5] sm:$0x3]
    %v95 = vlaneseq
    %v96 = vshrl.u32 %v95, 7
    %v97 = vsub.s32 0, %v96
    %v98 = vrot.slane %v93, %v97
    %v99 = vlaneseq
    %v100 = vshrl.u32 %v99, 7
    %v101 = vsub.s32 1, %v100
    %v102 = vrot.slane %v93, %v101
    %v105 = vcombine.low %v64, %v72
    %v106 = vcombine.low %v71, %v80
    %v108 = vunpack.c.l.s4 1983009808
    %v109 = vunpack.c.0.s8 %v108
    %v110 = vlaneseq
    %v111 = vshrl.u32 %v110, 7
    %v112 = vsub.s32 %v109, %v111
    %v113 = vrot.slane %v105, %v112
    %v115 = vunpack.c.l.s4 1983009808
    %v116 = vunpack.c.0.s8 %v115
    %v117 = vlaneseq
    %v118 = vshrl.u32 %v117, 7
    %v119 = vsub.s32 %v116, %v118
    %v120 = vrot.slane %v106, %v119
    %v121 = vcombine.low %v113, %v120
    %v122 = vcombine.low %v88, %v87
    %v124 = vunpack.c.l.s4 1983009808
    %v125 = vunpack.c.0.s8 %v124
    %v126 = vlaneseq
    %v127 = vshrl.u32 %v126, 7
    %v128 = vsub.s32 %v125, %v127
    %v129 = vrot.slane %v122, %v128
    %vm130 = vcmask 80896
    %v131 = vsel %vm130, %v121, 0
    %v133 = vsel %vm130, %v129, 0
    %vm135 = vcmask 1041408
    %v137 = vsel %vm135, %v91, 0
    %v140 = vsel %vm135, %v92, 0
    %142 = vmatprep.subr.mxu0 %v90
    %143 = vmatpush1.msra.mxu0 %v89
    %144 = vmatprep.subr.mxu0 %v140
    %145 = vmatpush1.msra.mxu0 %v137
    %146 = vmatprep.subr.mxu0 0.0
    %147 = vmatpush1.msra.mxu0 0.0
    %148 = vmatprep.subr.mxu0 0.0
    %149 = vmatpush1.msra.mxu0 0.0
    %150 = vmatprep.subr.mxu0 0.0
    %151 = vmatpush1.msra.mxu0 0.0
    %152 = vmatprep.subr.mxu0 0.0
    %153 = vmatpush1.msra.mxu0 0.0
    %154 = vmatprep.subr.mxu0 0.0
    %155 = vmatpush1.msra.mxu0 0.0
    %156 = vmatprep.subr.mxu0 0.0
    %157 = vmatpush1.msra.mxu0 0.0
    %158 = vmatprep.subr.mxu0 0.0
    %159 = vmatpush1.msra.mxu0 0.0
    %160 = vmatprep.subr.mxu0 0.0
    %161 = vmatpush1.msra.mxu0 0.0
    %162 = vmatprep.subr.mxu0 0.0
    %163 = vmatpush1.msra.mxu0 0.0
    %164 = vmatprep.subr.mxu0 0.0
    %165 = vmatpush1.msra.mxu0 0.0
    %166 = vmatprep.subr.mxu0 0.0
    %167 = vmatpush1.msra.mxu0 0.0
    %168 = vmatprep.subr.mxu0 0.0
    %169 = vmatpush1.msra.mxu0 0.0
    %170 = vmatprep.subr.mxu0 0.0
    %171 = vmatpush1.msra.mxu0 0.0
    %172 = vmatprep.subr.mxu0 0.0
    %173 = vmatpush1.msra.mxu0 0.0
    %174 = vmatprep.subr.mxu0 0.0
    %175 = vmatpush1.msra.mxu0 0.0
    %176 = vmatprep.subr.mxu0 0.0
    %177 = vmatpush1.msra.mxu0 0.0
    %178 = vmatprep.subr.mxu0 0.0
    %179 = vmatpush1.msra.mxu0 0.0
    %180 = vmatprep.subr.mxu0 0.0
    %181 = vmatpush1.msra.mxu0 0.0
    %182 = vmatprep.subr.mxu0 0.0
    %183 = vmatpush1.msra.mxu0 0.0
    %184 = vmatprep.subr.mxu0 0.0
    %185 = vmatpush1.msra.mxu0 0.0
    %186 = vmatprep.subr.mxu0 0.0
    %187 = vmatpush1.msra.mxu0 0.0
    %188 = vmatprep.subr.mxu0 0.0
    %189 = vmatpush1.msra.mxu0 0.0
    %190 = vmatprep.subr.mxu0 0.0
    %191 = vmatpush1.msra.mxu0 0.0
    %192 = vmatprep.subr.mxu0 0.0
    %193 = vmatpush1.msra.mxu0 0.0
    %194 = vmatprep.subr.mxu0 0.0
    %195 = vmatpush1.msra.mxu0 0.0
    %196 = vmatprep.subr.mxu0 0.0
    %197 = vmatpush1.msra.mxu0 0.0
    %198 = vmatprep.subr.mxu0 0.0
    %199 = vmatpush1.msra.mxu0 0.0
    %200 = vmatprep.subr.mxu0 0.0
    %201 = vmatpush1.msra.mxu0 0.0
    %202 = vmatprep.subr.mxu0 0.0
    %203 = vmatpush1.msra.mxu0 0.0
    %204 = vmatprep.subr.mxu0 0.0
    %205 = vmatpush1.msra.mxu0 0.0
    %206 = vmatprep.mubr.f32.mxu0 0.0
    %207 = vmatmul.mubr.f32.gmra.mrb[0].mxu0 %v131
    %v208 = vpop.f32.mrb[0].mxu0
    %v209 = vadd.f32 %v98, %v208
    %v210 = vpop.f32.mrb[0].mxu0
    %v211 = vadd.f32 %v102, %v210
    %212 = vmatprep.mubr.f32.mxu0 0.0
    %213 = vmatmul.mubr.f32.gmra.mrb[0].mxu0 %v133
    %v214 = vpop.f32.mrb[0].mxu0
    %v215 = vadd.f32 %v98, %v214
    %v216 = vpop.f32.mrb[0].mxu0
    %v217 = vadd.f32 %v102, %v216
    %218 = vdwg.mxu0
    %v219 = vld [vmem:[%s3] sm:$0xff]
    %v220 = vld [vmem:[%s3 + $0x8] sm:$0xff]
    %v221 = vld [vmem:[%s3 + $0x10] sm:$0xff]
    %v222 = vld [vmem:[%s3 + $0x18] sm:$0xff]
    %v223 = vld [vmem:[%s6] sm:$0xff]
    %v224 = vld [vmem:[%s6 + $0x8] sm:$0xff]
    %v225 = vld [vmem:[%s6 + $0x10] sm:$0xff]
    %v226 = vld [vmem:[%s6 + $0x18] sm:$0xff]
    %v227 = vld [vmem:[%s7] sm:$0xff]
    %v228 = vld [vmem:[%s7 + $0x8] sm:$0xff]
    %v229 = vld [vmem:[%s7 + $0x10] sm:$0xff]
    %v230 = vld [vmem:[%s7 + $0x18] sm:$0xff]
    %v231 = vld [vmem:[%s8] sm:$0x1]
    %v232 = vld [vmem:[%s9] sm:$0xff]
    %v233 = vld [vmem:[%s9 + $0x8] sm:$0xff]
    %v234 = vld [vmem:[%s9 + $0x10] sm:$0xff]
    %v235 = vld [vmem:[%s9 + $0x18] sm:$0xff]
    %v236 = vld [vmem:[%s10] sm:$0x1]
    %v237 = vld [vmem:[#allocation5] sm:$0x1]
    %v238 = vld [vmem:[#allocation6] sm:$0x1]
    %vm239 = vcmask 5120
    %240 = vst.msk [vmem:[#allocation4] sm:$0x3f] %vm239, -1e+30
    %vm241 = vcmask 261120
    %v243 = vsel %vm241, %v237, 0
    %245 = vmatprep.subr.mxu0 0.0
    %246 = vmatpush1.msra.mxu0 %v219
    %247 = vmatprep.subr.mxu0 0.0
    %248 = vmatpush1.msra.mxu0 %v220
    %249 = vmatprep.subr.mxu0 0.0
    %250 = vmatpush1.msra.mxu0 %v221
    %251 = vmatprep.subr.mxu0 0.0
    %252 = vmatpush1.msra.mxu0 %v222
    %253 = vmatprep.subr.mxu0 0.0
    %254 = vmatpush1.msra.mxu0 0.0
    %255 = vmatprep.subr.mxu0 0.0
    %256 = vmatpush1.msra.mxu0 0.0
    %257 = vmatprep.subr.mxu0 0.0
    %258 = vmatpush1.msra.mxu0 0.0
    %259 = vmatprep.subr.mxu0 0.0
    %260 = vmatpush1.msra.mxu0 0.0
    %261 = vmatprep.subr.mxu0 0.0
    %262 = vmatpush1.msra.mxu0 0.0
    %263 = vmatprep.subr.mxu0 0.0
    %264 = vmatpush1.msra.mxu0 0.0
    %265 = vmatprep.subr.mxu0 0.0
    %266 = vmatpush1.msra.mxu0 0.0
    %267 = vmatprep.subr.mxu0 0.0
    %268 = vmatpush1.msra.mxu0 0.0
    %269 = vmatprep.subr.mxu0 0.0
    %270 = vmatpush1.msra.mxu0 0.0
    %271 = vmatprep.subr.mxu0 0.0
    %272 = vmatpush1.msra.mxu0 0.0
    %273 = vmatprep.subr.mxu0 0.0
    %274 = vmatpush1.msra.mxu0 0.0
    %275 = vmatprep.subr.mxu0 0.0
    %276 = vmatpush1.msra.mxu0 0.0
    %277 = vmatprep.subr.mxu0 0.0
    %278 = vmatpush1.msra.mxu0 0.0
    %279 = vmatprep.subr.mxu0 0.0
    %280 = vmatpush1.msra.mxu0 0.0
    %281 = vmatprep.subr.mxu0 0.0
    %282 = vmatpush1.msra.mxu0 0.0
    %283 = vmatprep.subr.mxu0 0.0
    %284 = vmatpush1.msra.mxu0 0.0
    %285 = vmatprep.subr.mxu0 0.0
    %286 = vmatpush1.msra.mxu0 0.0
    %287 = vmatprep.subr.mxu0 0.0
    %288 = vmatpush1.msra.mxu0 0.0
    %289 = vmatprep.subr.mxu0 0.0
    %290 = vmatpush1.msra.mxu0 0.0
    %291 = vmatprep.subr.mxu0 0.0
    %292 = vmatpush1.msra.mxu0 0.0
    %293 = vmatprep.subr.mxu0 0.0
    %294 = vmatpush1.msra.mxu0 0.0
    %295 = vmatprep.subr.mxu0 0.0
    %296 = vmatpush1.msra.mxu0 0.0
    %297 = vmatprep.subr.mxu0 0.0
    %298 = vmatpush1.msra.mxu0 0.0
    %299 = vmatprep.subr.mxu0 0.0
    %300 = vmatpush1.msra.mxu0 0.0
    %301 = vmatprep.subr.mxu0 0.0
    %302 = vmatpush1.msra.mxu0 0.0
    %303 = vmatprep.subr.mxu0 0.0
    %304 = vmatpush1.msra.mxu0 0.0
    %305 = vmatprep.subr.mxu0 0.0
    %306 = vmatpush1.msra.mxu0 0.0
    %307 = vmatprep.subr.mxu0 0.0
    %308 = vmatpush1.msra.mxu0 0.0
    %309 = vmatprep.mubr.f32.mxu0 0.0
    %310 = vmatmul.mubr.f32.gmra.mrb[0].mxu0 %v243
    %v311 = vpop.f32.mrb[0].mxu0
    %v312 = vadd.f32 %v209, %v311
    %v313 = vpop.f32.mrb[0].mxu0
    %314 = vdwg.mxu0
    %v315 = vxor.u32 %v312, 2147483648
    %v316 = vmul.f32 %v315, 1.442695
    %v317 = vpow.pop %v316
    %v318 = vadd.f32 %v317, 1.0
    %v319 = vrcp.pop %v318
    %v320 = vmul.f32 1.0, %v319
    %v321 = vtanh.pop %v312
    %v322 = vmul.f32 %v320, %v238
    %324 = vrot.lane.b32.xlu0 %v321, 96
    %v325 = vpop.permute.xlu0 %324
    %v327 = vmul.f32 %v320, %v325
    %329 = vrot.lane.b32.xlu0 %v327, 64
    %v330 = vpop.permute.xlu0 %329
    %v332 = vadd.f32 %v322, %v330
    %v333 = vtanh.pop %v332
    %335 = vrot.lane.b32.xlu0 %v333, 32
    %v336 = vpop.permute.xlu0 %335
    %v338 = vmul.f32 %v320, %v336
    %340 = vrot.lane.b32.xlu0 %v338, 96
    %v341 = vpop.permute.xlu0 %340
    %vm343 = vcmask 253952
    %344 = vst.msk [vmem:[#allocation2] sm:$0x1] %vm343, %v341
    %345 = vst.msk [vmem:[#allocation3] sm:$0x1] %vm343, %v332
    %346 = vmatprep.subr.mxu0 0.0
    %347 = vmatpush1.msra.mxu0 %v227
    %348 = vmatprep.subr.mxu0 0.0
    %349 = vmatpush1.msra.mxu0 %v228
    %350 = vmatprep.subr.mxu0 0.0
    %351 = vmatpush1.msra.mxu0 %v229
    %352 = vmatprep.subr.mxu0 0.0
    %353 = vmatpush1.msra.mxu0 %v230
    %354 = vmatprep.subr.mxu0 0.0
    %355 = vmatpush1.msra.mxu0 0.0
    %356 = vmatprep.subr.mxu0 0.0
    %357 = vmatpush1.msra.mxu0 0.0
    %358 = vmatprep.subr.mxu0 0.0
    %359 = vmatpush1.msra.mxu0 0.0
    %360 = vmatprep.subr.mxu0 0.0
    %361 = vmatpush1.msra.mxu0 0.0
    %362 = vmatprep.subr.mxu0 0.0
    %363 = vmatpush1.msra.mxu0 0.0
    %364 = vmatprep.subr.mxu0 0.0
    %365 = vmatpush1.msra.mxu0 0.0
    %366 = vmatprep.subr.mxu0 0.0
    %367 = vmatpush1.msra.mxu0 0.0
    %368 = vmatprep.subr.mxu0 0.0
    %369 = vmatpush1.msra.mxu0 0.0
    %370 = vmatprep.subr.mxu0 0.0
    %371 = vmatpush1.msra.mxu0 0.0
    %372 = vmatprep.subr.mxu0 0.0
    %373 = vmatpush1.msra.mxu0 0.0
    %374 = vmatprep.subr.mxu0 0.0
    %375 = vmatpush1.msra.mxu0 0.0
    %376 = vmatprep.subr.mxu0 0.0
    %377 = vmatpush1.msra.mxu0 0.0
    %378 = vmatprep.subr.mxu0 0.0
    %379 = vmatpush1.msra.mxu0 0.0
    %380 = vmatprep.subr.mxu0 0.0
    %381 = vmatpush1.msra.mxu0 0.0
    %382 = vmatprep.subr.mxu0 0.0
    %383 = vmatpush1.msra.mxu0 0.0
    %384 = vmatprep.subr.mxu0 0.0
    %385 = vmatpush1.msra.mxu0 0.0
    %386 = vmatprep.subr.mxu0 0.0
    %387 = vmatpush1.msra.mxu0 0.0
    %388 = vmatprep.subr.mxu0 0.0
    %389 = vmatpush1.msra.mxu0 0.0
    %390 = vmatprep.subr.mxu0 0.0
    %391 = vmatpush1.msra.mxu0 0.0
    %392 = vmatprep.subr.mxu0 0.0
    %393 = vmatpush1.msra.mxu0 0.0
    %394 = vmatprep.subr.mxu0 0.0
    %395 = vmatpush1.msra.mxu0 0.0
    %396 = vmatprep.subr.mxu0 0.0
    %397 = vmatpush1.msra.mxu0 0.0
    %398 = vmatprep.subr.mxu0 0.0
    %399 = vmatpush1.msra.mxu0 0.0
    %400 = vmatprep.subr.mxu0 0.0
    %401 = vmatpush1.msra.mxu0 0.0
    %402 = vmatprep.subr.mxu0 0.0
    %403 = vmatpush1.msra.mxu0 0.0
    %404 = vmatprep.subr.mxu0 0.0
    %405 = vmatpush1.msra.mxu0 0.0
    %406 = vmatprep.subr.mxu0 0.0
    %407 = vmatpush1.msra.mxu0 0.0
    %408 = vmatprep.subr.mxu0 0.0
    %409 = vmatpush1.msra.mxu0 0.0
    %410 = vmatprep.mubr.f32.mxu0 0.0
    %411 = vmatmul.mubr.f32.gmra.mrb[0].mxu0 %v243
    %v412 = vpop.f32.mrb[0].mxu0
    %v413 = vadd.f32 0.0, %v412
    %v414 = vpop.f32.mrb[0].mxu0
    %415 = vdwg.mxu0
    %v416 = vsel %vm241, %v341, 0
    %418 = vmatprep.subr.mxu0 0.0
    %419 = vmatpush1.msra.mxu0 %v223
    %420 = vmatprep.subr.mxu0 0.0
    %421 = vmatpush1.msra.mxu0 %v224
    %422 = vmatprep.subr.mxu0 0.0
    %423 = vmatpush1.msra.mxu0 %v225
    %424 = vmatprep.subr.mxu0 0.0
    %425 = vmatpush1.msra.mxu0 %v226
    %426 = vmatprep.subr.mxu0 0.0
    %427 = vmatpush1.msra.mxu0 0.0
    %428 = vmatprep.subr.mxu0 0.0
    %429 = vmatpush1.msra.mxu0 0.0
    %430 = vmatprep.subr.mxu0 0.0
    %431 = vmatpush1.msra.mxu0 0.0
    %432 = vmatprep.subr.mxu0 0.0
    %433 = vmatpush1.msra.mxu0 0.0
    %434 = vmatprep.subr.mxu0 0.0
    %435 = vmatpush1.msra.mxu0 0.0
    %436 = vmatprep.subr.mxu0 0.0
    %437 = vmatpush1.msra.mxu0 0.0
    %438 = vmatprep.subr.mxu0 0.0
    %439 = vmatpush1.msra.mxu0 0.0
    %440 = vmatprep.subr.mxu0 0.0
    %441 = vmatpush1.msra.mxu0 0.0
    %442 = vmatprep.subr.mxu0 0.0
    %443 = vmatpush1.msra.mxu0 0.0
    %444 = vmatprep.subr.mxu0 0.0
    %445 = vmatpush1.msra.mxu0 0.0
    %446 = vmatprep.subr.mxu0 0.0
    %447 = vmatpush1.msra.mxu0 0.0
    %448 = vmatprep.subr.mxu0 0.0
    %449 = vmatpush1.msra.mxu0 0.0
    %450 = vmatprep.subr.mxu0 0.0
    %451 = vmatpush1.msra.mxu0 0.0
    %452 = vmatprep.subr.mxu0 0.0
    %453 = vmatpush1.msra.mxu0 0.0
    %454 = vmatprep.subr.mxu0 0.0
    %455 = vmatpush1.msra.mxu0 0.0
    %456 = vmatprep.subr.mxu0 0.0
    %457 = vmatpush1.msra.mxu0 0.0
    %458 = vmatprep.subr.mxu0 0.0
    %459 = vmatpush1.msra.mxu0 0.0
    %460 = vmatprep.subr.mxu0 0.0
    %461 = vmatpush1.msra.mxu0 0.0
    %462 = vmatprep.subr.mxu0 0.0
    %463 = vmatpush1.msra.mxu0 0.0
    %464 = vmatprep.subr.mxu0 0.0
    %465 = vmatpush1.msra.mxu0 0.0
    %466 = vmatprep.subr.mxu0 0.0
    %467 = vmatpush1.msra.mxu0 0.0
    %468 = vmatprep.subr.mxu0 0.0
    %469 = vmatpush1.msra.mxu0 0.0
    %470 = vmatprep.subr.mxu0 0.0
    %471 = vmatpush1.msra.mxu0 0.0
    %472 = vmatprep.subr.mxu0 0.0
    %473 = vmatpush1.msra.mxu0 0.0
    %474 = vmatprep.subr.mxu0 0.0
    %475 = vmatpush1.msra.mxu0 0.0
    %476 = vmatprep.subr.mxu0 0.0
    %477 = vmatpush1.msra.mxu0 0.0
    %478 = vmatprep.subr.mxu0 0.0
    %479 = vmatpush1.msra.mxu0 0.0
    %480 = vmatprep.subr.mxu0 0.0
    %481 = vmatpush1.msra.mxu0 0.0
    %482 = vmatprep.mubr.f32.mxu0 0.0
    %483 = vmatmul.mubr.f32.gmra.mrb[0].mxu0 %v416
    %v484 = vpop.f32.mrb[0].mxu0
    %v485 = vadd.f32 %v413, %v484
    %v486 = vpop.f32.mrb[0].mxu0
    %487 = vdwg.mxu0
    %v488 = vadd.f32 %v485, %v211
    %v489 = vtanh.pop %v488
    %v490 = vmul.f32 %v489, %v231
    %vm491 = vcmask 73728
    %v492 = vsel %vm491, %v490, 0.0
    %493 = vadd.xlane.f32.xlu0 %v492
    %v494 = vpop.xlane.xlu0 %493
    %vm495 = vcmask 0
    %496 = vst.msk [vmem:[#allocation4] sm:$0x1] %vm495, %v494
    %v497 = vld [vmem:[#allocation4] sm:$0x3f]
    %v498 = vsel %vm239, %v497, -inf
    %499 = vmax.xlane.f32.xlu0 %v498
    %v500 = vpop.xlane.xlu0 %499
    %v501 = vrot.slane %v500, 4
    %v502 = vmax.f32 %v500, %v501
    %v503 = vrot.slane %v502, 2
    %v504 = vmax.f32 %v502, %v503
    %v505 = vrot.slane %v504, 1
    %v506 = vmax.f32 %v504, %v505
    %s507 = vtos %v506
    %v508 = vstv %s507
    %v509 = vsub.f32 %v497, %v508
    %v510 = vmul.f32 %v509, 1.442695
    %v511 = vpow.pop %v510
    %v512 = vsel %vm239, %v511, 0.0
    %513 = vadd.xlane.f32.xlu0 %v512
    %v514 = vpop.xlane.xlu0 %513
    %v515 = vrot.slane %v514, 4
    %v516 = vadd.f32 %v514, %v515
    %v517 = vrot.slane %v516, 2
    %v518 = vadd.f32 %v516, %v517
    %v519 = vrot.slane %v518, 1
    %v520 = vadd.f32 %v518, %v519
    %s521 = vtos %v520
    %v522 = vstv %s521
    %v523 = vrcp.pop %v522
    %v524 = vmul.f32 %v511, %v523
    %v525 = vld [vmem:[#allocation2] sm:$0x3f]
    %527 = vset.pattern.permute.xlu0 0
    %528 = vperm.xlu0 %527, %v524
    %v529 = vpop.permute.xlu0 %528
    %v531 = vmul.f32 %v529, %v525
    %vm532 = vcmask 259072
    %v533 = vsel %vm532, %v531, 0.0
    %v534 = vrot.slane %v533, 4
    %v535 = vadd.f32 %v533, %v534
    %v536 = vrot.slane %v535, 2
    %v537 = vadd.f32 %v535, %v536
    %v538 = vrot.slane %v537, 1
    %v539 = vadd.f32 %v537, %v538
    %v540 = vld [vmem:[#allocation3] sm:$0x3f]
    %v541 = vmul.f32 %v529, %v540
    %v542 = vsel %vm532, %v541, 0.0
    %v543 = vrot.slane %v542, 4
    %v544 = vadd.f32 %v542, %v543
    %v545 = vrot.slane %v544, 2
    %v546 = vadd.f32 %v544, %v545
    %v547 = vrot.slane %v546, 1
    %v548 = vadd.f32 %v546, %v547
    %v550 = vrot.slane %v209, 1
    %v553 = vsel %vm241, %v539, 0
    %555 = vmatprep.subr.mxu0 0.0
    %556 = vmatpush1.msra.mxu0 %v219
    %557 = vmatprep.subr.mxu0 0.0
    %558 = vmatpush1.msra.mxu0 %v220
    %559 = vmatprep.subr.mxu0 0.0
    %560 = vmatpush1.msra.mxu0 %v221
    %561 = vmatprep.subr.mxu0 0.0
    %562 = vmatpush1.msra.mxu0 %v222
    %563 = vmatprep.subr.mxu0 0.0
    %564 = vmatpush1.msra.mxu0 0.0
    %565 = vmatprep.subr.mxu0 0.0
    %566 = vmatpush1.msra.mxu0 0.0
    %567 = vmatprep.subr.mxu0 0.0
    %568 = vmatpush1.msra.mxu0 0.0
    %569 = vmatprep.subr.mxu0 0.0
    %570 = vmatpush1.msra.mxu0 0.0
    %571 = vmatprep.subr.mxu0 0.0
    %572 = vmatpush1.msra.mxu0 0.0
    %573 = vmatprep.subr.mxu0 0.0
    %574 = vmatpush1.msra.mxu0 0.0
    %575 = vmatprep.subr.mxu0 0.0
    %576 = vmatpush1.msra.mxu0 0.0
    %577 = vmatprep.subr.mxu0 0.0
    %578 = vmatpush1.msra.mxu0 0.0
    %579 = vmatprep.subr.mxu0 0.0
    %580 = vmatpush1.msra.mxu0 0.0
    %581 = vmatprep.subr.mxu0 0.0
    %582 = vmatpush1.msra.mxu0 0.0
    %583 = vmatprep.subr.mxu0 0.0
    %584 = vmatpush1.msra.mxu0 0.0
    %585 = vmatprep.subr.mxu0 0.0
    %586 = vmatpush1.msra.mxu0 0.0
    %587 = vmatprep.subr.mxu0 0.0
    %588 = vmatpush1.msra.mxu0 0.0
    %589 = vmatprep.subr.mxu0 0.0
    %590 = vmatpush1.msra.mxu0 0.0
    %591 = vmatprep.subr.mxu0 0.0
    %592 = vmatpush1.msra.mxu0 0.0
    %593 = vmatprep.subr.mxu0 0.0
    %594 = vmatpush1.msra.mxu0 0.0
    %595 = vmatprep.subr.mxu0 0.0
    %596 = vmatpush1.msra.mxu0 0.0
    %597 = vmatprep.subr.mxu0 0.0
    %598 = vmatpush1.msra.mxu0 0.0
    %599 = vmatprep.subr.mxu0 0.0
    %600 = vmatpush1.msra.mxu0 0.0
    %601 = vmatprep.subr.mxu0 0.0
    %602 = vmatpush1.msra.mxu0 0.0
    %603 = vmatprep.subr.mxu0 0.0
    %604 = vmatpush1.msra.mxu0 0.0
    %605 = vmatprep.subr.mxu0 0.0
    %606 = vmatpush1.msra.mxu0 0.0
    %607 = vmatprep.subr.mxu0 0.0
    %608 = vmatpush1.msra.mxu0 0.0
    %609 = vmatprep.subr.mxu0 0.0
    %610 = vmatpush1.msra.mxu0 0.0
    %611 = vmatprep.subr.mxu0 0.0
    %612 = vmatpush1.msra.mxu0 0.0
    %613 = vmatprep.subr.mxu0 0.0
    %614 = vmatpush1.msra.mxu0 0.0
    %615 = vmatprep.subr.mxu0 0.0
    %616 = vmatpush1.msra.mxu0 0.0
    %617 = vmatprep.subr.mxu0 0.0
    %618 = vmatpush1.msra.mxu0 0.0
    %619 = vmatprep.mubr.f32.mxu0 0.0
    %620 = vmatmul.mubr.f32.gmra.mrb[0].mxu0 %v553
    %v621 = vpop.f32.mrb[0].mxu0
    %v622 = vadd.f32 %v550, %v621
    %v623 = vpop.f32.mrb[0].mxu0
    %624 = vdwg.mxu0
    %v625 = vxor.u32 %v622, 2147483648
    %v626 = vmul.f32 %v625, 1.442695
    %v627 = vpow.pop %v626
    %v628 = vadd.f32 %v627, 1.0
    %v629 = vrcp.pop %v628
    %v630 = vmul.f32 1.0, %v629
    %v631 = vtanh.pop %v622
    %v632 = vmul.f32 %v630, %v548
    %634 = vrot.lane.b32.xlu0 %v631, 96
    %v635 = vpop.permute.xlu0 %634
    %v637 = vmul.f32 %v630, %v635
    %639 = vrot.lane.b32.xlu0 %v637, 64
    %v640 = vpop.permute.xlu0 %639
    %v642 = vadd.f32 %v632, %v640
    %v643 = vtanh.pop %v642
    %645 = vrot.lane.b32.xlu0 %v643, 32
    %v646 = vpop.permute.xlu0 %645
    %v648 = vmul.f32 %v630, %v646
    %650 = vrot.lane.b32.xlu0 %v648, 96
    %v651 = vpop.permute.xlu0 %650
    %653 = vst.msk [vmem:[#allocation2 + $0x1] sm:$0x1] %vm343, %v651
    %654 = vst.msk [vmem:[#allocation3 + $0x1] sm:$0x1] %vm343, %v642
    %655 = vmatprep.subr.mxu0 0.0
    %656 = vmatpush1.msra.mxu0 %v227
    %657 = vmatprep.subr.mxu0 0.0
    %658 = vmatpush1.msra.mxu0 %v228
    %659 = vmatprep.subr.mxu0 0.0
    %660 = vmatpush1.msra.mxu0 %v229
    %661 = vmatprep.subr.mxu0 0.0
    %662 = vmatpush1.msra.mxu0 %v230
    %663 = vmatprep.subr.mxu0 0.0
    %664 = vmatpush1.msra.mxu0 0.0
    %665 = vmatprep.subr.mxu0 0.0
    %666 = vmatpush1.msra.mxu0 0.0
    %667 = vmatprep.subr.mxu0 0.0
    %668 = vmatpush1.msra.mxu0 0.0
    %669 = vmatprep.subr.mxu0 0.0
    %670 = vmatpush1.msra.mxu0 0.0
    %671 = vmatprep.subr.mxu0 0.0
    %672 = vmatpush1.msra.mxu0 0.0
    %673 = vmatprep.subr.mxu0 0.0
    %674 = vmatpush1.msra.mxu0 0.0
    %675 = vmatprep.subr.mxu0 0.0
    %676 = vmatpush1.msra.mxu0 0.0
    %677 = vmatprep.subr.mxu0 0.0
    %678 = vmatpush1.msra.mxu0 0.0
    %679 = vmatprep.subr.mxu0 0.0
    %680 = vmatpush1.msra.mxu0 0.0
    %681 = vmatprep.subr.mxu0 0.0
    %682 = vmatpush1.msra.mxu0 0.0
    %683 = vmatprep.subr.mxu0 0.0
    %684 = vmatpush1.msra.mxu0 0.0
    %685 = vmatprep.subr.mxu0 0.0
    %686 = vmatpush1.msra.mxu0 0.0
    %687 = vmatprep.subr.mxu0 0.0
    %688 = vmatpush1.msra.mxu0 0.0
    %689 = vmatprep.subr.mxu0 0.0
    %690 = vmatpush1.msra.mxu0 0.0
    %691 = vmatprep.subr.mxu0 0.0
    %692 = vmatpush1.msra.mxu0 0.0
    %693 = vmatprep.subr.mxu0 0.0
    %694 = vmatpush1.msra.mxu0 0.0
    %695 = vmatprep.subr.mxu0 0.0
    %696 = vmatpush1.msra.mxu0 0.0
    %697 = vmatprep.subr.mxu0 0.0
    %698 = vmatpush1.msra.mxu0 0.0
    %699 = vmatprep.subr.mxu0 0.0
    %700 = vmatpush1.msra.mxu0 0.0
    %701 = vmatprep.subr.mxu0 0.0
    %702 = vmatpush1.msra.mxu0 0.0
    %703 = vmatprep.subr.mxu0 0.0
    %704 = vmatpush1.msra.mxu0 0.0
    %705 = vmatprep.subr.mxu0 0.0
    %706 = vmatpush1.msra.mxu0 0.0
    %707 = vmatprep.subr.mxu0 0.0
    %708 = vmatpush1.msra.mxu0 0.0
    %709 = vmatprep.subr.mxu0 0.0
    %710 = vmatpush1.msra.mxu0 0.0
    %711 = vmatprep.subr.mxu0 0.0
    %712 = vmatpush1.msra.mxu0 0.0
    %713 = vmatprep.subr.mxu0 0.0
    %714 = vmatpush1.msra.mxu0 0.0
    %715 = vmatprep.subr.mxu0 0.0
    %716 = vmatpush1.msra.mxu0 0.0
    %717 = vmatprep.subr.mxu0 0.0
    %718 = vmatpush1.msra.mxu0 0.0
    %719 = vmatprep.mubr.f32.mxu0 0.0
    %720 = vmatmul.mubr.f32.gmra.mrb[0].mxu0 %v553
    %v721 = vpop.f32.mrb[0].mxu0
    %v722 = vadd.f32 0.0, %v721
    %v723 = vpop.f32.mrb[0].mxu0
    %724 = vdwg.mxu0
    %v725 = vsel %vm241, %v651, 0
    %727 = vmatprep.subr.mxu0 0.0
    %728 = vmatpush1.msra.mxu0 %v223
    %729 = vmatprep.subr.mxu0 0.0
    %730 = vmatpush1.msra.mxu0 %v224
    %731 = vmatprep.subr.mxu0 0.0
    %732 = vmatpush1.msra.mxu0 %v225
    %733 = vmatprep.subr.mxu0 0.0
    %734 = vmatpush1.msra.mxu0 %v226
    %735 = vmatprep.subr.mxu0 0.0
    %736 = vmatpush1.msra.mxu0 0.0
    %737 = vmatprep.subr.mxu0 0.0
    %738 = vmatpush1.msra.mxu0 0.0
    %739 = vmatprep.subr.mxu0 0.0
    %740 = vmatpush1.msra.mxu0 0.0
    %741 = vmatprep.subr.mxu0 0.0
    %742 = vmatpush1.msra.mxu0 0.0
    %743 = vmatprep.subr.mxu0 0.0
    %744 = vmatpush1.msra.mxu0 0.0
    %745 = vmatprep.subr.mxu0 0.0
    %746 = vmatpush1.msra.mxu0 0.0
    %747 = vmatprep.subr.mxu0 0.0
    %748 = vmatpush1.msra.mxu0 0.0
    %749 = vmatprep.subr.mxu0 0.0
    %750 = vmatpush1.msra.mxu0 0.0
    %751 = vmatprep.subr.mxu0 0.0
    %752 = vmatpush1.msra.mxu0 0.0
    %753 = vmatprep.subr.mxu0 0.0
    %754 = vmatpush1.msra.mxu0 0.0
    %755 = vmatprep.subr.mxu0 0.0
    %756 = vmatpush1.msra.mxu0 0.0
    %757 = vmatprep.subr.mxu0 0.0
    %758 = vmatpush1.msra.mxu0 0.0
    %759 = vmatprep.subr.mxu0 0.0
    %760 = vmatpush1.msra.mxu0 0.0
    %761 = vmatprep.subr.mxu0 0.0
    %762 = vmatpush1.msra.mxu0 0.0
    %763 = vmatprep.subr.mxu0 0.0
    %764 = vmatpush1.msra.mxu0 0.0
    %765 = vmatprep.subr.mxu0 0.0
    %766 = vmatpush1.msra.mxu0 0.0
    %767 = vmatprep.subr.mxu0 0.0
    %768 = vmatpush1.msra.mxu0 0.0
    %769 = vmatprep.subr.mxu0 0.0
    %770 = vmatpush1.msra.mxu0 0.0
    %771 = vmatprep.subr.mxu0 0.0
    %772 = vmatpush1.msra.mxu0 0.0
    %773 = vmatprep.subr.mxu0 0.0
    %774 = vmatpush1.msra.mxu0 0.0
    %775 = vmatprep.subr.mxu0 0.0
    %776 = vmatpush1.msra.mxu0 0.0
    %777 = vmatprep.subr.mxu0 0.0
    %778 = vmatpush1.msra.mxu0 0.0
    %779 = vmatprep.subr.mxu0 0.0
    %780 = vmatpush1.msra.mxu0 0.0
    %781 = vmatprep.subr.mxu0 0.0
    %782 = vmatpush1.msra.mxu0 0.0
    %783 = vmatprep.subr.mxu0 0.0
    %784 = vmatpush1.msra.mxu0 0.0
    %785 = vmatprep.subr.mxu0 0.0
    %786 = vmatpush1.msra.mxu0 0.0
    %787 = vmatprep.subr.mxu0 0.0
    %788 = vmatpush1.msra.mxu0 0.0
    %789 = vmatprep.subr.mxu0 0.0
    %790 = vmatpush1.msra.mxu0 0.0
    %791 = vmatprep.mubr.f32.mxu0 0.0
    %792 = vmatmul.mubr.f32.gmra.mrb[0].mxu0 %v725
    %v793 = vpop.f32.mrb[0].mxu0
    %v794 = vadd.f32 %v722, %v793
    %v795 = vpop.f32.mrb[0].mxu0
    %796 = vdwg.mxu0
    %v798 = vrot.slane %v211, 1
    %v800 = vadd.f32 %v794, %v798
    %v801 = vtanh.pop %v800
    %v802 = vmul.f32 %v801, %v231
    %v803 = vsel %vm491, %v802, 0.0
    %804 = vadd.xlane.f32.xlu0 %v803
    %v805 = vpop.xlane.xlu0 %804
    %806 = vst.msk [vmem:[#allocation4 + $0x1] sm:$0x1] %vm495, %v805
    %v807 = vld [vmem:[#allocation4] sm:$0x3f]
    %v808 = vsel %vm239, %v807, -inf
    %809 = vmax.xlane.f32.xlu0 %v808
    %v810 = vpop.xlane.xlu0 %809
    %v811 = vrot.slane %v810, 4
    %v812 = vmax.f32 %v810, %v811
    %v813 = vrot.slane %v812, 2
    %v814 = vmax.f32 %v812, %v813
    %v815 = vrot.slane %v814, 1
    %v816 = vmax.f32 %v814, %v815
    %s817 = vtos %v816
    %v818 = vstv %s817
    %v819 = vsub.f32 %v807, %v818
    %v820 = vmul.f32 %v819, 1.442695
    %v821 = vpow.pop %v820
    %v822 = vsel %vm239, %v821, 0.0
    %823 = vadd.xlane.f32.xlu0 %v822
    %v824 = vpop.xlane.xlu0 %823
    %v825 = vrot.slane %v824, 4
    %v826 = vadd.f32 %v824, %v825
    %v827 = vrot.slane %v826, 2
    %v828 = vadd.f32 %v826, %v827
    %v829 = vrot.slane %v828, 1
    %v830 = vadd.f32 %v828, %v829
    %s831 = vtos %v830
    %v832 = vstv %s831
    %v833 = vrcp.pop %v832
    %v834 = vmul.f32 %v821, %v833
    %v835 = vld [vmem:[#allocation2] sm:$0x3f]
    %837 = vset.pattern.permute.xlu0 0
    %838 = vperm.xlu0 %837, %v834
    %v839 = vpop.permute.xlu0 %838
    %v841 = vmul.f32 %v839, %v835
    %v842 = vsel %vm532, %v841, 0.0
    %v843 = vrot.slane %v842, 4
    %v844 = vadd.f32 %v842, %v843
    %v845 = vrot.slane %v844, 2
    %v846 = vadd.f32 %v844, %v845
    %v847 = vrot.slane %v846, 1
    %v848 = vadd.f32 %v846, %v847
    %v849 = vld [vmem:[#allocation3] sm:$0x3f]
    %v850 = vmul.f32 %v839, %v849
    %v851 = vsel %vm532, %v850, 0.0
    %v852 = vrot.slane %v851, 4
    %v853 = vadd.f32 %v851, %v852
    %v854 = vrot.slane %v853, 2
    %v855 = vadd.f32 %v853, %v854
    %v856 = vrot.slane %v855, 1
    %v857 = vadd.f32 %v855, %v856
    %v858 = vrot.slane %v209, 2
    %v861 = vsel %vm241, %v848, 0
    %863 = vmatprep.subr.mxu0 0.0
    %864 = vmatpush1.msra.mxu0 %v219
    %865 = vmatprep.subr.mxu0 0.0
    %866 = vmatpush1.msra.mxu0 %v220
    %867 = vmatprep.subr.mxu0 0.0
    %868 = vmatpush1.msra.mxu0 %v221
    %869 = vmatprep.subr.mxu0 0.0
    %870 = vmatpush1.msra.mxu0 %v222
    %871 = vmatprep.subr.mxu0 0.0
    %872 = vmatpush1.msra.mxu0 0.0
    %873 = vmatprep.subr.mxu0 0.0
    %874 = vmatpush1.msra.mxu0 0.0
    %875 = vmatprep.subr.mxu0 0.0
    %876 = vmatpush1.msra.mxu0 0.0
    %877 = vmatprep.subr.mxu0 0.0
    %878 = vmatpush1.msra.mxu0 0.0
    %879 = vmatprep.subr.mxu0 0.0
    %880 = vmatpush1.msra.mxu0 0.0
    %881 = vmatprep.subr.mxu0 0.0
    %882 = vmatpush1.msra.mxu0 0.0
    %883 = vmatprep.subr.mxu0 0.0
    %884 = vmatpush1.msra.mxu0 0.0
    %885 = vmatprep.subr.mxu0 0.0
    %886 = vmatpush1.msra.mxu0 0.0
    %887 = vmatprep.subr.mxu0 0.0
    %888 = vmatpush1.msra.mxu0 0.0
    %889 = vmatprep.subr.mxu0 0.0
    %890 = vmatpush1.msra.mxu0 0.0
    %891 = vmatprep.subr.mxu0 0.0
    %892 = vmatpush1.msra.mxu0 0.0
    %893 = vmatprep.subr.mxu0 0.0
    %894 = vmatpush1.msra.mxu0 0.0
    %895 = vmatprep.subr.mxu0 0.0
    %896 = vmatpush1.msra.mxu0 0.0
    %897 = vmatprep.subr.mxu0 0.0
    %898 = vmatpush1.msra.mxu0 0.0
    %899 = vmatprep.subr.mxu0 0.0
    %900 = vmatpush1.msra.mxu0 0.0
    %901 = vmatprep.subr.mxu0 0.0
    %902 = vmatpush1.msra.mxu0 0.0
    %903 = vmatprep.subr.mxu0 0.0
    %904 = vmatpush1.msra.mxu0 0.0
    %905 = vmatprep.subr.mxu0 0.0
    %906 = vmatpush1.msra.mxu0 0.0
    %907 = vmatprep.subr.mxu0 0.0
    %908 = vmatpush1.msra.mxu0 0.0
    %909 = vmatprep.subr.mxu0 0.0
    %910 = vmatpush1.msra.mxu0 0.0
    %911 = vmatprep.subr.mxu0 0.0
    %912 = vmatpush1.msra.mxu0 0.0
    %913 = vmatprep.subr.mxu0 0.0
    %914 = vmatpush1.msra.mxu0 0.0
    %915 = vmatprep.subr.mxu0 0.0
    %916 = vmatpush1.msra.mxu0 0.0
    %917 = vmatprep.subr.mxu0 0.0
    %918 = vmatpush1.msra.mxu0 0.0
    %919 = vmatprep.subr.mxu0 0.0
    %920 = vmatpush1.msra.mxu0 0.0
    %921 = vmatprep.subr.mxu0 0.0
    %922 = vmatpush1.msra.mxu0 0.0
    %923 = vmatprep.subr.mxu0 0.0
    %924 = vmatpush1.msra.mxu0 0.0
    %925 = vmatprep.subr.mxu0 0.0
    %926 = vmatpush1.msra.mxu0 0.0
    %927 = vmatprep.mubr.f32.mxu0 0.0
    %928 = vmatmul.mubr.f32.gmra.mrb[0].mxu0 %v861
    %v929 = vpop.f32.mrb[0].mxu0
    %v930 = vadd.f32 %v858, %v929
    %v931 = vpop.f32.mrb[0].mxu0
    %932 = vdwg.mxu0
    %v933 = vxor.u32 %v930, 2147483648
    %v934 = vmul.f32 %v933, 1.442695
    %v935 = vpow.pop %v934
    %v936 = vadd.f32 %v935, 1.0
    %v937 = vrcp.pop %v936
    %v938 = vmul.f32 1.0, %v937
    %v939 = vtanh.pop %v930
    %v940 = vmul.f32 %v938, %v857
    %942 = vrot.lane.b32.xlu0 %v939, 96
    %v943 = vpop.permute.xlu0 %942
    %v945 = vmul.f32 %v938, %v943
    %947 = vrot.lane.b32.xlu0 %v945, 64
    %v948 = vpop.permute.xlu0 %947
    %v950 = vadd.f32 %v940, %v948
    %v951 = vtanh.pop %v950
    %953 = vrot.lane.b32.xlu0 %v951, 32
    %v954 = vpop.permute.xlu0 %953
    %v956 = vmul.f32 %v938, %v954
    %958 = vrot.lane.b32.xlu0 %v956, 96
    %v959 = vpop.permute.xlu0 %958
    %961 = vst.msk [vmem:[#allocation2 + $0x2] sm:$0x1] %vm343, %v959
    %962 = vst.msk [vmem:[#allocation3 + $0x2] sm:$0x1] %vm343, %v950
    %963 = vmatprep.subr.mxu0 0.0
    %964 = vmatpush1.msra.mxu0 %v227
    %965 = vmatprep.subr.mxu0 0.0
    %966 = vmatpush1.msra.mxu0 %v228
    %967 = vmatprep.subr.mxu0 0.0
    %968 = vmatpush1.msra.mxu0 %v229
    %969 = vmatprep.subr.mxu0 0.0
    %970 = vmatpush1.msra.mxu0 %v230
    %971 = vmatprep.subr.mxu0 0.0
    %972 = vmatpush1.msra.mxu0 0.0
    %973 = vmatprep.subr.mxu0 0.0
    %974 = vmatpush1.msra.mxu0 0.0
    %975 = vmatprep.subr.mxu0 0.0
    %976 = vmatpush1.msra.mxu0 0.0
    %977 = vmatprep.subr.mxu0 0.0
    %978 = vmatpush1.msra.mxu0 0.0
    %979 = vmatprep.subr.mxu0 0.0
    %980 = vmatpush1.msra.mxu0 0.0
    %981 = vmatprep.subr.mxu0 0.0
    %982 = vmatpush1.msra.mxu0 0.0
    %983 = vmatprep.subr.mxu0 0.0
    %984 = vmatpush1.msra.mxu0 0.0
    %985 = vmatprep.subr.mxu0 0.0
    %986 = vmatpush1.msra.mxu0 0.0
    %987 = vmatprep.subr.mxu0 0.0
    %988 = vmatpush1.msra.mxu0 0.0
    %989 = vmatprep.subr.mxu0 0.0
    %990 = vmatpush1.msra.mxu0 0.0
    %991 = vmatprep.subr.mxu0 0.0
    %992 = vmatpush1.msra.mxu0 0.0
    %993 = vmatprep.subr.mxu0 0.0
    %994 = vmatpush1.msra.mxu0 0.0
    %995 = vmatprep.subr.mxu0 0.0
    %996 = vmatpush1.msra.mxu0 0.0
    %997 = vmatprep.subr.mxu0 0.0
    %998 = vmatpush1.msra.mxu0 0.0
    %999 = vmatprep.subr.mxu0 0.0
    %1000 = vmatpush1.msra.mxu0 0.0
    %1001 = vmatprep.subr.mxu0 0.0
    %1002 = vmatpush1.msra.mxu0 0.0
    %1003 = vmatprep.subr.mxu0 0.0
    %1004 = vmatpush1.msra.mxu0 0.0
    %1005 = vmatprep.subr.mxu0 0.0
    %1006 = vmatpush1.msra.mxu0 0.0
    %1007 = vmatprep.subr.mxu0 0.0
    %1008 = vmatpush1.msra.mxu0 0.0
    %1009 = vmatprep.subr.mxu0 0.0
    %1010 = vmatpush1.msra.mxu0 0.0
    %1011 = vmatprep.subr.mxu0 0.0
    %1012 = vmatpush1.msra.mxu0 0.0
    %1013 = vmatprep.subr.mxu0 0.0
    %1014 = vmatpush1.msra.mxu0 0.0
    %1015 = vmatprep.subr.mxu0 0.0
    %1016 = vmatpush1.msra.mxu0 0.0
    %1017 = vmatprep.subr.mxu0 0.0
    %1018 = vmatpush1.msra.mxu0 0.0
    %1019 = vmatprep.subr.mxu0 0.0
    %1020 = vmatpush1.msra.mxu0 0.0
    %1021 = vmatprep.subr.mxu0 0.0
    %1022 = vmatpush1.msra.mxu0 0.0
    %1023 = vmatprep.subr.mxu0 0.0
    %1024 = vmatpush1.msra.mxu0 0.0
    %1025 = vmatprep.subr.mxu0 0.0
    %1026 = vmatpush1.msra.mxu0 0.0
    %1027 = vmatprep.mubr.f32.mxu0 0.0
    %1028 = vmatmul.mubr.f32.gmra.mrb[0].mxu0 %v861
    %v1029 = vpop.f32.mrb[0].mxu0
    %v1030 = vadd.f32 0.0, %v1029
    %v1031 = vpop.f32.mrb[0].mxu0
    %1032 = vdwg.mxu0
    %v1033 = vsel %vm241, %v959, 0
    %1035 = vmatprep.subr.mxu0 0.0
    %1036 = vmatpush1.msra.mxu0 %v223
    %1037 = vmatprep.subr.mxu0 0.0
    %1038 = vmatpush1.msra.mxu0 %v224
    %1039 = vmatprep.subr.mxu0 0.0
    %1040 = vmatpush1.msra.mxu0 %v225
    %1041 = vmatprep.subr.mxu0 0.0
    %1042 = vmatpush1.msra.mxu0 %v226
    %1043 = vmatprep.subr.mxu0 0.0
    %1044 = vmatpush1.msra.mxu0 0.0
    %1045 = vmatprep.subr.mxu0 0.0
    %1046 = vmatpush1.msra.mxu0 0.0
    %1047 = vmatprep.subr.mxu0 0.0
    %1048 = vmatpush1.msra.mxu0 0.0
    %1049 = vmatprep.subr.mxu0 0.0
    %1050 = vmatpush1.msra.mxu0 0.0
    %1051 = vmatprep.subr.mxu0 0.0
    %1052 = vmatpush1.msra.mxu0 0.0
    %1053 = vmatprep.subr.mxu0 0.0
    %1054 = vmatpush1.msra.mxu0 0.0
    %1055 = vmatprep.subr.mxu0 0.0
    %1056 = vmatpush1.msra.mxu0 0.0
    %1057 = vmatprep.subr.mxu0 0.0
    %1058 = vmatpush1.msra.mxu0 0.0
    %1059 = vmatprep.subr.mxu0 0.0
    %1060 = vmatpush1.msra.mxu0 0.0
    %1061 = vmatprep.subr.mxu0 0.0
    %1062 = vmatpush1.msra.mxu0 0.0
    %1063 = vmatprep.subr.mxu0 0.0
    %1064 = vmatpush1.msra.mxu0 0.0
    %1065 = vmatprep.subr.mxu0 0.0
    %1066 = vmatpush1.msra.mxu0 0.0
    %1067 = vmatprep.subr.mxu0 0.0
    %1068 = vmatpush1.msra.mxu0 0.0
    %1069 = vmatprep.subr.mxu0 0.0
    %1070 = vmatpush1.msra.mxu0 0.0
    %1071 = vmatprep.subr.mxu0 0.0
    %1072 = vmatpush1.msra.mxu0 0.0
    %1073 = vmatprep.subr.mxu0 0.0
    %1074 = vmatpush1.msra.mxu0 0.0
    %1075 = vmatprep.subr.mxu0 0.0
    %1076 = vmatpush1.msra.mxu0 0.0
    %1077 = vmatprep.subr.mxu0 0.0
    %1078 = vmatpush1.msra.mxu0 0.0
    %1079 = vmatprep.subr.mxu0 0.0
    %1080 = vmatpush1.msra.mxu0 0.0
    %1081 = vmatprep.subr.mxu0 0.0
    %1082 = vmatpush1.msra.mxu0 0.0
    %1083 = vmatprep.subr.mxu0 0.0
    %1084 = vmatpush1.msra.mxu0 0.0
    %1085 = vmatprep.subr.mxu0 0.0
    %1086 = vmatpush1.msra.mxu0 0.0
    %1087 = vmatprep.subr.mxu0 0.0
    %1088 = vmatpush1.msra.mxu0 0.0
    %1089 = vmatprep.subr.mxu0 0.0
    %1090 = vmatpush1.msra.mxu0 0.0
    %1091 = vmatprep.subr.mxu0 0.0
    %1092 = vmatpush1.msra.mxu0 0.0
    %1093 = vmatprep.subr.mxu0 0.0
    %1094 = vmatpush1.msra.mxu0 0.0
    %1095 = vmatprep.subr.mxu0 0.0
    %1096 = vmatpush1.msra.mxu0 0.0
    %1097 = vmatprep.subr.mxu0 0.0
    %1098 = vmatpush1.msra.mxu0 0.0
    %1099 = vmatprep.mubr.f32.mxu0 0.0
    %1100 = vmatmul.mubr.f32.gmra.mrb[0].mxu0 %v1033
    %v1101 = vpop.f32.mrb[0].mxu0
    %v1102 = vadd.f32 %v1030, %v1101
    %v1103 = vpop.f32.mrb[0].mxu0
    %1104 = vdwg.mxu0
    %v1105 = vrot.slane %v211, 2
    %v1107 = vadd.f32 %v1102, %v1105
    %v1108 = vtanh.pop %v1107
    %v1109 = vmul.f32 %v1108, %v231
    %v1110 = vsel %vm491, %v1109, 0.0
    %1111 = vadd.xlane.f32.xlu0 %v1110
    %v1112 = vpop.xlane.xlu0 %1111
    %1113 = vst.msk [vmem:[#allocation4 + $0x2] sm:$0x1] %vm495, %v1112
    %v1114 = vld [vmem:[#allocation4] sm:$0x3f]
    %v1115 = vsel %vm239, %v1114, -inf
    %1116 = vmax.xlane.f32.xlu0 %v1115
    %v1117 = vpop.xlane.xlu0 %1116
    %v1118 = vrot.slane %v1117, 4
    %v1119 = vmax.f32 %v1117, %v1118
    %v1120 = vrot.slane %v1119, 2
    %v1121 = vmax.f32 %v1119, %v1120
    %v1122 = vrot.slane %v1121, 1
    %v1123 = vmax.f32 %v1121, %v1122
    %s1124 = vtos %v1123
    %v1125 = vstv %s1124
    %v1126 = vsub.f32 %v1114, %v1125
    %v1127 = vmul.f32 %v1126, 1.442695
    %v1128 = vpow.pop %v1127
    %v1129 = vsel %vm239, %v1128, 0.0
    %1130 = vadd.xlane.f32.xlu0 %v1129
    %v1131 = vpop.xlane.xlu0 %1130
    %v1132 = vrot.slane %v1131, 4
    %v1133 = vadd.f32 %v1131, %v1132
    %v1134 = vrot.slane %v1133, 2
    %v1135 = vadd.f32 %v1133, %v1134
    %v1136 = vrot.slane %v1135, 1
    %v1137 = vadd.f32 %v1135, %v1136
    %s1138 = vtos %v1137
    %v1139 = vstv %s1138
    %v1140 = vrcp.pop %v1139
    %v1141 = vmul.f32 %v1128, %v1140
    %v1142 = vld [vmem:[#allocation2] sm:$0x3f]
    %1144 = vset.pattern.permute.xlu0 0
    %1145 = vperm.xlu0 %1144, %v1141
    %v1146 = vpop.permute.xlu0 %1145
    %v1148 = vmul.f32 %v1146, %v1142
    %v1149 = vsel %vm532, %v1148, 0.0
    %v1150 = vrot.slane %v1149, 4
    %v1151 = vadd.f32 %v1149, %v1150
    %v1152 = vrot.slane %v1151, 2
    %v1153 = vadd.f32 %v1151, %v1152
    %v1154 = vrot.slane %v1153, 1
    %v1155 = vadd.f32 %v1153, %v1154
    %v1156 = vld [vmem:[#allocation3] sm:$0x3f]
    %v1157 = vmul.f32 %v1146, %v1156
    %v1158 = vsel %vm532, %v1157, 0.0
    %v1159 = vrot.slane %v1158, 4
    %v1160 = vadd.f32 %v1158, %v1159
    %v1161 = vrot.slane %v1160, 2
    %v1162 = vadd.f32 %v1160, %v1161
    %v1163 = vrot.slane %v1162, 1
    %v1164 = vadd.f32 %v1162, %v1163
    %v1165 = vrot.slane %v209, 3
    %v1168 = vsel %vm241, %v1155, 0
    %1170 = vmatprep.subr.mxu0 0.0
    %1171 = vmatpush1.msra.mxu0 %v219
    %1172 = vmatprep.subr.mxu0 0.0
    %1173 = vmatpush1.msra.mxu0 %v220
    %1174 = vmatprep.subr.mxu0 0.0
    %1175 = vmatpush1.msra.mxu0 %v221
    %1176 = vmatprep.subr.mxu0 0.0
    %1177 = vmatpush1.msra.mxu0 %v222
    %1178 = vmatprep.subr.mxu0 0.0
    %1179 = vmatpush1.msra.mxu0 0.0
    %1180 = vmatprep.subr.mxu0 0.0
    %1181 = vmatpush1.msra.mxu0 0.0
    %1182 = vmatprep.subr.mxu0 0.0
    %1183 = vmatpush1.msra.mxu0 0.0
    %1184 = vmatprep.subr.mxu0 0.0
    %1185 = vmatpush1.msra.mxu0 0.0
    %1186 = vmatprep.subr.mxu0 0.0
    %1187 = vmatpush1.msra.mxu0 0.0
    %1188 = vmatprep.subr.mxu0 0.0
    %1189 = vmatpush1.msra.mxu0 0.0
    %1190 = vmatprep.subr.mxu0 0.0
    %1191 = vmatpush1.msra.mxu0 0.0
    %1192 = vmatprep.subr.mxu0 0.0
    %1193 = vmatpush1.msra.mxu0 0.0
    %1194 = vmatprep.subr.mxu0 0.0
    %1195 = vmatpush1.msra.mxu0 0.0
    %1196 = vmatprep.subr.mxu0 0.0
    %1197 = vmatpush1.msra.mxu0 0.0
    %1198 = vmatprep.subr.mxu0 0.0
    %1199 = vmatpush1.msra.mxu0 0.0
    %1200 = vmatprep.subr.mxu0 0.0
    %1201 = vmatpush1.msra.mxu0 0.0
    %1202 = vmatprep.subr.mxu0 0.0
    %1203 = vmatpush1.msra.mxu0 0.0
    %1204 = vmatprep.subr.mxu0 0.0
    %1205 = vmatpush1.msra.mxu0 0.0
    %1206 = vmatprep.subr.mxu0 0.0
    %1207 = vmatpush1.msra.mxu0 0.0
    %1208 = vmatprep.subr.mxu0 0.0
    %1209 = vmatpush1.msra.mxu0 0.0
    %1210 = vmatprep.subr.mxu0 0.0
    %1211 = vmatpush1.msra.mxu0 0.0
    %1212 = vmatprep.subr.mxu0 0.0
    %1213 = vmatpush1.msra.mxu0 0.0
    %1214 = vmatprep.subr.mxu0 0.0
    %1215 = vmatpush1.msra.mxu0 0.0
    %1216 = vmatprep.subr.mxu0 0.0
    %1217 = vmatpush1.msra.mxu0 0.0
    %1218 = vmatprep.subr.mxu0 0.0
    %1219 = vmatpush1.msra.mxu0 0.0
    %1220 = vmatprep.subr.mxu0 0.0
    %1221 = vmatpush1.msra.mxu0 0.0
    %1222 = vmatprep.subr.mxu0 0.0
    %1223 = vmatpush1.msra.mxu0 0.0
    %1224 = vmatprep.subr.mxu0 0.0
    %1225 = vmatpush1.msra.mxu0 0.0
    %1226 = vmatprep.subr.mxu0 0.0
    %1227 = vmatpush1.msra.mxu0 0.0
    %1228 = vmatprep.subr.mxu0 0.0
    %1229 = vmatpush1.msra.mxu0 0.0
    %1230 = vmatprep.subr.mxu0 0.0
    %1231 = vmatpush1.msra.mxu0 0.0
    %1232 = vmatprep.subr.mxu0 0.0
    %1233 = vmatpush1.msra.mxu0 0.0
    %1234 = vmatprep.mubr.f32.mxu0 0.0
    %1235 = vmatmul.mubr.f32.gmra.mrb[0].mxu0 %v1168
    %v1236 = vpop.f32.mrb[0].mxu0
    %v1237 = vadd.f32 %v1165, %v1236
    %v1238 = vpop.f32.mrb[0].mxu0
    %1239 = vdwg.mxu0
    %v1240 = vxor.u32 %v1237, 2147483648
    %v1241 = vmul.f32 %v1240, 1.442695
    %v1242 = vpow.pop %v1241
    %v1243 = vadd.f32 %v1242, 1.0
    %v1244 = vrcp.pop %v1243
    %v1245 = vmul.f32 1.0, %v1244
    %v1246 = vtanh.pop %v1237
    %v1247 = vmul.f32 %v1245, %v1164
    %1249 = vrot.lane.b32.xlu0 %v1246, 96
    %v1250 = vpop.permute.xlu0 %1249
    %v1252 = vmul.f32 %v1245, %v1250
    %1254 = vrot.lane.b32.xlu0 %v1252, 64
    %v1255 = vpop.permute.xlu0 %1254
    %v1257 = vadd.f32 %v1247, %v1255
    %v1258 = vtanh.pop %v1257
    %1260 = vrot.lane.b32.xlu0 %v1258, 32
    %v1261 = vpop.permute.xlu0 %1260
    %v1263 = vmul.f32 %v1245, %v1261
    %1265 = vrot.lane.b32.xlu0 %v1263, 96
    %v1266 = vpop.permute.xlu0 %1265
    %1268 = vst.msk [vmem:[#allocation2 + $0x3] sm:$0x1] %vm343, %v1266
    %1269 = vst.msk [vmem:[#allocation3 + $0x3] sm:$0x1] %vm343, %v1257
    %1270 = vmatprep.subr.mxu0 0.0
    %1271 = vmatpush1.msra.mxu0 %v227
    %1272 = vmatprep.subr.mxu0 0.0
    %1273 = vmatpush1.msra.mxu0 %v228
    %1274 = vmatprep.subr.mxu0 0.0
    %1275 = vmatpush1.msra.mxu0 %v229
    %1276 = vmatprep.subr.mxu0 0.0
    %1277 = vmatpush1.msra.mxu0 %v230
    %1278 = vmatprep.subr.mxu0 0.0
    %1279 = vmatpush1.msra.mxu0 0.0
    %1280 = vmatprep.subr.mxu0 0.0
    %1281 = vmatpush1.msra.mxu0 0.0
    %1282 = vmatprep.subr.mxu0 0.0
    %1283 = vmatpush1.msra.mxu0 0.0
    %1284 = vmatprep.subr.mxu0 0.0
    %1285 = vmatpush1.msra.mxu0 0.0
    %1286 = vmatprep.subr.mxu0 0.0
    %1287 = vmatpush1.msra.mxu0 0.0
    %1288 = vmatprep.subr.mxu0 0.0
    %1289 = vmatpush1.msra.mxu0 0.0
    %1290 = vmatprep.subr.mxu0 0.0
    %1291 = vmatpush1.msra.mxu0 0.0
    %1292 = vmatprep.subr.mxu0 0.0
    %1293 = vmatpush1.msra.mxu0 0.0
    %1294 = vmatprep.subr.mxu0 0.0
    %1295 = vmatpush1.msra.mxu0 0.0
    %1296 = vmatprep.subr.mxu0 0.0
    %1297 = vmatpush1.msra.mxu0 0.0
    %1298 = vmatprep.subr.mxu0 0.0
    %1299 = vmatpush1.msra.mxu0 0.0
    %1300 = vmatprep.subr.mxu0 0.0
    %1301 = vmatpush1.msra.mxu0 0.0
    %1302 = vmatprep.subr.mxu0 0.0
    %1303 = vmatpush1.msra.mxu0 0.0
    %1304 = vmatprep.subr.mxu0 0.0
    %1305 = vmatpush1.msra.mxu0 0.0
    %1306 = vmatprep.subr.mxu0 0.0
    %1307 = vmatpush1.msra.mxu0 0.0
    %1308 = vmatprep.subr.mxu0 0.0
    %1309 = vmatpush1.msra.mxu0 0.0
    %1310 = vmatprep.subr.mxu0 0.0
    %1311 = vmatpush1.msra.mxu0 0.0
    %1312 = vmatprep.subr.mxu0 0.0
    %1313 = vmatpush1.msra.mxu0 0.0
    %1314 = vmatprep.subr.mxu0 0.0
    %1315 = vmatpush1.msra.mxu0 0.0
    %1316 = vmatprep.subr.mxu0 0.0
    %1317 = vmatpush1.msra.mxu0 0.0
    %1318 = vmatprep.subr.mxu0 0.0
    %1319 = vmatpush1.msra.mxu0 0.0
    %1320 = vmatprep.subr.mxu0 0.0
    %1321 = vmatpush1.msra.mxu0 0.0
    %1322 = vmatprep.subr.mxu0 0.0
    %1323 = vmatpush1.msra.mxu0 0.0
    %1324 = vmatprep.subr.mxu0 0.0
    %1325 = vmatpush1.msra.mxu0 0.0
    %1326 = vmatprep.subr.mxu0 0.0
    %1327 = vmatpush1.msra.mxu0 0.0
    %1328 = vmatprep.subr.mxu0 0.0
    %1329 = vmatpush1.msra.mxu0 0.0
    %1330 = vmatprep.subr.mxu0 0.0
    %1331 = vmatpush1.msra.mxu0 0.0
    %1332 = vmatprep.subr.mxu0 0.0
    %1333 = vmatpush1.msra.mxu0 0.0
    %1334 = vmatprep.mubr.f32.mxu0 0.0
    %1335 = vmatmul.mubr.f32.gmra.mrb[0].mxu0 %v1168
    %v1336 = vpop.f32.mrb[0].mxu0
    %v1337 = vadd.f32 0.0, %v1336
    %v1338 = vpop.f32.mrb[0].mxu0
    %1339 = vdwg.mxu0
    %v1340 = vsel %vm241, %v1266, 0
    %1342 = vmatprep.subr.mxu0 0.0
    %1343 = vmatpush1.msra.mxu0 %v223
    %1344 = vmatprep.subr.mxu0 0.0
    %1345 = vmatpush1.msra.mxu0 %v224
    %1346 = vmatprep.subr.mxu0 0.0
    %1347 = vmatpush1.msra.mxu0 %v225
    %1348 = vmatprep.subr.mxu0 0.0
    %1349 = vmatpush1.msra.mxu0 %v226
    %1350 = vmatprep.subr.mxu0 0.0
    %1351 = vmatpush1.msra.mxu0 0.0
    %1352 = vmatprep.subr.mxu0 0.0
    %1353 = vmatpush1.msra.mxu0 0.0
    %1354 = vmatprep.subr.mxu0 0.0
    %1355 = vmatpush1.msra.mxu0 0.0
    %1356 = vmatprep.subr.mxu0 0.0
    %1357 = vmatpush1.msra.mxu0 0.0
    %1358 = vmatprep.subr.mxu0 0.0
    %1359 = vmatpush1.msra.mxu0 0.0
    %1360 = vmatprep.subr.mxu0 0.0
    %1361 = vmatpush1.msra.mxu0 0.0
    %1362 = vmatprep.subr.mxu0 0.0
    %1363 = vmatpush1.msra.mxu0 0.0
    %1364 = vmatprep.subr.mxu0 0.0
    %1365 = vmatpush1.msra.mxu0 0.0
    %1366 = vmatprep.subr.mxu0 0.0
    %1367 = vmatpush1.msra.mxu0 0.0
    %1368 = vmatprep.subr.mxu0 0.0
    %1369 = vmatpush1.msra.mxu0 0.0
    %1370 = vmatprep.subr.mxu0 0.0
    %1371 = vmatpush1.msra.mxu0 0.0
    %1372 = vmatprep.subr.mxu0 0.0
    %1373 = vmatpush1.msra.mxu0 0.0
    %1374 = vmatprep.subr.mxu0 0.0
    %1375 = vmatpush1.msra.mxu0 0.0
    %1376 = vmatprep.subr.mxu0 0.0
    %1377 = vmatpush1.msra.mxu0 0.0
    %1378 = vmatprep.subr.mxu0 0.0
    %1379 = vmatpush1.msra.mxu0 0.0
    %1380 = vmatprep.subr.mxu0 0.0
    %1381 = vmatpush1.msra.mxu0 0.0
    %1382 = vmatprep.subr.mxu0 0.0
    %1383 = vmatpush1.msra.mxu0 0.0
    %1384 = vmatprep.subr.mxu0 0.0
    %1385 = vmatpush1.msra.mxu0 0.0
    %1386 = vmatprep.subr.mxu0 0.0
    %1387 = vmatpush1.msra.mxu0 0.0
    %1388 = vmatprep.subr.mxu0 0.0
    %1389 = vmatpush1.msra.mxu0 0.0
    %1390 = vmatprep.subr.mxu0 0.0
    %1391 = vmatpush1.msra.mxu0 0.0
    %1392 = vmatprep.subr.mxu0 0.0
    %1393 = vmatpush1.msra.mxu0 0.0
    %1394 = vmatprep.subr.mxu0 0.0
    %1395 = vmatpush1.msra.mxu0 0.0
    %1396 = vmatprep.subr.mxu0 0.0
    %1397 = vmatpush1.msra.mxu0 0.0
    %1398 = vmatprep.subr.mxu0 0.0
    %1399 = vmatpush1.msra.mxu0 0.0
    %1400 = vmatprep.subr.mxu0 0.0
    %1401 = vmatpush1.msra.mxu0 0.0
    %1402 = vmatprep.subr.mxu0 0.0
    %1403 = vmatpush1.msra.mxu0 0.0
    %1404 = vmatprep.subr.mxu0 0.0
    %1405 = vmatpush1.msra.mxu0 0.0
    %1406 = vmatprep.mubr.f32.mxu0 0.0
    %1407 = vmatmul.mubr.f32.gmra.mrb[0].mxu0 %v1340
    %v1408 = vpop.f32.mrb[0].mxu0
    %v1409 = vadd.f32 %v1337, %v1408
    %v1410 = vpop.f32.mrb[0].mxu0
    %1411 = vdwg.mxu0
    %v1412 = vrot.slane %v211, 3
    %v1414 = vadd.f32 %v1409, %v1412
    %v1415 = vtanh.pop %v1414
    %v1416 = vmul.f32 %v1415, %v231
    %v1417 = vsel %vm491, %v1416, 0.0
    %1418 = vadd.xlane.f32.xlu0 %v1417
    %v1419 = vpop.xlane.xlu0 %1418
    %1420 = vst.msk [vmem:[#allocation4 + $0x3] sm:$0x1] %vm495, %v1419
    %v1421 = vld [vmem:[#allocation4] sm:$0x3f]
    %v1422 = vsel %vm239, %v1421, -inf
    %1423 = vmax.xlane.f32.xlu0 %v1422
    %v1424 = vpop.xlane.xlu0 %1423
    %v1425 = vrot.slane %v1424, 4
    %v1426 = vmax.f32 %v1424, %v1425
    %v1427 = vrot.slane %v1426, 2
    %v1428 = vmax.f32 %v1426, %v1427
    %v1429 = vrot.slane %v1428, 1
    %v1430 = vmax.f32 %v1428, %v1429
    %s1431 = vtos %v1430
    %v1432 = vstv %s1431
    %v1433 = vsub.f32 %v1421, %v1432
    %v1434 = vmul.f32 %v1433, 1.442695
    %v1435 = vpow.pop %v1434
    %v1436 = vsel %vm239, %v1435, 0.0
    %1437 = vadd.xlane.f32.xlu0 %v1436
    %v1438 = vpop.xlane.xlu0 %1437
    %v1439 = vrot.slane %v1438, 4
    %v1440 = vadd.f32 %v1438, %v1439
    %v1441 = vrot.slane %v1440, 2
    %v1442 = vadd.f32 %v1440, %v1441
    %v1443 = vrot.slane %v1442, 1
    %v1444 = vadd.f32 %v1442, %v1443
    %s1445 = vtos %v1444
    %v1446 = vstv %s1445
    %v1447 = vrcp.pop %v1446
    %v1448 = vmul.f32 %v1435, %v1447
    %v1449 = vld [vmem:[#allocation2] sm:$0x3f]
    %1451 = vset.pattern.permute.xlu0 0
    %1452 = vperm.xlu0 %1451, %v1448
    %v1453 = vpop.permute.xlu0 %1452
    %v1455 = vmul.f32 %v1453, %v1449
    %v1456 = vsel %vm532, %v1455, 0.0
    %v1457 = vrot.slane %v1456, 4
    %v1458 = vadd.f32 %v1456, %v1457
    %v1459 = vrot.slane %v1458, 2
    %v1460 = vadd.f32 %v1458, %v1459
    %v1461 = vrot.slane %v1460, 1
    %v1462 = vadd.f32 %v1460, %v1461
    %v1463 = vld [vmem:[#allocation3] sm:$0x3f]
    %v1464 = vmul.f32 %v1453, %v1463
    %v1465 = vsel %vm532, %v1464, 0.0
    %v1466 = vrot.slane %v1465, 4
    %v1467 = vadd.f32 %v1465, %v1466
    %v1468 = vrot.slane %v1467, 2
    %v1469 = vadd.f32 %v1467, %v1468
    %v1470 = vrot.slane %v1469, 1
    %v1471 = vadd.f32 %v1469, %v1470
    %v1472 = vrot.slane %v209, 4
    %v1475 = vsel %vm241, %v1462, 0
    %1477 = vmatprep.subr.mxu0 0.0
    %1478 = vmatpush1.msra.mxu0 %v219
    %1479 = vmatprep.subr.mxu0 0.0
    %1480 = vmatpush1.msra.mxu0 %v220
    %1481 = vmatprep.subr.mxu0 0.0
    %1482 = vmatpush1.msra.mxu0 %v221
    %1483 = vmatprep.subr.mxu0 0.0
    %1484 = vmatpush1.msra.mxu0 %v222
    %1485 = vmatprep.subr.mxu0 0.0
    %1486 = vmatpush1.msra.mxu0 0.0
    %1487 = vmatprep.subr.mxu0 0.0
    %1488 = vmatpush1.msra.mxu0 0.0
    %1489 = vmatprep.subr.mxu0 0.0
    %1490 = vmatpush1.msra.mxu0 0.0
    %1491 = vmatprep.subr.mxu0 0.0
    %1492 = vmatpush1.msra.mxu0 0.0
    %1493 = vmatprep.subr.mxu0 0.0
    %1494 = vmatpush1.msra.mxu0 0.0
    %1495 = vmatprep.subr.mxu0 0.0
    %1496 = vmatpush1.msra.mxu0 0.0
    %1497 = vmatprep.subr.mxu0 0.0
    %1498 = vmatpush1.msra.mxu0 0.0
    %1499 = vmatprep.subr.mxu0 0.0
    %1500 = vmatpush1.msra.mxu0 0.0
    %1501 = vmatprep.subr.mxu0 0.0
    %1502 = vmatpush1.msra.mxu0 0.0
    %1503 = vmatprep.subr.mxu0 0.0
    %1504 = vmatpush1.msra.mxu0 0.0
    %1505 = vmatprep.subr.mxu0 0.0
    %1506 = vmatpush1.msra.mxu0 0.0
    %1507 = vmatprep.subr.mxu0 0.0
    %1508 = vmatpush1.msra.mxu0 0.0
    %1509 = vmatprep.subr.mxu0 0.0
    %1510 = vmatpush1.msra.mxu0 0.0
    %1511 = vmatprep.subr.mxu0 0.0
    %1512 = vmatpush1.msra.mxu0 0.0
    %1513 = vmatprep.subr.mxu0 0.0
    %1514 = vmatpush1.msra.mxu0 0.0
    %1515 = vmatprep.subr.mxu0 0.0
    %1516 = vmatpush1.msra.mxu0 0.0
    %1517 = vmatprep.subr.mxu0 0.0
    %1518 = vmatpush1.msra.mxu0 0.0
    %1519 = vmatprep.subr.mxu0 0.0
    %1520 = vmatpush1.msra.mxu0 0.0
    %1521 = vmatprep.subr.mxu0 0.0
    %1522 = vmatpush1.msra.mxu0 0.0
    %1523 = vmatprep.subr.mxu0 0.0
    %1524 = vmatpush1.msra.mxu0 0.0
    %1525 = vmatprep.subr.mxu0 0.0
    %1526 = vmatpush1.msra.mxu0 0.0
    %1527 = vmatprep.subr.mxu0 0.0
    %1528 = vmatpush1.msra.mxu0 0.0
    %1529 = vmatprep.subr.mxu0 0.0
    %1530 = vmatpush1.msra.mxu0 0.0
    %1531 = vmatprep.subr.mxu0 0.0
    %1532 = vmatpush1.msra.mxu0 0.0
    %1533 = vmatprep.subr.mxu0 0.0
    %1534 = vmatpush1.msra.mxu0 0.0
    %1535 = vmatprep.subr.mxu0 0.0
    %1536 = vmatpush1.msra.mxu0 0.0
    %1537 = vmatprep.subr.mxu0 0.0
    %1538 = vmatpush1.msra.mxu0 0.0
    %1539 = vmatprep.subr.mxu0 0.0
    %1540 = vmatpush1.msra.mxu0 0.0
    %1541 = vmatprep.mubr.f32.mxu0 0.0
    %1542 = vmatmul.mubr.f32.gmra.mrb[0].mxu0 %v1475
    %v1543 = vpop.f32.mrb[0].mxu0
    %v1544 = vadd.f32 %v1472, %v1543
    %v1545 = vpop.f32.mrb[0].mxu0
    %1546 = vdwg.mxu0
    %v1547 = vxor.u32 %v1544, 2147483648
    %v1548 = vmul.f32 %v1547, 1.442695
    %v1549 = vpow.pop %v1548
    %v1550 = vadd.f32 %v1549, 1.0
    %v1551 = vrcp.pop %v1550
    %v1552 = vmul.f32 1.0, %v1551
    %v1553 = vtanh.pop %v1544
    %v1554 = vmul.f32 %v1552, %v1471
    %1556 = vrot.lane.b32.xlu0 %v1553, 96
    %v1557 = vpop.permute.xlu0 %1556
    %v1559 = vmul.f32 %v1552, %v1557
    %1561 = vrot.lane.b32.xlu0 %v1559, 64
    %v1562 = vpop.permute.xlu0 %1561
    %v1564 = vadd.f32 %v1554, %v1562
    %v1565 = vtanh.pop %v1564
    %1567 = vrot.lane.b32.xlu0 %v1565, 32
    %v1568 = vpop.permute.xlu0 %1567
    %v1570 = vmul.f32 %v1552, %v1568
    %1572 = vrot.lane.b32.xlu0 %v1570, 96
    %v1573 = vpop.permute.xlu0 %1572
    %1575 = vst.msk [vmem:[#allocation2 + $0x4] sm:$0x1] %vm343, %v1573
    %1576 = vst.msk [vmem:[#allocation3 + $0x4] sm:$0x1] %vm343, %v1564
    %1577 = vmatprep.subr.mxu0 0.0
    %1578 = vmatpush1.msra.mxu0 %v227
    %1579 = vmatprep.subr.mxu0 0.0
    %1580 = vmatpush1.msra.mxu0 %v228
    %1581 = vmatprep.subr.mxu0 0.0
    %1582 = vmatpush1.msra.mxu0 %v229
    %1583 = vmatprep.subr.mxu0 0.0
    %1584 = vmatpush1.msra.mxu0 %v230
    %1585 = vmatprep.subr.mxu0 0.0
    %1586 = vmatpush1.msra.mxu0 0.0
    %1587 = vmatprep.subr.mxu0 0.0
    %1588 = vmatpush1.msra.mxu0 0.0
    %1589 = vmatprep.subr.mxu0 0.0
    %1590 = vmatpush1.msra.mxu0 0.0
    %1591 = vmatprep.subr.mxu0 0.0
    %1592 = vmatpush1.msra.mxu0 0.0
    %1593 = vmatprep.subr.mxu0 0.0
    %1594 = vmatpush1.msra.mxu0 0.0
    %1595 = vmatprep.subr.mxu0 0.0
    %1596 = vmatpush1.msra.mxu0 0.0
    %1597 = vmatprep.subr.mxu0 0.0
    %1598 = vmatpush1.msra.mxu0 0.0
    %1599 = vmatprep.subr.mxu0 0.0
    %1600 = vmatpush1.msra.mxu0 0.0
    %1601 = vmatprep.subr.mxu0 0.0
    %1602 = vmatpush1.msra.mxu0 0.0
    %1603 = vmatprep.subr.mxu0 0.0
    %1604 = vmatpush1.msra.mxu0 0.0
    %1605 = vmatprep.subr.mxu0 0.0
    %1606 = vmatpush1.msra.mxu0 0.0
    %1607 = vmatprep.subr.mxu0 0.0
    %1608 = vmatpush1.msra.mxu0 0.0
    %1609 = vmatprep.subr.mxu0 0.0
    %1610 = vmatpush1.msra.mxu0 0.0
    %1611 = vmatprep.subr.mxu0 0.0
    %1612 = vmatpush1.msra.mxu0 0.0
    %1613 = vmatprep.subr.mxu0 0.0
    %1614 = vmatpush1.msra.mxu0 0.0
    %1615 = vmatprep.subr.mxu0 0.0
    %1616 = vmatpush1.msra.mxu0 0.0
    %1617 = vmatprep.subr.mxu0 0.0
    %1618 = vmatpush1.msra.mxu0 0.0
    %1619 = vmatprep.subr.mxu0 0.0
    %1620 = vmatpush1.msra.mxu0 0.0
    %1621 = vmatprep.subr.mxu0 0.0
    %1622 = vmatpush1.msra.mxu0 0.0
    %1623 = vmatprep.subr.mxu0 0.0
    %1624 = vmatpush1.msra.mxu0 0.0
    %1625 = vmatprep.subr.mxu0 0.0
    %1626 = vmatpush1.msra.mxu0 0.0
    %1627 = vmatprep.subr.mxu0 0.0
    %1628 = vmatpush1.msra.mxu0 0.0
    %1629 = vmatprep.subr.mxu0 0.0
    %1630 = vmatpush1.msra.mxu0 0.0
    %1631 = vmatprep.subr.mxu0 0.0
    %1632 = vmatpush1.msra.mxu0 0.0
    %1633 = vmatprep.subr.mxu0 0.0
    %1634 = vmatpush1.msra.mxu0 0.0
    %1635 = vmatprep.subr.mxu0 0.0
    %1636 = vmatpush1.msra.mxu0 0.0
    %1637 = vmatprep.subr.mxu0 0.0
    %1638 = vmatpush1.msra.mxu0 0.0
    %1639 = vmatprep.subr.mxu0 0.0
    %1640 = vmatpush1.msra.mxu0 0.0
    %1641 = vmatprep.mubr.f32.mxu0 0.0
    %1642 = vmatmul.mubr.f32.gmra.mrb[0].mxu0 %v1475
    %v1643 = vpop.f32.mrb[0].mxu0
    %v1644 = vadd.f32 0.0, %v1643
    %v1645 = vpop.f32.mrb[0].mxu0
    %1646 = vdwg.mxu0
    %v1647 = vsel %vm241, %v1573, 0
    %1649 = vmatprep.subr.mxu0 0.0
    %1650 = vmatpush1.msra.mxu0 %v223
    %1651 = vmatprep.subr.mxu0 0.0
    %1652 = vmatpush1.msra.mxu0 %v224
    %1653 = vmatprep.subr.mxu0 0.0
    %1654 = vmatpush1.msra.mxu0 %v225
    %1655 = vmatprep.subr.mxu0 0.0
    %1656 = vmatpush1.msra.mxu0 %v226
    %1657 = vmatprep.subr.mxu0 0.0
    %1658 = vmatpush1.msra.mxu0 0.0
    %1659 = vmatprep.subr.mxu0 0.0
    %1660 = vmatpush1.msra.mxu0 0.0
    %1661 = vmatprep.subr.mxu0 0.0
    %1662 = vmatpush1.msra.mxu0 0.0
    %1663 = vmatprep.subr.mxu0 0.0
    %1664 = vmatpush1.msra.mxu0 0.0
    %1665 = vmatprep.subr.mxu0 0.0
    %1666 = vmatpush1.msra.mxu0 0.0
    %1667 = vmatprep.subr.mxu0 0.0
    %1668 = vmatpush1.msra.mxu0 0.0
    %1669 = vmatprep.subr.mxu0 0.0
    %1670 = vmatpush1.msra.mxu0 0.0
    %1671 = vmatprep.subr.mxu0 0.0
    %1672 = vmatpush1.msra.mxu0 0.0
    %1673 = vmatprep.subr.mxu0 0.0
    %1674 = vmatpush1.msra.mxu0 0.0
    %1675 = vmatprep.subr.mxu0 0.0
    %1676 = vmatpush1.msra.mxu0 0.0
    %1677 = vmatprep.subr.mxu0 0.0
    %1678 = vmatpush1.msra.mxu0 0.0
    %1679 = vmatprep.subr.mxu0 0.0
    %1680 = vmatpush1.msra.mxu0 0.0
    %1681 = vmatprep.subr.mxu0 0.0
    %1682 = vmatpush1.msra.mxu0 0.0
    %1683 = vmatprep.subr.mxu0 0.0
    %1684 = vmatpush1.msra.mxu0 0.0
    %1685 = vmatprep.subr.mxu0 0.0
    %1686 = vmatpush1.msra.mxu0 0.0
    %1687 = vmatprep.subr.mxu0 0.0
    %1688 = vmatpush1.msra.mxu0 0.0
    %1689 = vmatprep.subr.mxu0 0.0
    %1690 = vmatpush1.msra.mxu0 0.0
    %1691 = vmatprep.subr.mxu0 0.0
    %1692 = vmatpush1.msra.mxu0 0.0
    %1693 = vmatprep.subr.mxu0 0.0
    %1694 = vmatpush1.msra.mxu0 0.0
    %1695 = vmatprep.subr.mxu0 0.0
    %1696 = vmatpush1.msra.mxu0 0.0
    %1697 = vmatprep.subr.mxu0 0.0
    %1698 = vmatpush1.msra.mxu0 0.0
    %1699 = vmatprep.subr.mxu0 0.0
    %1700 = vmatpush1.msra.mxu0 0.0
    %1701 = vmatprep.subr.mxu0 0.0
    %1702 = vmatpush1.msra.mxu0 0.0
    %1703 = vmatprep.subr.mxu0 0.0
    %1704 = vmatpush1.msra.mxu0 0.0
    %1705 = vmatprep.subr.mxu0 0.0
    %1706 = vmatpush1.msra.mxu0 0.0
    %1707 = vmatprep.subr.mxu0 0.0
    %1708 = vmatpush1.msra.mxu0 0.0
    %1709 = vmatprep.subr.mxu0 0.0
    %1710 = vmatpush1.msra.mxu0 0.0
    %1711 = vmatprep.subr.mxu0 0.0
    %1712 = vmatpush1.msra.mxu0 0.0
    %1713 = vmatprep.mubr.f32.mxu0 0.0
    %1714 = vmatmul.mubr.f32.gmra.mrb[0].mxu0 %v1647
    %v1715 = vpop.f32.mrb[0].mxu0
    %v1716 = vadd.f32 %v1644, %v1715
    %v1717 = vpop.f32.mrb[0].mxu0
    %1718 = vdwg.mxu0
    %v1719 = vrot.slane %v211, 4
    %v1721 = vadd.f32 %v1716, %v1719
    %v1722 = vtanh.pop %v1721
    %v1723 = vmul.f32 %v1722, %v231
    %v1724 = vsel %vm491, %v1723, 0.0
    %1725 = vadd.xlane.f32.xlu0 %v1724
    %v1726 = vpop.xlane.xlu0 %1725
    %1727 = vst.msk [vmem:[#allocation4 + $0x4] sm:$0x1] %vm495, %v1726
    %v1728 = vld [vmem:[#allocation4] sm:$0x3f]
    %v1729 = vsel %vm239, %v1728, -inf
    %1730 = vmax.xlane.f32.xlu0 %v1729
    %v1731 = vpop.xlane.xlu0 %1730
    %v1732 = vrot.slane %v1731, 4
    %v1733 = vmax.f32 %v1731, %v1732
    %v1734 = vrot.slane %v1733, 2
    %v1735 = vmax.f32 %v1733, %v1734
    %v1736 = vrot.slane %v1735, 1
    %v1737 = vmax.f32 %v1735, %v1736
    %s1738 = vtos %v1737
    %v1739 = vstv %s1738
    %v1740 = vsub.f32 %v1728, %v1739
    %v1741 = vmul.f32 %v1740, 1.442695
    %v1742 = vpow.pop %v1741
    %v1743 = vsel %vm239, %v1742, 0.0
    %1744 = vadd.xlane.f32.xlu0 %v1743
    %v1745 = vpop.xlane.xlu0 %1744
    %v1746 = vrot.slane %v1745, 4
    %v1747 = vadd.f32 %v1745, %v1746
    %v1748 = vrot.slane %v1747, 2
    %v1749 = vadd.f32 %v1747, %v1748
    %v1750 = vrot.slane %v1749, 1
    %v1751 = vadd.f32 %v1749, %v1750
    %s1752 = vtos %v1751
    %v1753 = vstv %s1752
    %v1754 = vrcp.pop %v1753
    %v1755 = vmul.f32 %v1742, %v1754
    %v1756 = vld [vmem:[#allocation2] sm:$0x3f]
    %1758 = vset.pattern.permute.xlu0 0
    %1759 = vperm.xlu0 %1758, %v1755
    %v1760 = vpop.permute.xlu0 %1759
    %v1762 = vmul.f32 %v1760, %v1756
    %v1763 = vsel %vm532, %v1762, 0.0
    %v1764 = vrot.slane %v1763, 4
    %v1765 = vadd.f32 %v1763, %v1764
    %v1766 = vrot.slane %v1765, 2
    %v1767 = vadd.f32 %v1765, %v1766
    %v1768 = vrot.slane %v1767, 1
    %v1769 = vadd.f32 %v1767, %v1768
    %v1770 = vld [vmem:[#allocation3] sm:$0x3f]
    %v1771 = vmul.f32 %v1760, %v1770
    %v1772 = vsel %vm532, %v1771, 0.0
    %v1773 = vrot.slane %v1772, 4
    %v1774 = vadd.f32 %v1772, %v1773
    %v1775 = vrot.slane %v1774, 2
    %v1776 = vadd.f32 %v1774, %v1775
    %v1777 = vrot.slane %v1776, 1
    %v1778 = vadd.f32 %v1776, %v1777
    %v1779 = vrot.slane %v209, 5
    %v1782 = vsel %vm241, %v1769, 0
    %1784 = vmatprep.subr.mxu0 0.0
    %1785 = vmatpush1.msra.mxu0 %v219
    %1786 = vmatprep.subr.mxu0 0.0
    %1787 = vmatpush1.msra.mxu0 %v220
    %1788 = vmatprep.subr.mxu0 0.0
    %1789 = vmatpush1.msra.mxu0 %v221
    %1790 = vmatprep.subr.mxu0 0.0
    %1791 = vmatpush1.msra.mxu0 %v222
    %1792 = vmatprep.subr.mxu0 0.0
    %1793 = vmatpush1.msra.mxu0 0.0
    %1794 = vmatprep.subr.mxu0 0.0
    %1795 = vmatpush1.msra.mxu0 0.0
    %1796 = vmatprep.subr.mxu0 0.0
    %1797 = vmatpush1.msra.mxu0 0.0
    %1798 = vmatprep.subr.mxu0 0.0
    %1799 = vmatpush1.msra.mxu0 0.0
    %1800 = vmatprep.subr.mxu0 0.0
    %1801 = vmatpush1.msra.mxu0 0.0
    %1802 = vmatprep.subr.mxu0 0.0
    %1803 = vmatpush1.msra.mxu0 0.0
    %1804 = vmatprep.subr.mxu0 0.0
    %1805 = vmatpush1.msra.mxu0 0.0
    %1806 = vmatprep.subr.mxu0 0.0
    %1807 = vmatpush1.msra.mxu0 0.0
    %1808 = vmatprep.subr.mxu0 0.0
    %1809 = vmatpush1.msra.mxu0 0.0
    %1810 = vmatprep.subr.mxu0 0.0
    %1811 = vmatpush1.msra.mxu0 0.0
    %1812 = vmatprep.subr.mxu0 0.0
    %1813 = vmatpush1.msra.mxu0 0.0
    %1814 = vmatprep.subr.mxu0 0.0
    %1815 = vmatpush1.msra.mxu0 0.0
    %1816 = vmatprep.subr.mxu0 0.0
    %1817 = vmatpush1.msra.mxu0 0.0
    %1818 = vmatprep.subr.mxu0 0.0
    %1819 = vmatpush1.msra.mxu0 0.0
    %1820 = vmatprep.subr.mxu0 0.0
    %1821 = vmatpush1.msra.mxu0 0.0
    %1822 = vmatprep.subr.mxu0 0.0
    %1823 = vmatpush1.msra.mxu0 0.0
    %1824 = vmatprep.subr.mxu0 0.0
    %1825 = vmatpush1.msra.mxu0 0.0
    %1826 = vmatprep.subr.mxu0 0.0
    %1827 = vmatpush1.msra.mxu0 0.0
    %1828 = vmatprep.subr.mxu0 0.0
    %1829 = vmatpush1.msra.mxu0 0.0
    %1830 = vmatprep.subr.mxu0 0.0
    %1831 = vmatpush1.msra.mxu0 0.0
    %1832 = vmatprep.subr.mxu0 0.0
    %1833 = vmatpush1.msra.mxu0 0.0
    %1834 = vmatprep.subr.mxu0 0.0
    %1835 = vmatpush1.msra.mxu0 0.0
    %1836 = vmatprep.subr.mxu0 0.0
    %1837 = vmatpush1.msra.mxu0 0.0
    %1838 = vmatprep.subr.mxu0 0.0
    %1839 = vmatpush1.msra.mxu0 0.0
    %1840 = vmatprep.subr.mxu0 0.0
    %1841 = vmatpush1.msra.mxu0 0.0
    %1842 = vmatprep.subr.mxu0 0.0
    %1843 = vmatpush1.msra.mxu0 0.0
    %1844 = vmatprep.subr.mxu0 0.0
    %1845 = vmatpush1.msra.mxu0 0.0
    %1846 = vmatprep.subr.mxu0 0.0
    %1847 = vmatpush1.msra.mxu0 0.0
    %1848 = vmatprep.mubr.f32.mxu0 0.0
    %1849 = vmatmul.mubr.f32.gmra.mrb[0].mxu0 %v1782
    %v1850 = vpop.f32.mrb[0].mxu0
    %v1851 = vadd.f32 %v1779, %v1850
    %v1852 = vpop.f32.mrb[0].mxu0
    %1853 = vdwg.mxu0
    %v1854 = vxor.u32 %v1851, 2147483648
    %v1855 = vmul.f32 %v1854, 1.442695
    %v1856 = vpow.pop %v1855
    %v1857 = vadd.f32 %v1856, 1.0
    %v1858 = vrcp.pop %v1857
    %v1859 = vmul.f32 1.0, %v1858
    %v1860 = vtanh.pop %v1851
    %v1861 = vmul.f32 %v1859, %v1778
    %1863 = vrot.lane.b32.xlu0 %v1860, 96
    %v1864 = vpop.permute.xlu0 %1863
    %v1866 = vmul.f32 %v1859, %v1864
    %1868 = vrot.lane.b32.xlu0 %v1866, 64
    %v1869 = vpop.permute.xlu0 %1868
    %v1871 = vadd.f32 %v1861, %v1869
    %v1872 = vtanh.pop %v1871
    %1874 = vrot.lane.b32.xlu0 %v1872, 32
    %v1875 = vpop.permute.xlu0 %1874
    %v1877 = vmul.f32 %v1859, %v1875
    %1879 = vrot.lane.b32.xlu0 %v1877, 96
    %v1880 = vpop.permute.xlu0 %1879
    %1882 = vst.msk [vmem:[#allocation2 + $0x5] sm:$0x1] %vm343, %v1880
    %1883 = vst.msk [vmem:[#allocation3 + $0x5] sm:$0x1] %vm343, %v1871
    %1884 = vmatprep.subr.mxu0 0.0
    %1885 = vmatpush1.msra.mxu0 %v227
    %1886 = vmatprep.subr.mxu0 0.0
    %1887 = vmatpush1.msra.mxu0 %v228
    %1888 = vmatprep.subr.mxu0 0.0
    %1889 = vmatpush1.msra.mxu0 %v229
    %1890 = vmatprep.subr.mxu0 0.0
    %1891 = vmatpush1.msra.mxu0 %v230
    %1892 = vmatprep.subr.mxu0 0.0
    %1893 = vmatpush1.msra.mxu0 0.0
    %1894 = vmatprep.subr.mxu0 0.0
    %1895 = vmatpush1.msra.mxu0 0.0
    %1896 = vmatprep.subr.mxu0 0.0
    %1897 = vmatpush1.msra.mxu0 0.0
    %1898 = vmatprep.subr.mxu0 0.0
    %1899 = vmatpush1.msra.mxu0 0.0
    %1900 = vmatprep.subr.mxu0 0.0
    %1901 = vmatpush1.msra.mxu0 0.0
    %1902 = vmatprep.subr.mxu0 0.0
    %1903 = vmatpush1.msra.mxu0 0.0
    %1904 = vmatprep.subr.mxu0 0.0
    %1905 = vmatpush1.msra.mxu0 0.0
    %1906 = vmatprep.subr.mxu0 0.0
    %1907 = vmatpush1.msra.mxu0 0.0
    %1908 = vmatprep.subr.mxu0 0.0
    %1909 = vmatpush1.msra.mxu0 0.0
    %1910 = vmatprep.subr.mxu0 0.0
    %1911 = vmatpush1.msra.mxu0 0.0
    %1912 = vmatprep.subr.mxu0 0.0
    %1913 = vmatpush1.msra.mxu0 0.0
    %1914 = vmatprep.subr.mxu0 0.0
    %1915 = vmatpush1.msra.mxu0 0.0
    %1916 = vmatprep.subr.mxu0 0.0
    %1917 = vmatpush1.msra.mxu0 0.0
    %1918 = vmatprep.subr.mxu0 0.0
    %1919 = vmatpush1.msra.mxu0 0.0
    %1920 = vmatprep.subr.mxu0 0.0
    %1921 = vmatpush1.msra.mxu0 0.0
    %1922 = vmatprep.subr.mxu0 0.0
    %1923 = vmatpush1.msra.mxu0 0.0
    %1924 = vmatprep.subr.mxu0 0.0
    %1925 = vmatpush1.msra.mxu0 0.0
    %1926 = vmatprep.subr.mxu0 0.0
    %1927 = vmatpush1.msra.mxu0 0.0
    %1928 = vmatprep.subr.mxu0 0.0
    %1929 = vmatpush1.msra.mxu0 0.0
    %1930 = vmatprep.subr.mxu0 0.0
    %1931 = vmatpush1.msra.mxu0 0.0
    %1932 = vmatprep.subr.mxu0 0.0
    %1933 = vmatpush1.msra.mxu0 0.0
    %1934 = vmatprep.subr.mxu0 0.0
    %1935 = vmatpush1.msra.mxu0 0.0
    %1936 = vmatprep.subr.mxu0 0.0
    %1937 = vmatpush1.msra.mxu0 0.0
    %1938 = vmatprep.subr.mxu0 0.0
    %1939 = vmatpush1.msra.mxu0 0.0
    %1940 = vmatprep.subr.mxu0 0.0
    %1941 = vmatpush1.msra.mxu0 0.0
    %1942 = vmatprep.subr.mxu0 0.0
    %1943 = vmatpush1.msra.mxu0 0.0
    %1944 = vmatprep.subr.mxu0 0.0
    %1945 = vmatpush1.msra.mxu0 0.0
    %1946 = vmatprep.subr.mxu0 0.0
    %1947 = vmatpush1.msra.mxu0 0.0
    %1948 = vmatprep.mubr.f32.mxu0 0.0
    %1949 = vmatmul.mubr.f32.gmra.mrb[0].mxu0 %v1782
    %v1950 = vpop.f32.mrb[0].mxu0
    %v1951 = vadd.f32 0.0, %v1950
    %v1952 = vpop.f32.mrb[0].mxu0
    %1953 = vdwg.mxu0
    %v1954 = vsel %vm241, %v1880, 0
    %1956 = vmatprep.subr.mxu0 0.0
    %1957 = vmatpush1.msra.mxu0 %v223
    %1958 = vmatprep.subr.mxu0 0.0
    %1959 = vmatpush1.msra.mxu0 %v224
    %1960 = vmatprep.subr.mxu0 0.0
    %1961 = vmatpush1.msra.mxu0 %v225
    %1962 = vmatprep.subr.mxu0 0.0
    %1963 = vmatpush1.msra.mxu0 %v226
    %1964 = vmatprep.subr.mxu0 0.0
    %1965 = vmatpush1.msra.mxu0 0.0
    %1966 = vmatprep.subr.mxu0 0.0
    %1967 = vmatpush1.msra.mxu0 0.0
    %1968 = vmatprep.subr.mxu0 0.0
    %1969 = vmatpush1.msra.mxu0 0.0
    %1970 = vmatprep.subr.mxu0 0.0
    %1971 = vmatpush1.msra.mxu0 0.0
    %1972 = vmatprep.subr.mxu0 0.0
    %1973 = vmatpush1.msra.mxu0 0.0
    %1974 = vmatprep.subr.mxu0 0.0
    %1975 = vmatpush1.msra.mxu0 0.0
    %1976 = vmatprep.subr.mxu0 0.0
    %1977 = vmatpush1.msra.mxu0 0.0
    %1978 = vmatprep.subr.mxu0 0.0
    %1979 = vmatpush1.msra.mxu0 0.0
    %1980 = vmatprep.subr.mxu0 0.0
    %1981 = vmatpush1.msra.mxu0 0.0
    %1982 = vmatprep.subr.mxu0 0.0
    %1983 = vmatpush1.msra.mxu0 0.0
    %1984 = vmatprep.subr.mxu0 0.0
    %1985 = vmatpush1.msra.mxu0 0.0
    %1986 = vmatprep.subr.mxu0 0.0
    %1987 = vmatpush1.msra.mxu0 0.0
    %1988 = vmatprep.subr.mxu0 0.0
    %1989 = vmatpush1.msra.mxu0 0.0
    %1990 = vmatprep.subr.mxu0 0.0
    %1991 = vmatpush1.msra.mxu0 0.0
    %1992 = vmatprep.subr.mxu0 0.0
    %1993 = vmatpush1.msra.mxu0 0.0
    %1994 = vmatprep.subr.mxu0 0.0
    %1995 = vmatpush1.msra.mxu0 0.0
    %1996 = vmatprep.subr.mxu0 0.0
    %1997 = vmatpush1.msra.mxu0 0.0
    %1998 = vmatprep.subr.mxu0 0.0
    %1999 = vmatpush1.msra.mxu0 0.0
    %2000 = vmatprep.subr.mxu0 0.0
    %2001 = vmatpush1.msra.mxu0 0.0
    %2002 = vmatprep.subr.mxu0 0.0
    %2003 = vmatpush1.msra.mxu0 0.0
    %2004 = vmatprep.subr.mxu0 0.0
    %2005 = vmatpush1.msra.mxu0 0.0
    %2006 = vmatprep.subr.mxu0 0.0
    %2007 = vmatpush1.msra.mxu0 0.0
    %2008 = vmatprep.subr.mxu0 0.0
    %2009 = vmatpush1.msra.mxu0 0.0
    %2010 = vmatprep.subr.mxu0 0.0
    %2011 = vmatpush1.msra.mxu0 0.0
    %2012 = vmatprep.subr.mxu0 0.0
    %2013 = vmatpush1.msra.mxu0 0.0
    %2014 = vmatprep.subr.mxu0 0.0
    %2015 = vmatpush1.msra.mxu0 0.0
    %2016 = vmatprep.subr.mxu0 0.0
    %2017 = vmatpush1.msra.mxu0 0.0
    %2018 = vmatprep.subr.mxu0 0.0
    %2019 = vmatpush1.msra.mxu0 0.0
    %2020 = vmatprep.mubr.f32.mxu0 0.0
    %2021 = vmatmul.mubr.f32.gmra.mrb[0].mxu0 %v1954
    %v2022 = vpop.f32.mrb[0].mxu0
    %v2023 = vadd.f32 %v1951, %v2022
    %v2024 = vpop.f32.mrb[0].mxu0
    %2025 = vdwg.mxu0
    %v2026 = vrot.slane %v211, 5
    %v2028 = vadd.f32 %v2023, %v2026
    %v2029 = vtanh.pop %v2028
    %v2030 = vmul.f32 %v2029, %v231
    %v2031 = vsel %vm491, %v2030, 0.0
    %2032 = vadd.xlane.f32.xlu0 %v2031
    %v2033 = vpop.xlane.xlu0 %2032
    %2034 = vst.msk [vmem:[#allocation4 + $0x5] sm:$0x1] %vm495, %v2033
    %2035 = vmatprep.subr.mxu0 0.0
    %2036 = vmatpush1.msra.mxu0 %v232
    %2037 = vmatprep.subr.mxu0 0.0
    %2038 = vmatpush1.msra.mxu0 %v233
    %2039 = vmatprep.subr.mxu0 0.0
    %2040 = vmatpush1.msra.mxu0 %v234
    %2041 = vmatprep.subr.mxu0 0.0
    %2042 = vmatpush1.msra.mxu0 %v235
    %2043 = vmatprep.subr.mxu0 0.0
    %2044 = vmatpush1.msra.mxu0 0.0
    %2045 = vmatprep.subr.mxu0 0.0
    %2046 = vmatpush1.msra.mxu0 0.0
    %2047 = vmatprep.subr.mxu0 0.0
    %2048 = vmatpush1.msra.mxu0 0.0
    %2049 = vmatprep.subr.mxu0 0.0
    %2050 = vmatpush1.msra.mxu0 0.0
    %2051 = vmatprep.subr.mxu0 0.0
    %2052 = vmatpush1.msra.mxu0 0.0
    %2053 = vmatprep.subr.mxu0 0.0
    %2054 = vmatpush1.msra.mxu0 0.0
    %2055 = vmatprep.subr.mxu0 0.0
    %2056 = vmatpush1.msra.mxu0 0.0
    %2057 = vmatprep.subr.mxu0 0.0
    %2058 = vmatpush1.msra.mxu0 0.0
    %2059 = vmatprep.subr.mxu0 0.0
    %2060 = vmatpush1.msra.mxu0 0.0
    %2061 = vmatprep.subr.mxu0 0.0
    %2062 = vmatpush1.msra.mxu0 0.0
    %2063 = vmatprep.subr.mxu0 0.0
    %2064 = vmatpush1.msra.mxu0 0.0
    %2065 = vmatprep.subr.mxu0 0.0
    %2066 = vmatpush1.msra.mxu0 0.0
    %2067 = vmatprep.subr.mxu0 0.0
    %2068 = vmatpush1.msra.mxu0 0.0
    %2069 = vmatprep.subr.mxu0 0.0
    %2070 = vmatpush1.msra.mxu0 0.0
    %2071 = vmatprep.subr.mxu0 0.0
    %2072 = vmatpush1.msra.mxu0 0.0
    %2073 = vmatprep.subr.mxu0 0.0
    %2074 = vmatpush1.msra.mxu0 0.0
    %2075 = vmatprep.subr.mxu0 0.0
    %2076 = vmatpush1.msra.mxu0 0.0
    %2077 = vmatprep.subr.mxu0 0.0
    %2078 = vmatpush1.msra.mxu0 0.0
    %2079 = vmatprep.subr.mxu0 0.0
    %2080 = vmatpush1.msra.mxu0 0.0
    %2081 = vmatprep.subr.mxu0 0.0
    %2082 = vmatpush1.msra.mxu0 0.0
    %2083 = vmatprep.subr.mxu0 0.0
    %2084 = vmatpush1.msra.mxu0 0.0
    %2085 = vmatprep.subr.mxu0 0.0
    %2086 = vmatpush1.msra.mxu0 0.0
    %2087 = vmatprep.subr.mxu0 0.0
    %2088 = vmatpush1.msra.mxu0 0.0
    %2089 = vmatprep.subr.mxu0 0.0
    %2090 = vmatpush1.msra.mxu0 0.0
    %2091 = vmatprep.subr.mxu0 0.0
    %2092 = vmatpush1.msra.mxu0 0.0
    %2093 = vmatprep.subr.mxu0 0.0
    %2094 = vmatpush1.msra.mxu0 0.0
    %2095 = vmatprep.subr.mxu0 0.0
    %2096 = vmatpush1.msra.mxu0 0.0
    %2097 = vmatprep.subr.mxu0 0.0
    %2098 = vmatpush1.msra.mxu0 0.0
    %2099 = vmatprep.mubr.f32.mxu0 0.0
    %2100 = vmatmul.mubr.f32.gmra.mrb[0].mxu0 %v1954
    %v2101 = vpop.f32.mrb[0].mxu0
    %v2102 = vadd.f32 %v236, %v2101
    %v2103 = vpop.f32.mrb[0].mxu0
    %2104 = vdwg.mxu0
    %v2105 = vsel %vm491, %v2102, -inf
    %2106 = vmax.xlane.f32.xlu0 %v2105
    %v2107 = vpop.xlane.xlu0 %2106
    %v2108 = vrot.slane %v2107, 4
    %v2109 = vmax.f32 %v2107, %v2108
    %v2110 = vrot.slane %v2109, 2
    %v2111 = vmax.f32 %v2109, %v2110
    %v2112 = vrot.slane %v2111, 1
    %v2113 = vmax.f32 %v2111, %v2112
    %s2114 = vtos %v2113
    %v2115 = vstv %s2114
    %v2116 = vsub.f32 %v2102, %v2115
    %v2117 = vmul.f32 %v2116, 1.442695
    %v2118 = vpow.pop %v2117
    %v2119 = vsel %vm491, %v2118, 0.0
    %2120 = vadd.xlane.f32.xlu0 %v2119
    %v2121 = vpop.xlane.xlu0 %2120
    %v2122 = vrot.slane %v2121, 4
    %v2123 = vadd.f32 %v2121, %v2122
    %v2124 = vrot.slane %v2123, 2
    %v2125 = vadd.f32 %v2123, %v2124
    %v2126 = vrot.slane %v2125, 1
    %v2127 = vadd.f32 %v2125, %v2126
    %s2128 = vtos %v2127
    %v2129 = vstv %s2128
    %v2130 = vrcp.pop %v2129
    %v2131 = vmul.f32 %v2118, %v2130
    %2132 = vst.msk [vmem:[#allocation7] sm:$0x1] %vm491, %v2131
    %v2133 = vld [vmem:[#allocation2] sm:$0x3f]
    %2134 = vst.msk [vmem:[%s12] sm:$0x3f] %vm532, %v2133
    %2135 = vst.msk [vmem:[#allocation4] sm:$0x3f] %vm239, -1e+30
    %v2136 = vrot.slane %v209, 6
    %2138 = vmatprep.subr.mxu0 0.0
    %2139 = vmatpush1.msra.mxu0 %v219
    %2140 = vmatprep.subr.mxu0 0.0
    %2141 = vmatpush1.msra.mxu0 %v220
    %2142 = vmatprep.subr.mxu0 0.0
    %2143 = vmatpush1.msra.mxu0 %v221
    %2144 = vmatprep.subr.mxu0 0.0
    %2145 = vmatpush1.msra.mxu0 %v222
    %2146 = vmatprep.subr.mxu0 0.0
    %2147 = vmatpush1.msra.mxu0 0.0
    %2148 = vmatprep.subr.mxu0 0.0
    %2149 = vmatpush1.msra.mxu0 0.0
    %2150 = vmatprep.subr.mxu0 0.0
    %2151 = vmatpush1.msra.mxu0 0.0
    %2152 = vmatprep.subr.mxu0 0.0
    %2153 = vmatpush1.msra.mxu0 0.0
    %2154 = vmatprep.subr.mxu0 0.0
    %2155 = vmatpush1.msra.mxu0 0.0
    %2156 = vmatprep.subr.mxu0 0.0
    %2157 = vmatpush1.msra.mxu0 0.0
    %2158 = vmatprep.subr.mxu0 0.0
    %2159 = vmatpush1.msra.mxu0 0.0
    %2160 = vmatprep.subr.mxu0 0.0
    %2161 = vmatpush1.msra.mxu0 0.0
    %2162 = vmatprep.subr.mxu0 0.0
    %2163 = vmatpush1.msra.mxu0 0.0
    %2164 = vmatprep.subr.mxu0 0.0
    %2165 = vmatpush1.msra.mxu0 0.0
    %2166 = vmatprep.subr.mxu0 0.0
    %2167 = vmatpush1.msra.mxu0 0.0
    %2168 = vmatprep.subr.mxu0 0.0
    %2169 = vmatpush1.msra.mxu0 0.0
    %2170 = vmatprep.subr.mxu0 0.0
    %2171 = vmatpush1.msra.mxu0 0.0
    %2172 = vmatprep.subr.mxu0 0.0
    %2173 = vmatpush1.msra.mxu0 0.0
    %2174 = vmatprep.subr.mxu0 0.0
    %2175 = vmatpush1.msra.mxu0 0.0
    %2176 = vmatprep.subr.mxu0 0.0
    %2177 = vmatpush1.msra.mxu0 0.0
    %2178 = vmatprep.subr.mxu0 0.0
    %2179 = vmatpush1.msra.mxu0 0.0
    %2180 = vmatprep.subr.mxu0 0.0
    %2181 = vmatpush1.msra.mxu0 0.0
    %2182 = vmatprep.subr.mxu0 0.0
    %2183 = vmatpush1.msra.mxu0 0.0
    %2184 = vmatprep.subr.mxu0 0.0
    %2185 = vmatpush1.msra.mxu0 0.0
    %2186 = vmatprep.subr.mxu0 0.0
    %2187 = vmatpush1.msra.mxu0 0.0
    %2188 = vmatprep.subr.mxu0 0.0
    %2189 = vmatpush1.msra.mxu0 0.0
    %2190 = vmatprep.subr.mxu0 0.0
    %2191 = vmatpush1.msra.mxu0 0.0
    %2192 = vmatprep.subr.mxu0 0.0
    %2193 = vmatpush1.msra.mxu0 0.0
    %2194 = vmatprep.subr.mxu0 0.0
    %2195 = vmatpush1.msra.mxu0 0.0
    %2196 = vmatprep.subr.mxu0 0.0
    %2197 = vmatpush1.msra.mxu0 0.0
    %2198 = vmatprep.subr.mxu0 0.0
    %2199 = vmatpush1.msra.mxu0 0.0
    %2200 = vmatprep.subr.mxu0 0.0
    %2201 = vmatpush1.msra.mxu0 0.0
    %2202 = vmatprep.mubr.f32.mxu0 0.0
    %2203 = vmatmul.mubr.f32.gmra.mrb[0].mxu0 %v1782
    %v2204 = vpop.f32.mrb[0].mxu0
    %v2205 = vadd.f32 %v2136, %v2204
    %v2206 = vpop.f32.mrb[0].mxu0
    %2207 = vdwg.mxu0
    %v2208 = vxor.u32 %v2205, 2147483648
    %v2209 = vmul.f32 %v2208, 1.442695
    %v2210 = vpow.pop %v2209
    %v2211 = vadd.f32 %v2210, 1.0
    %v2212 = vrcp.pop %v2211
    %v2213 = vmul.f32 1.0, %v2212
    %v2214 = vtanh.pop %v2205
    %v2215 = vmul.f32 %v2213, %v1778
    %2217 = vrot.lane.b32.xlu0 %v2214, 96
    %v2218 = vpop.permute.xlu0 %2217
    %v2220 = vmul.f32 %v2213, %v2218
    %2222 = vrot.lane.b32.xlu0 %v2220, 64
    %v2223 = vpop.permute.xlu0 %2222
    %v2225 = vadd.f32 %v2215, %v2223
    %v2226 = vtanh.pop %v2225
    %2228 = vrot.lane.b32.xlu0 %v2226, 32
    %v2229 = vpop.permute.xlu0 %2228
    %v2231 = vmul.f32 %v2213, %v2229
    %2233 = vrot.lane.b32.xlu0 %v2231, 96
    %v2234 = vpop.permute.xlu0 %2233
    %2236 = vst.msk [vmem:[#allocation2] sm:$0x1] %vm343, %v2234
    %2237 = vst.msk [vmem:[#allocation3] sm:$0x1] %vm343, %v2225
    %v2238 = vsel %vm241, %v2234, 0
    %2240 = vmatprep.subr.mxu0 0.0
    %2241 = vmatpush1.msra.mxu0 %v223
    %2242 = vmatprep.subr.mxu0 0.0
    %2243 = vmatpush1.msra.mxu0 %v224
    %2244 = vmatprep.subr.mxu0 0.0
    %2245 = vmatpush1.msra.mxu0 %v225
    %2246 = vmatprep.subr.mxu0 0.0
    %2247 = vmatpush1.msra.mxu0 %v226
    %2248 = vmatprep.subr.mxu0 0.0
    %2249 = vmatpush1.msra.mxu0 0.0
    %2250 = vmatprep.subr.mxu0 0.0
    %2251 = vmatpush1.msra.mxu0 0.0
    %2252 = vmatprep.subr.mxu0 0.0
    %2253 = vmatpush1.msra.mxu0 0.0
    %2254 = vmatprep.subr.mxu0 0.0
    %2255 = vmatpush1.msra.mxu0 0.0
    %2256 = vmatprep.subr.mxu0 0.0
    %2257 = vmatpush1.msra.mxu0 0.0
    %2258 = vmatprep.subr.mxu0 0.0
    %2259 = vmatpush1.msra.mxu0 0.0
    %2260 = vmatprep.subr.mxu0 0.0
    %2261 = vmatpush1.msra.mxu0 0.0
    %2262 = vmatprep.subr.mxu0 0.0
    %2263 = vmatpush1.msra.mxu0 0.0
    %2264 = vmatprep.subr.mxu0 0.0
    %2265 = vmatpush1.msra.mxu0 0.0
    %2266 = vmatprep.subr.mxu0 0.0
    %2267 = vmatpush1.msra.mxu0 0.0
    %2268 = vmatprep.subr.mxu0 0.0
    %2269 = vmatpush1.msra.mxu0 0.0
    %2270 = vmatprep.subr.mxu0 0.0
    %2271 = vmatpush1.msra.mxu0 0.0
    %2272 = vmatprep.subr.mxu0 0.0
    %2273 = vmatpush1.msra.mxu0 0.0
    %2274 = vmatprep.subr.mxu0 0.0
    %2275 = vmatpush1.msra.mxu0 0.0
    %2276 = vmatprep.subr.mxu0 0.0
    %2277 = vmatpush1.msra.mxu0 0.0
    %2278 = vmatprep.subr.mxu0 0.0
    %2279 = vmatpush1.msra.mxu0 0.0
    %2280 = vmatprep.subr.mxu0 0.0
    %2281 = vmatpush1.msra.mxu0 0.0
    %2282 = vmatprep.subr.mxu0 0.0
    %2283 = vmatpush1.msra.mxu0 0.0
    %2284 = vmatprep.subr.mxu0 0.0
    %2285 = vmatpush1.msra.mxu0 0.0
    %2286 = vmatprep.subr.mxu0 0.0
    %2287 = vmatpush1.msra.mxu0 0.0
    %2288 = vmatprep.subr.mxu0 0.0
    %2289 = vmatpush1.msra.mxu0 0.0
    %2290 = vmatprep.subr.mxu0 0.0
    %2291 = vmatpush1.msra.mxu0 0.0
    %2292 = vmatprep.subr.mxu0 0.0
    %2293 = vmatpush1.msra.mxu0 0.0
    %2294 = vmatprep.subr.mxu0 0.0
    %2295 = vmatpush1.msra.mxu0 0.0
    %2296 = vmatprep.subr.mxu0 0.0
    %2297 = vmatpush1.msra.mxu0 0.0
    %2298 = vmatprep.subr.mxu0 0.0
    %2299 = vmatpush1.msra.mxu0 0.0
    %2300 = vmatprep.subr.mxu0 0.0
    %2301 = vmatpush1.msra.mxu0 0.0
    %2302 = vmatprep.subr.mxu0 0.0
    %2303 = vmatpush1.msra.mxu0 0.0
    %2304 = vmatprep.mubr.f32.mxu0 0.0
    %2305 = vmatmul.mubr.f32.gmra.mrb[0].mxu0 %v2238
    %v2306 = vpop.f32.mrb[0].mxu0
    %v2307 = vadd.f32 %v1951, %v2306
    %v2308 = vpop.f32.mrb[0].mxu0
    %2309 = vdwg.mxu0
    %v2310 = vrot.slane %v211, 6
    %v2312 = vadd.f32 %v2307, %v2310
    %v2313 = vtanh.pop %v2312
    %v2314 = vmul.f32 %v2313, %v231
    %v2315 = vsel %vm491, %v2314, 0.0
    %2316 = vadd.xlane.f32.xlu0 %v2315
    %v2317 = vpop.xlane.xlu0 %2316
    %2318 = vst.msk [vmem:[#allocation4] sm:$0x1] %vm495, %v2317
    %v2319 = vld [vmem:[#allocation4] sm:$0x3f]
    %v2320 = vsel %vm239, %v2319, -inf
    %2321 = vmax.xlane.f32.xlu0 %v2320
    %v2322 = vpop.xlane.xlu0 %2321
    %v2323 = vrot.slane %v2322, 4
    %v2324 = vmax.f32 %v2322, %v2323
    %v2325 = vrot.slane %v2324, 2
    %v2326 = vmax.f32 %v2324, %v2325
    %v2327 = vrot.slane %v2326, 1
    %v2328 = vmax.f32 %v2326, %v2327
    %s2329 = vtos %v2328
    %v2330 = vstv %s2329
    %v2331 = vsub.f32 %v2319, %v2330
    %v2332 = vmul.f32 %v2331, 1.442695
    %v2333 = vpow.pop %v2332
    %v2334 = vsel %vm239, %v2333, 0.0
    %2335 = vadd.xlane.f32.xlu0 %v2334
    %v2336 = vpop.xlane.xlu0 %2335
    %v2337 = vrot.slane %v2336, 4
    %v2338 = vadd.f32 %v2336, %v2337
    %v2339 = vrot.slane %v2338, 2
    %v2340 = vadd.f32 %v2338, %v2339
    %v2341 = vrot.slane %v2340, 1
    %v2342 = vadd.f32 %v2340, %v2341
    %s2343 = vtos %v2342
    %v2344 = vstv %s2343
    %v2345 = vrcp.pop %v2344
    %v2346 = vmul.f32 %v2333, %v2345
    %v2347 = vld [vmem:[#allocation2] sm:$0x3f]
    %2349 = vset.pattern.permute.xlu0 0
    %2350 = vperm.xlu0 %2349, %v2346
    %v2351 = vpop.permute.xlu0 %2350
    %v2353 = vmul.f32 %v2351, %v2347
    %v2354 = vsel %vm532, %v2353, 0.0
    %v2355 = vrot.slane %v2354, 4
    %v2356 = vadd.f32 %v2354, %v2355
    %v2357 = vrot.slane %v2356, 2
    %v2358 = vadd.f32 %v2356, %v2357
    %v2359 = vrot.slane %v2358, 1
    %v2360 = vadd.f32 %v2358, %v2359
    %v2361 = vld [vmem:[#allocation3] sm:$0x3f]
    %v2362 = vmul.f32 %v2351, %v2361
    %v2363 = vsel %vm532, %v2362, 0.0
    %v2364 = vrot.slane %v2363, 4
    %v2365 = vadd.f32 %v2363, %v2364
    %v2366 = vrot.slane %v2365, 2
    %v2367 = vadd.f32 %v2365, %v2366
    %v2368 = vrot.slane %v2367, 1
    %v2369 = vadd.f32 %v2367, %v2368
    %v2370 = vrot.slane %v209, 7
    %v2373 = vsel %vm241, %v2360, 0
    %2375 = vmatprep.subr.mxu0 0.0
    %2376 = vmatpush1.msra.mxu0 %v219
    %2377 = vmatprep.subr.mxu0 0.0
    %2378 = vmatpush1.msra.mxu0 %v220
    %2379 = vmatprep.subr.mxu0 0.0
    %2380 = vmatpush1.msra.mxu0 %v221
    %2381 = vmatprep.subr.mxu0 0.0
    %2382 = vmatpush1.msra.mxu0 %v222
    %2383 = vmatprep.subr.mxu0 0.0
    %2384 = vmatpush1.msra.mxu0 0.0
    %2385 = vmatprep.subr.mxu0 0.0
    %2386 = vmatpush1.msra.mxu0 0.0
    %2387 = vmatprep.subr.mxu0 0.0
    %2388 = vmatpush1.msra.mxu0 0.0
    %2389 = vmatprep.subr.mxu0 0.0
    %2390 = vmatpush1.msra.mxu0 0.0
    %2391 = vmatprep.subr.mxu0 0.0
    %2392 = vmatpush1.msra.mxu0 0.0
    %2393 = vmatprep.subr.mxu0 0.0
    %2394 = vmatpush1.msra.mxu0 0.0
    %2395 = vmatprep.subr.mxu0 0.0
    %2396 = vmatpush1.msra.mxu0 0.0
    %2397 = vmatprep.subr.mxu0 0.0
    %2398 = vmatpush1.msra.mxu0 0.0
    %2399 = vmatprep.subr.mxu0 0.0
    %2400 = vmatpush1.msra.mxu0 0.0
    %2401 = vmatprep.subr.mxu0 0.0
    %2402 = vmatpush1.msra.mxu0 0.0
    %2403 = vmatprep.subr.mxu0 0.0
    %2404 = vmatpush1.msra.mxu0 0.0
    %2405 = vmatprep.subr.mxu0 0.0
    %2406 = vmatpush1.msra.mxu0 0.0
    %2407 = vmatprep.subr.mxu0 0.0
    %2408 = vmatpush1.msra.mxu0 0.0
    %2409 = vmatprep.subr.mxu0 0.0
    %2410 = vmatpush1.msra.mxu0 0.0
    %2411 = vmatprep.subr.mxu0 0.0
    %2412 = vmatpush1.msra.mxu0 0.0
    %2413 = vmatprep.subr.mxu0 0.0
    %2414 = vmatpush1.msra.mxu0 0.0
    %2415 = vmatprep.subr.mxu0 0.0
    %2416 = vmatpush1.msra.mxu0 0.0
    %2417 = vmatprep.subr.mxu0 0.0
    %2418 = vmatpush1.msra.mxu0 0.0
    %2419 = vmatprep.subr.mxu0 0.0
    %2420 = vmatpush1.msra.mxu0 0.0
    %2421 = vmatprep.subr.mxu0 0.0
    %2422 = vmatpush1.msra.mxu0 0.0
    %2423 = vmatprep.subr.mxu0 0.0
    %2424 = vmatpush1.msra.mxu0 0.0
    %2425 = vmatprep.subr.mxu0 0.0
    %2426 = vmatpush1.msra.mxu0 0.0
    %2427 = vmatprep.subr.mxu0 0.0
    %2428 = vmatpush1.msra.mxu0 0.0
    %2429 = vmatprep.subr.mxu0 0.0
    %2430 = vmatpush1.msra.mxu0 0.0
    %2431 = vmatprep.subr.mxu0 0.0
    %2432 = vmatpush1.msra.mxu0 0.0
    %2433 = vmatprep.subr.mxu0 0.0
    %2434 = vmatpush1.msra.mxu0 0.0
    %2435 = vmatprep.subr.mxu0 0.0
    %2436 = vmatpush1.msra.mxu0 0.0
    %2437 = vmatprep.subr.mxu0 0.0
    %2438 = vmatpush1.msra.mxu0 0.0
    %2439 = vmatprep.mubr.f32.mxu0 0.0
    %2440 = vmatmul.mubr.f32.gmra.mrb[0].mxu0 %v2373
    %v2441 = vpop.f32.mrb[0].mxu0
    %v2442 = vadd.f32 %v2370, %v2441
    %v2443 = vpop.f32.mrb[0].mxu0
    %2444 = vdwg.mxu0
    %v2445 = vxor.u32 %v2442, 2147483648
    %v2446 = vmul.f32 %v2445, 1.442695
    %v2447 = vpow.pop %v2446
    %v2448 = vadd.f32 %v2447, 1.0
    %v2449 = vrcp.pop %v2448
    %v2450 = vmul.f32 1.0, %v2449
    %v2451 = vtanh.pop %v2442
    %v2452 = vmul.f32 %v2450, %v2369
    %2454 = vrot.lane.b32.xlu0 %v2451, 96
    %v2455 = vpop.permute.xlu0 %2454
    %v2457 = vmul.f32 %v2450, %v2455
    %2459 = vrot.lane.b32.xlu0 %v2457, 64
    %v2460 = vpop.permute.xlu0 %2459
    %v2462 = vadd.f32 %v2452, %v2460
    %v2463 = vtanh.pop %v2462
    %2465 = vrot.lane.b32.xlu0 %v2463, 32
    %v2466 = vpop.permute.xlu0 %2465
    %v2468 = vmul.f32 %v2450, %v2466
    %2470 = vrot.lane.b32.xlu0 %v2468, 96
    %v2471 = vpop.permute.xlu0 %2470
    %2473 = vst.msk [vmem:[#allocation2 + $0x1] sm:$0x1] %vm343, %v2471
    %2474 = vst.msk [vmem:[#allocation3 + $0x1] sm:$0x1] %vm343, %v2462
    %2475 = vmatprep.subr.mxu0 0.0
    %2476 = vmatpush1.msra.mxu0 %v227
    %2477 = vmatprep.subr.mxu0 0.0
    %2478 = vmatpush1.msra.mxu0 %v228
    %2479 = vmatprep.subr.mxu0 0.0
    %2480 = vmatpush1.msra.mxu0 %v229
    %2481 = vmatprep.subr.mxu0 0.0
    %2482 = vmatpush1.msra.mxu0 %v230
    %2483 = vmatprep.subr.mxu0 0.0
    %2484 = vmatpush1.msra.mxu0 0.0
    %2485 = vmatprep.subr.mxu0 0.0
    %2486 = vmatpush1.msra.mxu0 0.0
    %2487 = vmatprep.subr.mxu0 0.0
    %2488 = vmatpush1.msra.mxu0 0.0
    %2489 = vmatprep.subr.mxu0 0.0
    %2490 = vmatpush1.msra.mxu0 0.0
    %2491 = vmatprep.subr.mxu0 0.0
    %2492 = vmatpush1.msra.mxu0 0.0
    %2493 = vmatprep.subr.mxu0 0.0
    %2494 = vmatpush1.msra.mxu0 0.0
    %2495 = vmatprep.subr.mxu0 0.0
    %2496 = vmatpush1.msra.mxu0 0.0
    %2497 = vmatprep.subr.mxu0 0.0
    %2498 = vmatpush1.msra.mxu0 0.0
    %2499 = vmatprep.subr.mxu0 0.0
    %2500 = vmatpush1.msra.mxu0 0.0
    %2501 = vmatprep.subr.mxu0 0.0
    %2502 = vmatpush1.msra.mxu0 0.0
    %2503 = vmatprep.subr.mxu0 0.0
    %2504 = vmatpush1.msra.mxu0 0.0
    %2505 = vmatprep.subr.mxu0 0.0
    %2506 = vmatpush1.msra.mxu0 0.0
    %2507 = vmatprep.subr.mxu0 0.0
    %2508 = vmatpush1.msra.mxu0 0.0
    %2509 = vmatprep.subr.mxu0 0.0
    %2510 = vmatpush1.msra.mxu0 0.0
    %2511 = vmatprep.subr.mxu0 0.0
    %2512 = vmatpush1.msra.mxu0 0.0
    %2513 = vmatprep.subr.mxu0 0.0
    %2514 = vmatpush1.msra.mxu0 0.0
    %2515 = vmatprep.subr.mxu0 0.0
    %2516 = vmatpush1.msra.mxu0 0.0
    %2517 = vmatprep.subr.mxu0 0.0
    %2518 = vmatpush1.msra.mxu0 0.0
    %2519 = vmatprep.subr.mxu0 0.0
    %2520 = vmatpush1.msra.mxu0 0.0
    %2521 = vmatprep.subr.mxu0 0.0
    %2522 = vmatpush1.msra.mxu0 0.0
    %2523 = vmatprep.subr.mxu0 0.0
    %2524 = vmatpush1.msra.mxu0 0.0
    %2525 = vmatprep.subr.mxu0 0.0
    %2526 = vmatpush1.msra.mxu0 0.0
    %2527 = vmatprep.subr.mxu0 0.0
    %2528 = vmatpush1.msra.mxu0 0.0
    %2529 = vmatprep.subr.mxu0 0.0
    %2530 = vmatpush1.msra.mxu0 0.0
    %2531 = vmatprep.subr.mxu0 0.0
    %2532 = vmatpush1.msra.mxu0 0.0
    %2533 = vmatprep.subr.mxu0 0.0
    %2534 = vmatpush1.msra.mxu0 0.0
    %2535 = vmatprep.subr.mxu0 0.0
    %2536 = vmatpush1.msra.mxu0 0.0
    %2537 = vmatprep.subr.mxu0 0.0
    %2538 = vmatpush1.msra.mxu0 0.0
    %2539 = vmatprep.mubr.f32.mxu0 0.0
    %2540 = vmatmul.mubr.f32.gmra.mrb[0].mxu0 %v2373
    %v2541 = vpop.f32.mrb[0].mxu0
    %v2542 = vadd.f32 0.0, %v2541
    %v2543 = vpop.f32.mrb[0].mxu0
    %2544 = vdwg.mxu0
    %v2545 = vsel %vm241, %v2471, 0
    %2547 = vmatprep.subr.mxu0 0.0
    %2548 = vmatpush1.msra.mxu0 %v223
    %2549 = vmatprep.subr.mxu0 0.0
    %2550 = vmatpush1.msra.mxu0 %v224
    %2551 = vmatprep.subr.mxu0 0.0
    %2552 = vmatpush1.msra.mxu0 %v225
    %2553 = vmatprep.subr.mxu0 0.0
    %2554 = vmatpush1.msra.mxu0 %v226
    %2555 = vmatprep.subr.mxu0 0.0
    %2556 = vmatpush1.msra.mxu0 0.0
    %2557 = vmatprep.subr.mxu0 0.0
    %2558 = vmatpush1.msra.mxu0 0.0
    %2559 = vmatprep.subr.mxu0 0.0
    %2560 = vmatpush1.msra.mxu0 0.0
    %2561 = vmatprep.subr.mxu0 0.0
    %2562 = vmatpush1.msra.mxu0 0.0
    %2563 = vmatprep.subr.mxu0 0.0
    %2564 = vmatpush1.msra.mxu0 0.0
    %2565 = vmatprep.subr.mxu0 0.0
    %2566 = vmatpush1.msra.mxu0 0.0
    %2567 = vmatprep.subr.mxu0 0.0
    %2568 = vmatpush1.msra.mxu0 0.0
    %2569 = vmatprep.subr.mxu0 0.0
    %2570 = vmatpush1.msra.mxu0 0.0
    %2571 = vmatprep.subr.mxu0 0.0
    %2572 = vmatpush1.msra.mxu0 0.0
    %2573 = vmatprep.subr.mxu0 0.0
    %2574 = vmatpush1.msra.mxu0 0.0
    %2575 = vmatprep.subr.mxu0 0.0
    %2576 = vmatpush1.msra.mxu0 0.0
    %2577 = vmatprep.subr.mxu0 0.0
    %2578 = vmatpush1.msra.mxu0 0.0
    %2579 = vmatprep.subr.mxu0 0.0
    %2580 = vmatpush1.msra.mxu0 0.0
    %2581 = vmatprep.subr.mxu0 0.0
    %2582 = vmatpush1.msra.mxu0 0.0
    %2583 = vmatprep.subr.mxu0 0.0
    %2584 = vmatpush1.msra.mxu0 0.0
    %2585 = vmatprep.subr.mxu0 0.0
    %2586 = vmatpush1.msra.mxu0 0.0
    %2587 = vmatprep.subr.mxu0 0.0
    %2588 = vmatpush1.msra.mxu0 0.0
    %2589 = vmatprep.subr.mxu0 0.0
    %2590 = vmatpush1.msra.mxu0 0.0
    %2591 = vmatprep.subr.mxu0 0.0
    %2592 = vmatpush1.msra.mxu0 0.0
    %2593 = vmatprep.subr.mxu0 0.0
    %2594 = vmatpush1.msra.mxu0 0.0
    %2595 = vmatprep.subr.mxu0 0.0
    %2596 = vmatpush1.msra.mxu0 0.0
    %2597 = vmatprep.subr.mxu0 0.0
    %2598 = vmatpush1.msra.mxu0 0.0
    %2599 = vmatprep.subr.mxu0 0.0
    %2600 = vmatpush1.msra.mxu0 0.0
    %2601 = vmatprep.subr.mxu0 0.0
    %2602 = vmatpush1.msra.mxu0 0.0
    %2603 = vmatprep.subr.mxu0 0.0
    %2604 = vmatpush1.msra.mxu0 0.0
    %2605 = vmatprep.subr.mxu0 0.0
    %2606 = vmatpush1.msra.mxu0 0.0
    %2607 = vmatprep.subr.mxu0 0.0
    %2608 = vmatpush1.msra.mxu0 0.0
    %2609 = vmatprep.subr.mxu0 0.0
    %2610 = vmatpush1.msra.mxu0 0.0
    %2611 = vmatprep.mubr.f32.mxu0 0.0
    %2612 = vmatmul.mubr.f32.gmra.mrb[0].mxu0 %v2545
    %v2613 = vpop.f32.mrb[0].mxu0
    %v2614 = vadd.f32 %v2542, %v2613
    %v2615 = vpop.f32.mrb[0].mxu0
    %2616 = vdwg.mxu0
    %v2617 = vrot.slane %v211, 7
    %v2619 = vadd.f32 %v2614, %v2617
    %v2620 = vtanh.pop %v2619
    %v2621 = vmul.f32 %v2620, %v231
    %v2622 = vsel %vm491, %v2621, 0.0
    %2623 = vadd.xlane.f32.xlu0 %v2622
    %v2624 = vpop.xlane.xlu0 %2623
    %2625 = vst.msk [vmem:[#allocation4 + $0x1] sm:$0x1] %vm495, %v2624
    %v2626 = vld [vmem:[#allocation4] sm:$0x3f]
    %v2627 = vsel %vm239, %v2626, -inf
    %2628 = vmax.xlane.f32.xlu0 %v2627
    %v2629 = vpop.xlane.xlu0 %2628
    %v2630 = vrot.slane %v2629, 4
    %v2631 = vmax.f32 %v2629, %v2630
    %v2632 = vrot.slane %v2631, 2
    %v2633 = vmax.f32 %v2631, %v2632
    %v2634 = vrot.slane %v2633, 1
    %v2635 = vmax.f32 %v2633, %v2634
    %s2636 = vtos %v2635
    %v2637 = vstv %s2636
    %v2638 = vsub.f32 %v2626, %v2637
    %v2639 = vmul.f32 %v2638, 1.442695
    %v2640 = vpow.pop %v2639
    %v2641 = vsel %vm239, %v2640, 0.0
    %2642 = vadd.xlane.f32.xlu0 %v2641
    %v2643 = vpop.xlane.xlu0 %2642
    %v2644 = vrot.slane %v2643, 4
    %v2645 = vadd.f32 %v2643, %v2644
    %v2646 = vrot.slane %v2645, 2
    %v2647 = vadd.f32 %v2645, %v2646
    %v2648 = vrot.slane %v2647, 1
    %v2649 = vadd.f32 %v2647, %v2648
    %s2650 = vtos %v2649
    %v2651 = vstv %s2650
    %v2652 = vrcp.pop %v2651
    %v2653 = vmul.f32 %v2640, %v2652
    %v2654 = vld [vmem:[#allocation2] sm:$0x3f]
    %2656 = vset.pattern.permute.xlu0 0
    %2657 = vperm.xlu0 %2656, %v2653
    %v2658 = vpop.permute.xlu0 %2657
    %v2660 = vmul.f32 %v2658, %v2654
    %v2661 = vsel %vm532, %v2660, 0.0
    %v2662 = vrot.slane %v2661, 4
    %v2663 = vadd.f32 %v2661, %v2662
    %v2664 = vrot.slane %v2663, 2
    %v2665 = vadd.f32 %v2663, %v2664
    %v2666 = vrot.slane %v2665, 1
    %v2667 = vadd.f32 %v2665, %v2666
    %v2668 = vld [vmem:[#allocation3] sm:$0x3f]
    %v2669 = vmul.f32 %v2658, %v2668
    %v2670 = vsel %vm532, %v2669, 0.0
    %v2671 = vrot.slane %v2670, 4
    %v2672 = vadd.f32 %v2670, %v2671
    %v2673 = vrot.slane %v2672, 2
    %v2674 = vadd.f32 %v2672, %v2673
    %v2675 = vrot.slane %v2674, 1
    %v2676 = vadd.f32 %v2674, %v2675
    %v2678 = vsel %vm241, %v2667, 0
    %2680 = vmatprep.subr.mxu0 0.0
    %2681 = vmatpush1.msra.mxu0 %v219
    %2682 = vmatprep.subr.mxu0 0.0
    %2683 = vmatpush1.msra.mxu0 %v220
    %2684 = vmatprep.subr.mxu0 0.0
    %2685 = vmatpush1.msra.mxu0 %v221
    %2686 = vmatprep.subr.mxu0 0.0
    %2687 = vmatpush1.msra.mxu0 %v222
    %2688 = vmatprep.subr.mxu0 0.0
    %2689 = vmatpush1.msra.mxu0 0.0
    %2690 = vmatprep.subr.mxu0 0.0
    %2691 = vmatpush1.msra.mxu0 0.0
    %2692 = vmatprep.subr.mxu0 0.0
    %2693 = vmatpush1.msra.mxu0 0.0
    %2694 = vmatprep.subr.mxu0 0.0
    %2695 = vmatpush1.msra.mxu0 0.0
    %2696 = vmatprep.subr.mxu0 0.0
    %2697 = vmatpush1.msra.mxu0 0.0
    %2698 = vmatprep.subr.mxu0 0.0
    %2699 = vmatpush1.msra.mxu0 0.0
    %2700 = vmatprep.subr.mxu0 0.0
    %2701 = vmatpush1.msra.mxu0 0.0
    %2702 = vmatprep.subr.mxu0 0.0
    %2703 = vmatpush1.msra.mxu0 0.0
    %2704 = vmatprep.subr.mxu0 0.0
    %2705 = vmatpush1.msra.mxu0 0.0
    %2706 = vmatprep.subr.mxu0 0.0
    %2707 = vmatpush1.msra.mxu0 0.0
    %2708 = vmatprep.subr.mxu0 0.0
    %2709 = vmatpush1.msra.mxu0 0.0
    %2710 = vmatprep.subr.mxu0 0.0
    %2711 = vmatpush1.msra.mxu0 0.0
    %2712 = vmatprep.subr.mxu0 0.0
    %2713 = vmatpush1.msra.mxu0 0.0
    %2714 = vmatprep.subr.mxu0 0.0
    %2715 = vmatpush1.msra.mxu0 0.0
    %2716 = vmatprep.subr.mxu0 0.0
    %2717 = vmatpush1.msra.mxu0 0.0
    %2718 = vmatprep.subr.mxu0 0.0
    %2719 = vmatpush1.msra.mxu0 0.0
    %2720 = vmatprep.subr.mxu0 0.0
    %2721 = vmatpush1.msra.mxu0 0.0
    %2722 = vmatprep.subr.mxu0 0.0
    %2723 = vmatpush1.msra.mxu0 0.0
    %2724 = vmatprep.subr.mxu0 0.0
    %2725 = vmatpush1.msra.mxu0 0.0
    %2726 = vmatprep.subr.mxu0 0.0
    %2727 = vmatpush1.msra.mxu0 0.0
    %2728 = vmatprep.subr.mxu0 0.0
    %2729 = vmatpush1.msra.mxu0 0.0
    %2730 = vmatprep.subr.mxu0 0.0
    %2731 = vmatpush1.msra.mxu0 0.0
    %2732 = vmatprep.subr.mxu0 0.0
    %2733 = vmatpush1.msra.mxu0 0.0
    %2734 = vmatprep.subr.mxu0 0.0
    %2735 = vmatpush1.msra.mxu0 0.0
    %2736 = vmatprep.subr.mxu0 0.0
    %2737 = vmatpush1.msra.mxu0 0.0
    %2738 = vmatprep.subr.mxu0 0.0
    %2739 = vmatpush1.msra.mxu0 0.0
    %2740 = vmatprep.subr.mxu0 0.0
    %2741 = vmatpush1.msra.mxu0 0.0
    %2742 = vmatprep.subr.mxu0 0.0
    %2743 = vmatpush1.msra.mxu0 0.0
    %2744 = vmatprep.mubr.f32.mxu0 0.0
    %2745 = vmatmul.mubr.f32.gmra.mrb[0].mxu0 %v2678
    %v2746 = vpop.f32.mrb[0].mxu0
    %v2747 = vadd.f32 %v215, %v2746
    %v2748 = vpop.f32.mrb[0].mxu0
    %2749 = vdwg.mxu0
    %v2750 = vxor.u32 %v2747, 2147483648
    %v2751 = vmul.f32 %v2750, 1.442695
    %v2752 = vpow.pop %v2751
    %v2753 = vadd.f32 %v2752, 1.0
    %v2754 = vrcp.pop %v2753
    %v2755 = vmul.f32 1.0, %v2754
    %v2756 = vtanh.pop %v2747
    %v2757 = vmul.f32 %v2755, %v2676
    %2759 = vrot.lane.b32.xlu0 %v2756, 96
    %v2760 = vpop.permute.xlu0 %2759
    %v2762 = vmul.f32 %v2755, %v2760
    %2764 = vrot.lane.b32.xlu0 %v2762, 64
    %v2765 = vpop.permute.xlu0 %2764
    %v2767 = vadd.f32 %v2757, %v2765
    %v2768 = vtanh.pop %v2767
    %2770 = vrot.lane.b32.xlu0 %v2768, 32
    %v2771 = vpop.permute.xlu0 %2770
    %v2773 = vmul.f32 %v2755, %v2771
    %2775 = vrot.lane.b32.xlu0 %v2773, 96
    %v2776 = vpop.permute.xlu0 %2775
    %2778 = vst.msk [vmem:[#allocation2 + $0x2] sm:$0x1] %vm343, %v2776
    %2779 = vst.msk [vmem:[#allocation3 + $0x2] sm:$0x1] %vm343, %v2767
    %2780 = vmatprep.subr.mxu0 0.0
    %2781 = vmatpush1.msra.mxu0 %v227
    %2782 = vmatprep.subr.mxu0 0.0
    %2783 = vmatpush1.msra.mxu0 %v228
    %2784 = vmatprep.subr.mxu0 0.0
    %2785 = vmatpush1.msra.mxu0 %v229
    %2786 = vmatprep.subr.mxu0 0.0
    %2787 = vmatpush1.msra.mxu0 %v230
    %2788 = vmatprep.subr.mxu0 0.0
    %2789 = vmatpush1.msra.mxu0 0.0
    %2790 = vmatprep.subr.mxu0 0.0
    %2791 = vmatpush1.msra.mxu0 0.0
    %2792 = vmatprep.subr.mxu0 0.0
    %2793 = vmatpush1.msra.mxu0 0.0
    %2794 = vmatprep.subr.mxu0 0.0
    %2795 = vmatpush1.msra.mxu0 0.0
    %2796 = vmatprep.subr.mxu0 0.0
    %2797 = vmatpush1.msra.mxu0 0.0
    %2798 = vmatprep.subr.mxu0 0.0
    %2799 = vmatpush1.msra.mxu0 0.0
    %2800 = vmatprep.subr.mxu0 0.0
    %2801 = vmatpush1.msra.mxu0 0.0
    %2802 = vmatprep.subr.mxu0 0.0
    %2803 = vmatpush1.msra.mxu0 0.0
    %2804 = vmatprep.subr.mxu0 0.0
    %2805 = vmatpush1.msra.mxu0 0.0
    %2806 = vmatprep.subr.mxu0 0.0
    %2807 = vmatpush1.msra.mxu0 0.0
    %2808 = vmatprep.subr.mxu0 0.0
    %2809 = vmatpush1.msra.mxu0 0.0
    %2810 = vmatprep.subr.mxu0 0.0
    %2811 = vmatpush1.msra.mxu0 0.0
    %2812 = vmatprep.subr.mxu0 0.0
    %2813 = vmatpush1.msra.mxu0 0.0
    %2814 = vmatprep.subr.mxu0 0.0
    %2815 = vmatpush1.msra.mxu0 0.0
    %2816 = vmatprep.subr.mxu0 0.0
    %2817 = vmatpush1.msra.mxu0 0.0
    %2818 = vmatprep.subr.mxu0 0.0
    %2819 = vmatpush1.msra.mxu0 0.0
    %2820 = vmatprep.subr.mxu0 0.0
    %2821 = vmatpush1.msra.mxu0 0.0
    %2822 = vmatprep.subr.mxu0 0.0
    %2823 = vmatpush1.msra.mxu0 0.0
    %2824 = vmatprep.subr.mxu0 0.0
    %2825 = vmatpush1.msra.mxu0 0.0
    %2826 = vmatprep.subr.mxu0 0.0
    %2827 = vmatpush1.msra.mxu0 0.0
    %2828 = vmatprep.subr.mxu0 0.0
    %2829 = vmatpush1.msra.mxu0 0.0
    %2830 = vmatprep.subr.mxu0 0.0
    %2831 = vmatpush1.msra.mxu0 0.0
    %2832 = vmatprep.subr.mxu0 0.0
    %2833 = vmatpush1.msra.mxu0 0.0
    %2834 = vmatprep.subr.mxu0 0.0
    %2835 = vmatpush1.msra.mxu0 0.0
    %2836 = vmatprep.subr.mxu0 0.0
    %2837 = vmatpush1.msra.mxu0 0.0
    %2838 = vmatprep.subr.mxu0 0.0
    %2839 = vmatpush1.msra.mxu0 0.0
    %2840 = vmatprep.subr.mxu0 0.0
    %2841 = vmatpush1.msra.mxu0 0.0
    %2842 = vmatprep.subr.mxu0 0.0
    %2843 = vmatpush1.msra.mxu0 0.0
    %2844 = vmatprep.mubr.f32.mxu0 0.0
    %2845 = vmatmul.mubr.f32.gmra.mrb[0].mxu0 %v2678
    %v2846 = vpop.f32.mrb[0].mxu0
    %v2847 = vadd.f32 0.0, %v2846
    %v2848 = vpop.f32.mrb[0].mxu0
    %2849 = vdwg.mxu0
    %v2850 = vsel %vm241, %v2776, 0
    %2852 = vmatprep.subr.mxu0 0.0
    %2853 = vmatpush1.msra.mxu0 %v223
    %2854 = vmatprep.subr.mxu0 0.0
    %2855 = vmatpush1.msra.mxu0 %v224
    %2856 = vmatprep.subr.mxu0 0.0
    %2857 = vmatpush1.msra.mxu0 %v225
    %2858 = vmatprep.subr.mxu0 0.0
    %2859 = vmatpush1.msra.mxu0 %v226
    %2860 = vmatprep.subr.mxu0 0.0
    %2861 = vmatpush1.msra.mxu0 0.0
    %2862 = vmatprep.subr.mxu0 0.0
    %2863 = vmatpush1.msra.mxu0 0.0
    %2864 = vmatprep.subr.mxu0 0.0
    %2865 = vmatpush1.msra.mxu0 0.0
    %2866 = vmatprep.subr.mxu0 0.0
    %2867 = vmatpush1.msra.mxu0 0.0
    %2868 = vmatprep.subr.mxu0 0.0
    %2869 = vmatpush1.msra.mxu0 0.0
    %2870 = vmatprep.subr.mxu0 0.0
    %2871 = vmatpush1.msra.mxu0 0.0
    %2872 = vmatprep.subr.mxu0 0.0
    %2873 = vmatpush1.msra.mxu0 0.0
    %2874 = vmatprep.subr.mxu0 0.0
    %2875 = vmatpush1.msra.mxu0 0.0
    %2876 = vmatprep.subr.mxu0 0.0
    %2877 = vmatpush1.msra.mxu0 0.0
    %2878 = vmatprep.subr.mxu0 0.0
    %2879 = vmatpush1.msra.mxu0 0.0
    %2880 = vmatprep.subr.mxu0 0.0
    %2881 = vmatpush1.msra.mxu0 0.0
    %2882 = vmatprep.subr.mxu0 0.0
    %2883 = vmatpush1.msra.mxu0 0.0
    %2884 = vmatprep.subr.mxu0 0.0
    %2885 = vmatpush1.msra.mxu0 0.0
    %2886 = vmatprep.subr.mxu0 0.0
    %2887 = vmatpush1.msra.mxu0 0.0
    %2888 = vmatprep.subr.mxu0 0.0
    %2889 = vmatpush1.msra.mxu0 0.0
    %2890 = vmatprep.subr.mxu0 0.0
    %2891 = vmatpush1.msra.mxu0 0.0
    %2892 = vmatprep.subr.mxu0 0.0
    %2893 = vmatpush1.msra.mxu0 0.0
    %2894 = vmatprep.subr.mxu0 0.0
    %2895 = vmatpush1.msra.mxu0 0.0
    %2896 = vmatprep.subr.mxu0 0.0
    %2897 = vmatpush1.msra.mxu0 0.0
    %2898 = vmatprep.subr.mxu0 0.0
    %2899 = vmatpush1.msra.mxu0 0.0
    %2900 = vmatprep.subr.mxu0 0.0
    %2901 = vmatpush1.msra.mxu0 0.0
    %2902 = vmatprep.subr.mxu0 0.0
    %2903 = vmatpush1.msra.mxu0 0.0
    %2904 = vmatprep.subr.mxu0 0.0
    %2905 = vmatpush1.msra.mxu0 0.0
    %2906 = vmatprep.subr.mxu0 0.0
    %2907 = vmatpush1.msra.mxu0 0.0
    %2908 = vmatprep.subr.mxu0 0.0
    %2909 = vmatpush1.msra.mxu0 0.0
    %2910 = vmatprep.subr.mxu0 0.0
    %2911 = vmatpush1.msra.mxu0 0.0
    %2912 = vmatprep.subr.mxu0 0.0
    %2913 = vmatpush1.msra.mxu0 0.0
    %2914 = vmatprep.subr.mxu0 0.0
    %2915 = vmatpush1.msra.mxu0 0.0
    %2916 = vmatprep.mubr.f32.mxu0 0.0
    %2917 = vmatmul.mubr.f32.gmra.mrb[0].mxu0 %v2850
    %v2918 = vpop.f32.mrb[0].mxu0
    %v2919 = vadd.f32 %v2847, %v2918
    %v2920 = vpop.f32.mrb[0].mxu0
    %2921 = vdwg.mxu0
    %v2922 = vadd.f32 %v2919, %v217
    %v2923 = vtanh.pop %v2922
    %v2924 = vmul.f32 %v2923, %v231
    %v2925 = vsel %vm491, %v2924, 0.0
    %2926 = vadd.xlane.f32.xlu0 %v2925
    %v2927 = vpop.xlane.xlu0 %2926
    %2928 = vst.msk [vmem:[#allocation4 + $0x2] sm:$0x1] %vm495, %v2927
    %v2929 = vld [vmem:[#allocation4] sm:$0x3f]
    %v2930 = vsel %vm239, %v2929, -inf
    %2931 = vmax.xlane.f32.xlu0 %v2930
    %v2932 = vpop.xlane.xlu0 %2931
    %v2933 = vrot.slane %v2932, 4
    %v2934 = vmax.f32 %v2932, %v2933
    %v2935 = vrot.slane %v2934, 2
    %v2936 = vmax.f32 %v2934, %v2935
    %v2937 = vrot.slane %v2936, 1
    %v2938 = vmax.f32 %v2936, %v2937
    %s2939 = vtos %v2938
    %v2940 = vstv %s2939
    %v2941 = vsub.f32 %v2929, %v2940
    %v2942 = vmul.f32 %v2941, 1.442695
    %v2943 = vpow.pop %v2942
    %v2944 = vsel %vm239, %v2943, 0.0
    %2945 = vadd.xlane.f32.xlu0 %v2944
    %v2946 = vpop.xlane.xlu0 %2945
    %v2947 = vrot.slane %v2946, 4
    %v2948 = vadd.f32 %v2946, %v2947
    %v2949 = vrot.slane %v2948, 2
    %v2950 = vadd.f32 %v2948, %v2949
    %v2951 = vrot.slane %v2950, 1
    %v2952 = vadd.f32 %v2950, %v2951
    %s2953 = vtos %v2952
    %v2954 = vstv %s2953
    %v2955 = vrcp.pop %v2954
    %v2956 = vmul.f32 %v2943, %v2955
    %v2957 = vld [vmem:[#allocation2] sm:$0x3f]
    %2959 = vset.pattern.permute.xlu0 0
    %2960 = vperm.xlu0 %2959, %v2956
    %v2961 = vpop.permute.xlu0 %2960
    %v2963 = vmul.f32 %v2961, %v2957
    %v2964 = vsel %vm532, %v2963, 0.0
    %v2965 = vrot.slane %v2964, 4
    %v2966 = vadd.f32 %v2964, %v2965
    %v2967 = vrot.slane %v2966, 2
    %v2968 = vadd.f32 %v2966, %v2967
    %v2969 = vrot.slane %v2968, 1
    %v2970 = vadd.f32 %v2968, %v2969
    %v2971 = vld [vmem:[#allocation3] sm:$0x3f]
    %v2972 = vmul.f32 %v2961, %v2971
    %v2973 = vsel %vm532, %v2972, 0.0
    %v2974 = vrot.slane %v2973, 4
    %v2975 = vadd.f32 %v2973, %v2974
    %v2976 = vrot.slane %v2975, 2
    %v2977 = vadd.f32 %v2975, %v2976
    %v2978 = vrot.slane %v2977, 1
    %v2979 = vadd.f32 %v2977, %v2978
    %v2981 = vrot.slane %v215, 1
    %v2984 = vsel %vm241, %v2970, 0
    %2986 = vmatprep.subr.mxu0 0.0
    %2987 = vmatpush1.msra.mxu0 %v219
    %2988 = vmatprep.subr.mxu0 0.0
    %2989 = vmatpush1.msra.mxu0 %v220
    %2990 = vmatprep.subr.mxu0 0.0
    %2991 = vmatpush1.msra.mxu0 %v221
    %2992 = vmatprep.subr.mxu0 0.0
    %2993 = vmatpush1.msra.mxu0 %v222
    %2994 = vmatprep.subr.mxu0 0.0
    %2995 = vmatpush1.msra.mxu0 0.0
    %2996 = vmatprep.subr.mxu0 0.0
    %2997 = vmatpush1.msra.mxu0 0.0
    %2998 = vmatprep.subr.mxu0 0.0
    %2999 = vmatpush1.msra.mxu0 0.0
    %3000 = vmatprep.subr.mxu0 0.0
    %3001 = vmatpush1.msra.mxu0 0.0
    %3002 = vmatprep.subr.mxu0 0.0
    %3003 = vmatpush1.msra.mxu0 0.0
    %3004 = vmatprep.subr.mxu0 0.0
    %3005 = vmatpush1.msra.mxu0 0.0
    %3006 = vmatprep.subr.mxu0 0.0
    %3007 = vmatpush1.msra.mxu0 0.0
    %3008 = vmatprep.subr.mxu0 0.0
    %3009 = vmatpush1.msra.mxu0 0.0
    %3010 = vmatprep.subr.mxu0 0.0
    %3011 = vmatpush1.msra.mxu0 0.0
    %3012 = vmatprep.subr.mxu0 0.0
    %3013 = vmatpush1.msra.mxu0 0.0
    %3014 = vmatprep.subr.mxu0 0.0
    %3015 = vmatpush1.msra.mxu0 0.0
    %3016 = vmatprep.subr.mxu0 0.0
    %3017 = vmatpush1.msra.mxu0 0.0
    %3018 = vmatprep.subr.mxu0 0.0
    %3019 = vmatpush1.msra.mxu0 0.0
    %3020 = vmatprep.subr.mxu0 0.0
    %3021 = vmatpush1.msra.mxu0 0.0
    %3022 = vmatprep.subr.mxu0 0.0
    %3023 = vmatpush1.msra.mxu0 0.0
    %3024 = vmatprep.subr.mxu0 0.0
    %3025 = vmatpush1.msra.mxu0 0.0
    %3026 = vmatprep.subr.mxu0 0.0
    %3027 = vmatpush1.msra.mxu0 0.0
    %3028 = vmatprep.subr.mxu0 0.0
    %3029 = vmatpush1.msra.mxu0 0.0
    %3030 = vmatprep.subr.mxu0 0.0
    %3031 = vmatpush1.msra.mxu0 0.0
    %3032 = vmatprep.subr.mxu0 0.0
    %3033 = vmatpush1.msra.mxu0 0.0
    %3034 = vmatprep.subr.mxu0 0.0
    %3035 = vmatpush1.msra.mxu0 0.0
    %3036 = vmatprep.subr.mxu0 0.0
    %3037 = vmatpush1.msra.mxu0 0.0
    %3038 = vmatprep.subr.mxu0 0.0
    %3039 = vmatpush1.msra.mxu0 0.0
    %3040 = vmatprep.subr.mxu0 0.0
    %3041 = vmatpush1.msra.mxu0 0.0
    %3042 = vmatprep.subr.mxu0 0.0
    %3043 = vmatpush1.msra.mxu0 0.0
    %3044 = vmatprep.subr.mxu0 0.0
    %3045 = vmatpush1.msra.mxu0 0.0
    %3046 = vmatprep.subr.mxu0 0.0
    %3047 = vmatpush1.msra.mxu0 0.0
    %3048 = vmatprep.subr.mxu0 0.0
    %3049 = vmatpush1.msra.mxu0 0.0
    %3050 = vmatprep.mubr.f32.mxu0 0.0
    %3051 = vmatmul.mubr.f32.gmra.mrb[0].mxu0 %v2984
    %v3052 = vpop.f32.mrb[0].mxu0
    %v3053 = vadd.f32 %v2981, %v3052
    %v3054 = vpop.f32.mrb[0].mxu0
    %3055 = vdwg.mxu0
    %v3056 = vxor.u32 %v3053, 2147483648
    %v3057 = vmul.f32 %v3056, 1.442695
    %v3058 = vpow.pop %v3057
    %v3059 = vadd.f32 %v3058, 1.0
    %v3060 = vrcp.pop %v3059
    %v3061 = vmul.f32 1.0, %v3060
    %v3062 = vtanh.pop %v3053
    %v3063 = vmul.f32 %v3061, %v2979
    %3065 = vrot.lane.b32.xlu0 %v3062, 96
    %v3066 = vpop.permute.xlu0 %3065
    %v3068 = vmul.f32 %v3061, %v3066
    %3070 = vrot.lane.b32.xlu0 %v3068, 64
    %v3071 = vpop.permute.xlu0 %3070
    %v3073 = vadd.f32 %v3063, %v3071
    %v3074 = vtanh.pop %v3073
    %3076 = vrot.lane.b32.xlu0 %v3074, 32
    %v3077 = vpop.permute.xlu0 %3076
    %v3079 = vmul.f32 %v3061, %v3077
    %3081 = vrot.lane.b32.xlu0 %v3079, 96
    %v3082 = vpop.permute.xlu0 %3081
    %3084 = vst.msk [vmem:[#allocation2 + $0x3] sm:$0x1] %vm343, %v3082
    %3085 = vst.msk [vmem:[#allocation3 + $0x3] sm:$0x1] %vm343, %v3073
    %3086 = vmatprep.subr.mxu0 0.0
    %3087 = vmatpush1.msra.mxu0 %v227
    %3088 = vmatprep.subr.mxu0 0.0
    %3089 = vmatpush1.msra.mxu0 %v228
    %3090 = vmatprep.subr.mxu0 0.0
    %3091 = vmatpush1.msra.mxu0 %v229
    %3092 = vmatprep.subr.mxu0 0.0
    %3093 = vmatpush1.msra.mxu0 %v230
    %3094 = vmatprep.subr.mxu0 0.0
    %3095 = vmatpush1.msra.mxu0 0.0
    %3096 = vmatprep.subr.mxu0 0.0
    %3097 = vmatpush1.msra.mxu0 0.0
    %3098 = vmatprep.subr.mxu0 0.0
    %3099 = vmatpush1.msra.mxu0 0.0
    %3100 = vmatprep.subr.mxu0 0.0
    %3101 = vmatpush1.msra.mxu0 0.0
    %3102 = vmatprep.subr.mxu0 0.0
    %3103 = vmatpush1.msra.mxu0 0.0
    %3104 = vmatprep.subr.mxu0 0.0
    %3105 = vmatpush1.msra.mxu0 0.0
    %3106 = vmatprep.subr.mxu0 0.0
    %3107 = vmatpush1.msra.mxu0 0.0
    %3108 = vmatprep.subr.mxu0 0.0
    %3109 = vmatpush1.msra.mxu0 0.0
    %3110 = vmatprep.subr.mxu0 0.0
    %3111 = vmatpush1.msra.mxu0 0.0
    %3112 = vmatprep.subr.mxu0 0.0
    %3113 = vmatpush1.msra.mxu0 0.0
    %3114 = vmatprep.subr.mxu0 0.0
    %3115 = vmatpush1.msra.mxu0 0.0
    %3116 = vmatprep.subr.mxu0 0.0
    %3117 = vmatpush1.msra.mxu0 0.0
    %3118 = vmatprep.subr.mxu0 0.0
    %3119 = vmatpush1.msra.mxu0 0.0
    %3120 = vmatprep.subr.mxu0 0.0
    %3121 = vmatpush1.msra.mxu0 0.0
    %3122 = vmatprep.subr.mxu0 0.0
    %3123 = vmatpush1.msra.mxu0 0.0
    %3124 = vmatprep.subr.mxu0 0.0
    %3125 = vmatpush1.msra.mxu0 0.0
    %3126 = vmatprep.subr.mxu0 0.0
    %3127 = vmatpush1.msra.mxu0 0.0
    %3128 = vmatprep.subr.mxu0 0.0
    %3129 = vmatpush1.msra.mxu0 0.0
    %3130 = vmatprep.subr.mxu0 0.0
    %3131 = vmatpush1.msra.mxu0 0.0
    %3132 = vmatprep.subr.mxu0 0.0
    %3133 = vmatpush1.msra.mxu0 0.0
    %3134 = vmatprep.subr.mxu0 0.0
    %3135 = vmatpush1.msra.mxu0 0.0
    %3136 = vmatprep.subr.mxu0 0.0
    %3137 = vmatpush1.msra.mxu0 0.0
    %3138 = vmatprep.subr.mxu0 0.0
    %3139 = vmatpush1.msra.mxu0 0.0
    %3140 = vmatprep.subr.mxu0 0.0
    %3141 = vmatpush1.msra.mxu0 0.0
    %3142 = vmatprep.subr.mxu0 0.0
    %3143 = vmatpush1.msra.mxu0 0.0
    %3144 = vmatprep.subr.mxu0 0.0
    %3145 = vmatpush1.msra.mxu0 0.0
    %3146 = vmatprep.subr.mxu0 0.0
    %3147 = vmatpush1.msra.mxu0 0.0
    %3148 = vmatprep.subr.mxu0 0.0
    %3149 = vmatpush1.msra.mxu0 0.0
    %3150 = vmatprep.mubr.f32.mxu0 0.0
    %3151 = vmatmul.mubr.f32.gmra.mrb[0].mxu0 %v2984
    %v3152 = vpop.f32.mrb[0].mxu0
    %v3153 = vadd.f32 0.0, %v3152
    %v3154 = vpop.f32.mrb[0].mxu0
    %3155 = vdwg.mxu0
    %v3156 = vsel %vm241, %v3082, 0
    %3158 = vmatprep.subr.mxu0 0.0
    %3159 = vmatpush1.msra.mxu0 %v223
    %3160 = vmatprep.subr.mxu0 0.0
    %3161 = vmatpush1.msra.mxu0 %v224
    %3162 = vmatprep.subr.mxu0 0.0
    %3163 = vmatpush1.msra.mxu0 %v225
    %3164 = vmatprep.subr.mxu0 0.0
    %3165 = vmatpush1.msra.mxu0 %v226
    %3166 = vmatprep.subr.mxu0 0.0
    %3167 = vmatpush1.msra.mxu0 0.0
    %3168 = vmatprep.subr.mxu0 0.0
    %3169 = vmatpush1.msra.mxu0 0.0
    %3170 = vmatprep.subr.mxu0 0.0
    %3171 = vmatpush1.msra.mxu0 0.0
    %3172 = vmatprep.subr.mxu0 0.0
    %3173 = vmatpush1.msra.mxu0 0.0
    %3174 = vmatprep.subr.mxu0 0.0
    %3175 = vmatpush1.msra.mxu0 0.0
    %3176 = vmatprep.subr.mxu0 0.0
    %3177 = vmatpush1.msra.mxu0 0.0
    %3178 = vmatprep.subr.mxu0 0.0
    %3179 = vmatpush1.msra.mxu0 0.0
    %3180 = vmatprep.subr.mxu0 0.0
    %3181 = vmatpush1.msra.mxu0 0.0
    %3182 = vmatprep.subr.mxu0 0.0
    %3183 = vmatpush1.msra.mxu0 0.0
    %3184 = vmatprep.subr.mxu0 0.0
    %3185 = vmatpush1.msra.mxu0 0.0
    %3186 = vmatprep.subr.mxu0 0.0
    %3187 = vmatpush1.msra.mxu0 0.0
    %3188 = vmatprep.subr.mxu0 0.0
    %3189 = vmatpush1.msra.mxu0 0.0
    %3190 = vmatprep.subr.mxu0 0.0
    %3191 = vmatpush1.msra.mxu0 0.0
    %3192 = vmatprep.subr.mxu0 0.0
    %3193 = vmatpush1.msra.mxu0 0.0
    %3194 = vmatprep.subr.mxu0 0.0
    %3195 = vmatpush1.msra.mxu0 0.0
    %3196 = vmatprep.subr.mxu0 0.0
    %3197 = vmatpush1.msra.mxu0 0.0
    %3198 = vmatprep.subr.mxu0 0.0
    %3199 = vmatpush1.msra.mxu0 0.0
    %3200 = vmatprep.subr.mxu0 0.0
    %3201 = vmatpush1.msra.mxu0 0.0
    %3202 = vmatprep.subr.mxu0 0.0
    %3203 = vmatpush1.msra.mxu0 0.0
    %3204 = vmatprep.subr.mxu0 0.0
    %3205 = vmatpush1.msra.mxu0 0.0
    %3206 = vmatprep.subr.mxu0 0.0
    %3207 = vmatpush1.msra.mxu0 0.0
    %3208 = vmatprep.subr.mxu0 0.0
    %3209 = vmatpush1.msra.mxu0 0.0
    %3210 = vmatprep.subr.mxu0 0.0
    %3211 = vmatpush1.msra.mxu0 0.0
    %3212 = vmatprep.subr.mxu0 0.0
    %3213 = vmatpush1.msra.mxu0 0.0
    %3214 = vmatprep.subr.mxu0 0.0
    %3215 = vmatpush1.msra.mxu0 0.0
    %3216 = vmatprep.subr.mxu0 0.0
    %3217 = vmatpush1.msra.mxu0 0.0
    %3218 = vmatprep.subr.mxu0 0.0
    %3219 = vmatpush1.msra.mxu0 0.0
    %3220 = vmatprep.subr.mxu0 0.0
    %3221 = vmatpush1.msra.mxu0 0.0
    %3222 = vmatprep.mubr.f32.mxu0 0.0
    %3223 = vmatmul.mubr.f32.gmra.mrb[0].mxu0 %v3156
    %v3224 = vpop.f32.mrb[0].mxu0
    %v3225 = vadd.f32 %v3153, %v3224
    %v3226 = vpop.f32.mrb[0].mxu0
    %3227 = vdwg.mxu0
    %v3229 = vrot.slane %v217, 1
    %v3231 = vadd.f32 %v3225, %v3229
    %v3232 = vtanh.pop %v3231
    %v3233 = vmul.f32 %v3232, %v231
    %v3234 = vsel %vm491, %v3233, 0.0
    %3235 = vadd.xlane.f32.xlu0 %v3234
    %v3236 = vpop.xlane.xlu0 %3235
    %3237 = vst.msk [vmem:[#allocation4 + $0x3] sm:$0x1] %vm495, %v3236
    %v3238 = vld [vmem:[#allocation4] sm:$0x3f]
    %v3239 = vsel %vm239, %v3238, -inf
    %3240 = vmax.xlane.f32.xlu0 %v3239
    %v3241 = vpop.xlane.xlu0 %3240
    %v3242 = vrot.slane %v3241, 4
    %v3243 = vmax.f32 %v3241, %v3242
    %v3244 = vrot.slane %v3243, 2
    %v3245 = vmax.f32 %v3243, %v3244
    %v3246 = vrot.slane %v3245, 1
    %v3247 = vmax.f32 %v3245, %v3246
    %s3248 = vtos %v3247
    %v3249 = vstv %s3248
    %v3250 = vsub.f32 %v3238, %v3249
    %v3251 = vmul.f32 %v3250, 1.442695
    %v3252 = vpow.pop %v3251
    %v3253 = vsel %vm239, %v3252, 0.0
    %3254 = vadd.xlane.f32.xlu0 %v3253
    %v3255 = vpop.xlane.xlu0 %3254
    %v3256 = vrot.slane %v3255, 4
    %v3257 = vadd.f32 %v3255, %v3256
    %v3258 = vrot.slane %v3257, 2
    %v3259 = vadd.f32 %v3257, %v3258
    %v3260 = vrot.slane %v3259, 1
    %v3261 = vadd.f32 %v3259, %v3260
    %s3262 = vtos %v3261
    %v3263 = vstv %s3262
    %v3264 = vrcp.pop %v3263
    %v3265 = vmul.f32 %v3252, %v3264
    %v3266 = vld [vmem:[#allocation2] sm:$0x3f]
    %3268 = vset.pattern.permute.xlu0 0
    %3269 = vperm.xlu0 %3268, %v3265
    %v3270 = vpop.permute.xlu0 %3269
    %v3272 = vmul.f32 %v3270, %v3266
    %v3273 = vsel %vm532, %v3272, 0.0
    %v3274 = vrot.slane %v3273, 4
    %v3275 = vadd.f32 %v3273, %v3274
    %v3276 = vrot.slane %v3275, 2
    %v3277 = vadd.f32 %v3275, %v3276
    %v3278 = vrot.slane %v3277, 1
    %v3279 = vadd.f32 %v3277, %v3278
    %v3280 = vld [vmem:[#allocation3] sm:$0x3f]
    %v3281 = vmul.f32 %v3270, %v3280
    %v3282 = vsel %vm532, %v3281, 0.0
    %v3283 = vrot.slane %v3282, 4
    %v3284 = vadd.f32 %v3282, %v3283
    %v3285 = vrot.slane %v3284, 2
    %v3286 = vadd.f32 %v3284, %v3285
    %v3287 = vrot.slane %v3286, 1
    %v3288 = vadd.f32 %v3286, %v3287
    %v3289 = vrot.slane %v215, 2
    %v3292 = vsel %vm241, %v3279, 0
    %3294 = vmatprep.subr.mxu0 0.0
    %3295 = vmatpush1.msra.mxu0 %v219
    %3296 = vmatprep.subr.mxu0 0.0
    %3297 = vmatpush1.msra.mxu0 %v220
    %3298 = vmatprep.subr.mxu0 0.0
    %3299 = vmatpush1.msra.mxu0 %v221
    %3300 = vmatprep.subr.mxu0 0.0
    %3301 = vmatpush1.msra.mxu0 %v222
    %3302 = vmatprep.subr.mxu0 0.0
    %3303 = vmatpush1.msra.mxu0 0.0
    %3304 = vmatprep.subr.mxu0 0.0
    %3305 = vmatpush1.msra.mxu0 0.0
    %3306 = vmatprep.subr.mxu0 0.0
    %3307 = vmatpush1.msra.mxu0 0.0
    %3308 = vmatprep.subr.mxu0 0.0
    %3309 = vmatpush1.msra.mxu0 0.0
    %3310 = vmatprep.subr.mxu0 0.0
    %3311 = vmatpush1.msra.mxu0 0.0
    %3312 = vmatprep.subr.mxu0 0.0
    %3313 = vmatpush1.msra.mxu0 0.0
    %3314 = vmatprep.subr.mxu0 0.0
    %3315 = vmatpush1.msra.mxu0 0.0
    %3316 = vmatprep.subr.mxu0 0.0
    %3317 = vmatpush1.msra.mxu0 0.0
    %3318 = vmatprep.subr.mxu0 0.0
    %3319 = vmatpush1.msra.mxu0 0.0
    %3320 = vmatprep.subr.mxu0 0.0
    %3321 = vmatpush1.msra.mxu0 0.0
    %3322 = vmatprep.subr.mxu0 0.0
    %3323 = vmatpush1.msra.mxu0 0.0
    %3324 = vmatprep.subr.mxu0 0.0
    %3325 = vmatpush1.msra.mxu0 0.0
    %3326 = vmatprep.subr.mxu0 0.0
    %3327 = vmatpush1.msra.mxu0 0.0
    %3328 = vmatprep.subr.mxu0 0.0
    %3329 = vmatpush1.msra.mxu0 0.0
    %3330 = vmatprep.subr.mxu0 0.0
    %3331 = vmatpush1.msra.mxu0 0.0
    %3332 = vmatprep.subr.mxu0 0.0
    %3333 = vmatpush1.msra.mxu0 0.0
    %3334 = vmatprep.subr.mxu0 0.0
    %3335 = vmatpush1.msra.mxu0 0.0
    %3336 = vmatprep.subr.mxu0 0.0
    %3337 = vmatpush1.msra.mxu0 0.0
    %3338 = vmatprep.subr.mxu0 0.0
    %3339 = vmatpush1.msra.mxu0 0.0
    %3340 = vmatprep.subr.mxu0 0.0
    %3341 = vmatpush1.msra.mxu0 0.0
    %3342 = vmatprep.subr.mxu0 0.0
    %3343 = vmatpush1.msra.mxu0 0.0
    %3344 = vmatprep.subr.mxu0 0.0
    %3345 = vmatpush1.msra.mxu0 0.0
    %3346 = vmatprep.subr.mxu0 0.0
    %3347 = vmatpush1.msra.mxu0 0.0
    %3348 = vmatprep.subr.mxu0 0.0
    %3349 = vmatpush1.msra.mxu0 0.0
    %3350 = vmatprep.subr.mxu0 0.0
    %3351 = vmatpush1.msra.mxu0 0.0
    %3352 = vmatprep.subr.mxu0 0.0
    %3353 = vmatpush1.msra.mxu0 0.0
    %3354 = vmatprep.subr.mxu0 0.0
    %3355 = vmatpush1.msra.mxu0 0.0
    %3356 = vmatprep.subr.mxu0 0.0
    %3357 = vmatpush1.msra.mxu0 0.0
    %3358 = vmatprep.mubr.f32.mxu0 0.0
    %3359 = vmatmul.mubr.f32.gmra.mrb[0].mxu0 %v3292
    %v3360 = vpop.f32.mrb[0].mxu0
    %v3361 = vadd.f32 %v3289, %v3360
    %v3362 = vpop.f32.mrb[0].mxu0
    %3363 = vdwg.mxu0
    %v3364 = vxor.u32 %v3361, 2147483648
    %v3365 = vmul.f32 %v3364, 1.442695
    %v3366 = vpow.pop %v3365
    %v3367 = vadd.f32 %v3366, 1.0
    %v3368 = vrcp.pop %v3367
    %v3369 = vmul.f32 1.0, %v3368
    %v3370 = vtanh.pop %v3361
    %v3371 = vmul.f32 %v3369, %v3288
    %3373 = vrot.lane.b32.xlu0 %v3370, 96
    %v3374 = vpop.permute.xlu0 %3373
    %v3376 = vmul.f32 %v3369, %v3374
    %3378 = vrot.lane.b32.xlu0 %v3376, 64
    %v3379 = vpop.permute.xlu0 %3378
    %v3381 = vadd.f32 %v3371, %v3379
    %v3382 = vtanh.pop %v3381
    %3384 = vrot.lane.b32.xlu0 %v3382, 32
    %v3385 = vpop.permute.xlu0 %3384
    %v3387 = vmul.f32 %v3369, %v3385
    %3389 = vrot.lane.b32.xlu0 %v3387, 96
    %v3390 = vpop.permute.xlu0 %3389
    %3392 = vst.msk [vmem:[#allocation2 + $0x4] sm:$0x1] %vm343, %v3390
    %3393 = vst.msk [vmem:[#allocation3 + $0x4] sm:$0x1] %vm343, %v3381
    %3394 = vmatprep.subr.mxu0 0.0
    %3395 = vmatpush1.msra.mxu0 %v227
    %3396 = vmatprep.subr.mxu0 0.0
    %3397 = vmatpush1.msra.mxu0 %v228
    %3398 = vmatprep.subr.mxu0 0.0
    %3399 = vmatpush1.msra.mxu0 %v229
    %3400 = vmatprep.subr.mxu0 0.0
    %3401 = vmatpush1.msra.mxu0 %v230
    %3402 = vmatprep.subr.mxu0 0.0
    %3403 = vmatpush1.msra.mxu0 0.0
    %3404 = vmatprep.subr.mxu0 0.0
    %3405 = vmatpush1.msra.mxu0 0.0
    %3406 = vmatprep.subr.mxu0 0.0
    %3407 = vmatpush1.msra.mxu0 0.0
    %3408 = vmatprep.subr.mxu0 0.0
    %3409 = vmatpush1.msra.mxu0 0.0
    %3410 = vmatprep.subr.mxu0 0.0
    %3411 = vmatpush1.msra.mxu0 0.0
    %3412 = vmatprep.subr.mxu0 0.0
    %3413 = vmatpush1.msra.mxu0 0.0
    %3414 = vmatprep.subr.mxu0 0.0
    %3415 = vmatpush1.msra.mxu0 0.0
    %3416 = vmatprep.subr.mxu0 0.0
    %3417 = vmatpush1.msra.mxu0 0.0
    %3418 = vmatprep.subr.mxu0 0.0
    %3419 = vmatpush1.msra.mxu0 0.0
    %3420 = vmatprep.subr.mxu0 0.0
    %3421 = vmatpush1.msra.mxu0 0.0
    %3422 = vmatprep.subr.mxu0 0.0
    %3423 = vmatpush1.msra.mxu0 0.0
    %3424 = vmatprep.subr.mxu0 0.0
    %3425 = vmatpush1.msra.mxu0 0.0
    %3426 = vmatprep.subr.mxu0 0.0
    %3427 = vmatpush1.msra.mxu0 0.0
    %3428 = vmatprep.subr.mxu0 0.0
    %3429 = vmatpush1.msra.mxu0 0.0
    %3430 = vmatprep.subr.mxu0 0.0
    %3431 = vmatpush1.msra.mxu0 0.0
    %3432 = vmatprep.subr.mxu0 0.0
    %3433 = vmatpush1.msra.mxu0 0.0
    %3434 = vmatprep.subr.mxu0 0.0
    %3435 = vmatpush1.msra.mxu0 0.0
    %3436 = vmatprep.subr.mxu0 0.0
    %3437 = vmatpush1.msra.mxu0 0.0
    %3438 = vmatprep.subr.mxu0 0.0
    %3439 = vmatpush1.msra.mxu0 0.0
    %3440 = vmatprep.subr.mxu0 0.0
    %3441 = vmatpush1.msra.mxu0 0.0
    %3442 = vmatprep.subr.mxu0 0.0
    %3443 = vmatpush1.msra.mxu0 0.0
    %3444 = vmatprep.subr.mxu0 0.0
    %3445 = vmatpush1.msra.mxu0 0.0
    %3446 = vmatprep.subr.mxu0 0.0
    %3447 = vmatpush1.msra.mxu0 0.0
    %3448 = vmatprep.subr.mxu0 0.0
    %3449 = vmatpush1.msra.mxu0 0.0
    %3450 = vmatprep.subr.mxu0 0.0
    %3451 = vmatpush1.msra.mxu0 0.0
    %3452 = vmatprep.subr.mxu0 0.0
    %3453 = vmatpush1.msra.mxu0 0.0
    %3454 = vmatprep.subr.mxu0 0.0
    %3455 = vmatpush1.msra.mxu0 0.0
    %3456 = vmatprep.subr.mxu0 0.0
    %3457 = vmatpush1.msra.mxu0 0.0
    %3458 = vmatprep.mubr.f32.mxu0 0.0
    %3459 = vmatmul.mubr.f32.gmra.mrb[0].mxu0 %v3292
    %v3460 = vpop.f32.mrb[0].mxu0
    %v3461 = vadd.f32 0.0, %v3460
    %v3462 = vpop.f32.mrb[0].mxu0
    %3463 = vdwg.mxu0
    %v3464 = vsel %vm241, %v3390, 0
    %3466 = vmatprep.subr.mxu0 0.0
    %3467 = vmatpush1.msra.mxu0 %v223
    %3468 = vmatprep.subr.mxu0 0.0
    %3469 = vmatpush1.msra.mxu0 %v224
    %3470 = vmatprep.subr.mxu0 0.0
    %3471 = vmatpush1.msra.mxu0 %v225
    %3472 = vmatprep.subr.mxu0 0.0
    %3473 = vmatpush1.msra.mxu0 %v226
    %3474 = vmatprep.subr.mxu0 0.0
    %3475 = vmatpush1.msra.mxu0 0.0
    %3476 = vmatprep.subr.mxu0 0.0
    %3477 = vmatpush1.msra.mxu0 0.0
    %3478 = vmatprep.subr.mxu0 0.0
    %3479 = vmatpush1.msra.mxu0 0.0
    %3480 = vmatprep.subr.mxu0 0.0
    %3481 = vmatpush1.msra.mxu0 0.0
    %3482 = vmatprep.subr.mxu0 0.0
    %3483 = vmatpush1.msra.mxu0 0.0
    %3484 = vmatprep.subr.mxu0 0.0
    %3485 = vmatpush1.msra.mxu0 0.0
    %3486 = vmatprep.subr.mxu0 0.0
    %3487 = vmatpush1.msra.mxu0 0.0
    %3488 = vmatprep.subr.mxu0 0.0
    %3489 = vmatpush1.msra.mxu0 0.0
    %3490 = vmatprep.subr.mxu0 0.0
    %3491 = vmatpush1.msra.mxu0 0.0
    %3492 = vmatprep.subr.mxu0 0.0
    %3493 = vmatpush1.msra.mxu0 0.0
    %3494 = vmatprep.subr.mxu0 0.0
    %3495 = vmatpush1.msra.mxu0 0.0
    %3496 = vmatprep.subr.mxu0 0.0
    %3497 = vmatpush1.msra.mxu0 0.0
    %3498 = vmatprep.subr.mxu0 0.0
    %3499 = vmatpush1.msra.mxu0 0.0
    %3500 = vmatprep.subr.mxu0 0.0
    %3501 = vmatpush1.msra.mxu0 0.0
    %3502 = vmatprep.subr.mxu0 0.0
    %3503 = vmatpush1.msra.mxu0 0.0
    %3504 = vmatprep.subr.mxu0 0.0
    %3505 = vmatpush1.msra.mxu0 0.0
    %3506 = vmatprep.subr.mxu0 0.0
    %3507 = vmatpush1.msra.mxu0 0.0
    %3508 = vmatprep.subr.mxu0 0.0
    %3509 = vmatpush1.msra.mxu0 0.0
    %3510 = vmatprep.subr.mxu0 0.0
    %3511 = vmatpush1.msra.mxu0 0.0
    %3512 = vmatprep.subr.mxu0 0.0
    %3513 = vmatpush1.msra.mxu0 0.0
    %3514 = vmatprep.subr.mxu0 0.0
    %3515 = vmatpush1.msra.mxu0 0.0
    %3516 = vmatprep.subr.mxu0 0.0
    %3517 = vmatpush1.msra.mxu0 0.0
    %3518 = vmatprep.subr.mxu0 0.0
    %3519 = vmatpush1.msra.mxu0 0.0
    %3520 = vmatprep.subr.mxu0 0.0
    %3521 = vmatpush1.msra.mxu0 0.0
    %3522 = vmatprep.subr.mxu0 0.0
    %3523 = vmatpush1.msra.mxu0 0.0
    %3524 = vmatprep.subr.mxu0 0.0
    %3525 = vmatpush1.msra.mxu0 0.0
    %3526 = vmatprep.subr.mxu0 0.0
    %3527 = vmatpush1.msra.mxu0 0.0
    %3528 = vmatprep.subr.mxu0 0.0
    %3529 = vmatpush1.msra.mxu0 0.0
    %3530 = vmatprep.mubr.f32.mxu0 0.0
    %3531 = vmatmul.mubr.f32.gmra.mrb[0].mxu0 %v3464
    %v3532 = vpop.f32.mrb[0].mxu0
    %v3533 = vadd.f32 %v3461, %v3532
    %v3534 = vpop.f32.mrb[0].mxu0
    %3535 = vdwg.mxu0
    %v3536 = vrot.slane %v217, 2
    %v3538 = vadd.f32 %v3533, %v3536
    %v3539 = vtanh.pop %v3538
    %v3540 = vmul.f32 %v3539, %v231
    %v3541 = vsel %vm491, %v3540, 0.0
    %3542 = vadd.xlane.f32.xlu0 %v3541
    %v3543 = vpop.xlane.xlu0 %3542
    %3544 = vst.msk [vmem:[#allocation4 + $0x4] sm:$0x1] %vm495, %v3543
    %v3545 = vld [vmem:[#allocation4] sm:$0x3f]
    %v3546 = vsel %vm239, %v3545, -inf
    %3547 = vmax.xlane.f32.xlu0 %v3546
    %v3548 = vpop.xlane.xlu0 %3547
    %v3549 = vrot.slane %v3548, 4
    %v3550 = vmax.f32 %v3548, %v3549
    %v3551 = vrot.slane %v3550, 2
    %v3552 = vmax.f32 %v3550, %v3551
    %v3553 = vrot.slane %v3552, 1
    %v3554 = vmax.f32 %v3552, %v3553
    %s3555 = vtos %v3554
    %v3556 = vstv %s3555
    %v3557 = vsub.f32 %v3545, %v3556
    %v3558 = vmul.f32 %v3557, 1.442695
    %v3559 = vpow.pop %v3558
    %v3560 = vsel %vm239, %v3559, 0.0
    %3561 = vadd.xlane.f32.xlu0 %v3560
    %v3562 = vpop.xlane.xlu0 %3561
    %v3563 = vrot.slane %v3562, 4
    %v3564 = vadd.f32 %v3562, %v3563
    %v3565 = vrot.slane %v3564, 2
    %v3566 = vadd.f32 %v3564, %v3565
    %v3567 = vrot.slane %v3566, 1
    %v3568 = vadd.f32 %v3566, %v3567
    %s3569 = vtos %v3568
    %v3570 = vstv %s3569
    %v3571 = vrcp.pop %v3570
    %v3572 = vmul.f32 %v3559, %v3571
    %v3573 = vld [vmem:[#allocation2] sm:$0x3f]
    %3575 = vset.pattern.permute.xlu0 0
    %3576 = vperm.xlu0 %3575, %v3572
    %v3577 = vpop.permute.xlu0 %3576
    %v3579 = vmul.f32 %v3577, %v3573
    %v3580 = vsel %vm532, %v3579, 0.0
    %v3581 = vrot.slane %v3580, 4
    %v3582 = vadd.f32 %v3580, %v3581
    %v3583 = vrot.slane %v3582, 2
    %v3584 = vadd.f32 %v3582, %v3583
    %v3585 = vrot.slane %v3584, 1
    %v3586 = vadd.f32 %v3584, %v3585
    %v3587 = vld [vmem:[#allocation3] sm:$0x3f]
    %v3588 = vmul.f32 %v3577, %v3587
    %v3589 = vsel %vm532, %v3588, 0.0
    %v3590 = vrot.slane %v3589, 4
    %v3591 = vadd.f32 %v3589, %v3590
    %v3592 = vrot.slane %v3591, 2
    %v3593 = vadd.f32 %v3591, %v3592
    %v3594 = vrot.slane %v3593, 1
    %v3595 = vadd.f32 %v3593, %v3594
    %v3596 = vrot.slane %v215, 3
    %v3599 = vsel %vm241, %v3586, 0
    %3601 = vmatprep.subr.mxu0 0.0
    %3602 = vmatpush1.msra.mxu0 %v219
    %3603 = vmatprep.subr.mxu0 0.0
    %3604 = vmatpush1.msra.mxu0 %v220
    %3605 = vmatprep.subr.mxu0 0.0
    %3606 = vmatpush1.msra.mxu0 %v221
    %3607 = vmatprep.subr.mxu0 0.0
    %3608 = vmatpush1.msra.mxu0 %v222
    %3609 = vmatprep.subr.mxu0 0.0
    %3610 = vmatpush1.msra.mxu0 0.0
    %3611 = vmatprep.subr.mxu0 0.0
    %3612 = vmatpush1.msra.mxu0 0.0
    %3613 = vmatprep.subr.mxu0 0.0
    %3614 = vmatpush1.msra.mxu0 0.0
    %3615 = vmatprep.subr.mxu0 0.0
    %3616 = vmatpush1.msra.mxu0 0.0
    %3617 = vmatprep.subr.mxu0 0.0
    %3618 = vmatpush1.msra.mxu0 0.0
    %3619 = vmatprep.subr.mxu0 0.0
    %3620 = vmatpush1.msra.mxu0 0.0
    %3621 = vmatprep.subr.mxu0 0.0
    %3622 = vmatpush1.msra.mxu0 0.0
    %3623 = vmatprep.subr.mxu0 0.0
    %3624 = vmatpush1.msra.mxu0 0.0
    %3625 = vmatprep.subr.mxu0 0.0
    %3626 = vmatpush1.msra.mxu0 0.0
    %3627 = vmatprep.subr.mxu0 0.0
    %3628 = vmatpush1.msra.mxu0 0.0
    %3629 = vmatprep.subr.mxu0 0.0
    %3630 = vmatpush1.msra.mxu0 0.0
    %3631 = vmatprep.subr.mxu0 0.0
    %3632 = vmatpush1.msra.mxu0 0.0
    %3633 = vmatprep.subr.mxu0 0.0
    %3634 = vmatpush1.msra.mxu0 0.0
    %3635 = vmatprep.subr.mxu0 0.0
    %3636 = vmatpush1.msra.mxu0 0.0
    %3637 = vmatprep.subr.mxu0 0.0
    %3638 = vmatpush1.msra.mxu0 0.0
    %3639 = vmatprep.subr.mxu0 0.0
    %3640 = vmatpush1.msra.mxu0 0.0
    %3641 = vmatprep.subr.mxu0 0.0
    %3642 = vmatpush1.msra.mxu0 0.0
    %3643 = vmatprep.subr.mxu0 0.0
    %3644 = vmatpush1.msra.mxu0 0.0
    %3645 = vmatprep.subr.mxu0 0.0
    %3646 = vmatpush1.msra.mxu0 0.0
    %3647 = vmatprep.subr.mxu0 0.0
    %3648 = vmatpush1.msra.mxu0 0.0
    %3649 = vmatprep.subr.mxu0 0.0
    %3650 = vmatpush1.msra.mxu0 0.0
    %3651 = vmatprep.subr.mxu0 0.0
    %3652 = vmatpush1.msra.mxu0 0.0
    %3653 = vmatprep.subr.mxu0 0.0
    %3654 = vmatpush1.msra.mxu0 0.0
    %3655 = vmatprep.subr.mxu0 0.0
    %3656 = vmatpush1.msra.mxu0 0.0
    %3657 = vmatprep.subr.mxu0 0.0
    %3658 = vmatpush1.msra.mxu0 0.0
    %3659 = vmatprep.subr.mxu0 0.0
    %3660 = vmatpush1.msra.mxu0 0.0
    %3661 = vmatprep.subr.mxu0 0.0
    %3662 = vmatpush1.msra.mxu0 0.0
    %3663 = vmatprep.subr.mxu0 0.0
    %3664 = vmatpush1.msra.mxu0 0.0
    %3665 = vmatprep.mubr.f32.mxu0 0.0
    %3666 = vmatmul.mubr.f32.gmra.mrb[0].mxu0 %v3599
    %v3667 = vpop.f32.mrb[0].mxu0
    %v3668 = vadd.f32 %v3596, %v3667
    %v3669 = vpop.f32.mrb[0].mxu0
    %3670 = vdwg.mxu0
    %v3671 = vxor.u32 %v3668, 2147483648
    %v3672 = vmul.f32 %v3671, 1.442695
    %v3673 = vpow.pop %v3672
    %v3674 = vadd.f32 %v3673, 1.0
    %v3675 = vrcp.pop %v3674
    %v3676 = vmul.f32 1.0, %v3675
    %v3677 = vtanh.pop %v3668
    %v3678 = vmul.f32 %v3676, %v3595
    %3680 = vrot.lane.b32.xlu0 %v3677, 96
    %v3681 = vpop.permute.xlu0 %3680
    %v3683 = vmul.f32 %v3676, %v3681
    %3685 = vrot.lane.b32.xlu0 %v3683, 64
    %v3686 = vpop.permute.xlu0 %3685
    %v3688 = vadd.f32 %v3678, %v3686
    %v3689 = vtanh.pop %v3688
    %3691 = vrot.lane.b32.xlu0 %v3689, 32
    %v3692 = vpop.permute.xlu0 %3691
    %v3694 = vmul.f32 %v3676, %v3692
    %3696 = vrot.lane.b32.xlu0 %v3694, 96
    %v3697 = vpop.permute.xlu0 %3696
    %3699 = vst.msk [vmem:[#allocation2 + $0x5] sm:$0x1] %vm343, %v3697
    %3700 = vst.msk [vmem:[#allocation3 + $0x5] sm:$0x1] %vm343, %v3688
    %3701 = vmatprep.subr.mxu0 0.0
    %3702 = vmatpush1.msra.mxu0 %v227
    %3703 = vmatprep.subr.mxu0 0.0
    %3704 = vmatpush1.msra.mxu0 %v228
    %3705 = vmatprep.subr.mxu0 0.0
    %3706 = vmatpush1.msra.mxu0 %v229
    %3707 = vmatprep.subr.mxu0 0.0
    %3708 = vmatpush1.msra.mxu0 %v230
    %3709 = vmatprep.subr.mxu0 0.0
    %3710 = vmatpush1.msra.mxu0 0.0
    %3711 = vmatprep.subr.mxu0 0.0
    %3712 = vmatpush1.msra.mxu0 0.0
    %3713 = vmatprep.subr.mxu0 0.0
    %3714 = vmatpush1.msra.mxu0 0.0
    %3715 = vmatprep.subr.mxu0 0.0
    %3716 = vmatpush1.msra.mxu0 0.0
    %3717 = vmatprep.subr.mxu0 0.0
    %3718 = vmatpush1.msra.mxu0 0.0
    %3719 = vmatprep.subr.mxu0 0.0
    %3720 = vmatpush1.msra.mxu0 0.0
    %3721 = vmatprep.subr.mxu0 0.0
    %3722 = vmatpush1.msra.mxu0 0.0
    %3723 = vmatprep.subr.mxu0 0.0
    %3724 = vmatpush1.msra.mxu0 0.0
    %3725 = vmatprep.subr.mxu0 0.0
    %3726 = vmatpush1.msra.mxu0 0.0
    %3727 = vmatprep.subr.mxu0 0.0
    %3728 = vmatpush1.msra.mxu0 0.0
    %3729 = vmatprep.subr.mxu0 0.0
    %3730 = vmatpush1.msra.mxu0 0.0
    %3731 = vmatprep.subr.mxu0 0.0
    %3732 = vmatpush1.msra.mxu0 0.0
    %3733 = vmatprep.subr.mxu0 0.0
    %3734 = vmatpush1.msra.mxu0 0.0
    %3735 = vmatprep.subr.mxu0 0.0
    %3736 = vmatpush1.msra.mxu0 0.0
    %3737 = vmatprep.subr.mxu0 0.0
    %3738 = vmatpush1.msra.mxu0 0.0
    %3739 = vmatprep.subr.mxu0 0.0
    %3740 = vmatpush1.msra.mxu0 0.0
    %3741 = vmatprep.subr.mxu0 0.0
    %3742 = vmatpush1.msra.mxu0 0.0
    %3743 = vmatprep.subr.mxu0 0.0
    %3744 = vmatpush1.msra.mxu0 0.0
    %3745 = vmatprep.subr.mxu0 0.0
    %3746 = vmatpush1.msra.mxu0 0.0
    %3747 = vmatprep.subr.mxu0 0.0
    %3748 = vmatpush1.msra.mxu0 0.0
    %3749 = vmatprep.subr.mxu0 0.0
    %3750 = vmatpush1.msra.mxu0 0.0
    %3751 = vmatprep.subr.mxu0 0.0
    %3752 = vmatpush1.msra.mxu0 0.0
    %3753 = vmatprep.subr.mxu0 0.0
    %3754 = vmatpush1.msra.mxu0 0.0
    %3755 = vmatprep.subr.mxu0 0.0
    %3756 = vmatpush1.msra.mxu0 0.0
    %3757 = vmatprep.subr.mxu0 0.0
    %3758 = vmatpush1.msra.mxu0 0.0
    %3759 = vmatprep.subr.mxu0 0.0
    %3760 = vmatpush1.msra.mxu0 0.0
    %3761 = vmatprep.subr.mxu0 0.0
    %3762 = vmatpush1.msra.mxu0 0.0
    %3763 = vmatprep.subr.mxu0 0.0
    %3764 = vmatpush1.msra.mxu0 0.0
    %3765 = vmatprep.mubr.f32.mxu0 0.0
    %3766 = vmatmul.mubr.f32.gmra.mrb[0].mxu0 %v3599
    %v3767 = vpop.f32.mrb[0].mxu0
    %v3768 = vadd.f32 0.0, %v3767
    %v3769 = vpop.f32.mrb[0].mxu0
    %3770 = vdwg.mxu0
    %v3771 = vsel %vm241, %v3697, 0
    %3773 = vmatprep.subr.mxu0 0.0
    %3774 = vmatpush1.msra.mxu0 %v223
    %3775 = vmatprep.subr.mxu0 0.0
    %3776 = vmatpush1.msra.mxu0 %v224
    %3777 = vmatprep.subr.mxu0 0.0
    %3778 = vmatpush1.msra.mxu0 %v225
    %3779 = vmatprep.subr.mxu0 0.0
    %3780 = vmatpush1.msra.mxu0 %v226
    %3781 = vmatprep.subr.mxu0 0.0
    %3782 = vmatpush1.msra.mxu0 0.0
    %3783 = vmatprep.subr.mxu0 0.0
    %3784 = vmatpush1.msra.mxu0 0.0
    %3785 = vmatprep.subr.mxu0 0.0
    %3786 = vmatpush1.msra.mxu0 0.0
    %3787 = vmatprep.subr.mxu0 0.0
    %3788 = vmatpush1.msra.mxu0 0.0
    %3789 = vmatprep.subr.mxu0 0.0
    %3790 = vmatpush1.msra.mxu0 0.0
    %3791 = vmatprep.subr.mxu0 0.0
    %3792 = vmatpush1.msra.mxu0 0.0
    %3793 = vmatprep.subr.mxu0 0.0
    %3794 = vmatpush1.msra.mxu0 0.0
    %3795 = vmatprep.subr.mxu0 0.0
    %3796 = vmatpush1.msra.mxu0 0.0
    %3797 = vmatprep.subr.mxu0 0.0
    %3798 = vmatpush1.msra.mxu0 0.0
    %3799 = vmatprep.subr.mxu0 0.0
    %3800 = vmatpush1.msra.mxu0 0.0
    %3801 = vmatprep.subr.mxu0 0.0
    %3802 = vmatpush1.msra.mxu0 0.0
    %3803 = vmatprep.subr.mxu0 0.0
    %3804 = vmatpush1.msra.mxu0 0.0
    %3805 = vmatprep.subr.mxu0 0.0
    %3806 = vmatpush1.msra.mxu0 0.0
    %3807 = vmatprep.subr.mxu0 0.0
    %3808 = vmatpush1.msra.mxu0 0.0
    %3809 = vmatprep.subr.mxu0 0.0
    %3810 = vmatpush1.msra.mxu0 0.0
    %3811 = vmatprep.subr.mxu0 0.0
    %3812 = vmatpush1.msra.mxu0 0.0
    %3813 = vmatprep.subr.mxu0 0.0
    %3814 = vmatpush1.msra.mxu0 0.0
    %3815 = vmatprep.subr.mxu0 0.0
    %3816 = vmatpush1.msra.mxu0 0.0
    %3817 = vmatprep.subr.mxu0 0.0
    %3818 = vmatpush1.msra.mxu0 0.0
    %3819 = vmatprep.subr.mxu0 0.0
    %3820 = vmatpush1.msra.mxu0 0.0
    %3821 = vmatprep.subr.mxu0 0.0
    %3822 = vmatpush1.msra.mxu0 0.0
    %3823 = vmatprep.subr.mxu0 0.0
    %3824 = vmatpush1.msra.mxu0 0.0
    %3825 = vmatprep.subr.mxu0 0.0
    %3826 = vmatpush1.msra.mxu0 0.0
    %3827 = vmatprep.subr.mxu0 0.0
    %3828 = vmatpush1.msra.mxu0 0.0
    %3829 = vmatprep.subr.mxu0 0.0
    %3830 = vmatpush1.msra.mxu0 0.0
    %3831 = vmatprep.subr.mxu0 0.0
    %3832 = vmatpush1.msra.mxu0 0.0
    %3833 = vmatprep.subr.mxu0 0.0
    %3834 = vmatpush1.msra.mxu0 0.0
    %3835 = vmatprep.subr.mxu0 0.0
    %3836 = vmatpush1.msra.mxu0 0.0
    %3837 = vmatprep.mubr.f32.mxu0 0.0
    %3838 = vmatmul.mubr.f32.gmra.mrb[0].mxu0 %v3771
    %v3839 = vpop.f32.mrb[0].mxu0
    %v3840 = vadd.f32 %v3768, %v3839
    %v3841 = vpop.f32.mrb[0].mxu0
    %3842 = vdwg.mxu0
    %v3843 = vrot.slane %v217, 3
    %v3845 = vadd.f32 %v3840, %v3843
    %v3846 = vtanh.pop %v3845
    %v3847 = vmul.f32 %v3846, %v231
    %v3848 = vsel %vm491, %v3847, 0.0
    %3849 = vadd.xlane.f32.xlu0 %v3848
    %v3850 = vpop.xlane.xlu0 %3849
    %3851 = vst.msk [vmem:[#allocation4 + $0x5] sm:$0x1] %vm495, %v3850
    %3852 = vmatprep.subr.mxu0 0.0
    %3853 = vmatpush1.msra.mxu0 %v232
    %3854 = vmatprep.subr.mxu0 0.0
    %3855 = vmatpush1.msra.mxu0 %v233
    %3856 = vmatprep.subr.mxu0 0.0
    %3857 = vmatpush1.msra.mxu0 %v234
    %3858 = vmatprep.subr.mxu0 0.0
    %3859 = vmatpush1.msra.mxu0 %v235
    %3860 = vmatprep.subr.mxu0 0.0
    %3861 = vmatpush1.msra.mxu0 0.0
    %3862 = vmatprep.subr.mxu0 0.0
    %3863 = vmatpush1.msra.mxu0 0.0
    %3864 = vmatprep.subr.mxu0 0.0
    %3865 = vmatpush1.msra.mxu0 0.0
    %3866 = vmatprep.subr.mxu0 0.0
    %3867 = vmatpush1.msra.mxu0 0.0
    %3868 = vmatprep.subr.mxu0 0.0
    %3869 = vmatpush1.msra.mxu0 0.0
    %3870 = vmatprep.subr.mxu0 0.0
    %3871 = vmatpush1.msra.mxu0 0.0
    %3872 = vmatprep.subr.mxu0 0.0
    %3873 = vmatpush1.msra.mxu0 0.0
    %3874 = vmatprep.subr.mxu0 0.0
    %3875 = vmatpush1.msra.mxu0 0.0
    %3876 = vmatprep.subr.mxu0 0.0
    %3877 = vmatpush1.msra.mxu0 0.0
    %3878 = vmatprep.subr.mxu0 0.0
    %3879 = vmatpush1.msra.mxu0 0.0
    %3880 = vmatprep.subr.mxu0 0.0
    %3881 = vmatpush1.msra.mxu0 0.0
    %3882 = vmatprep.subr.mxu0 0.0
    %3883 = vmatpush1.msra.mxu0 0.0
    %3884 = vmatprep.subr.mxu0 0.0
    %3885 = vmatpush1.msra.mxu0 0.0
    %3886 = vmatprep.subr.mxu0 0.0
    %3887 = vmatpush1.msra.mxu0 0.0
    %3888 = vmatprep.subr.mxu0 0.0
    %3889 = vmatpush1.msra.mxu0 0.0
    %3890 = vmatprep.subr.mxu0 0.0
    %3891 = vmatpush1.msra.mxu0 0.0
    %3892 = vmatprep.subr.mxu0 0.0
    %3893 = vmatpush1.msra.mxu0 0.0
    %3894 = vmatprep.subr.mxu0 0.0
    %3895 = vmatpush1.msra.mxu0 0.0
    %3896 = vmatprep.subr.mxu0 0.0
    %3897 = vmatpush1.msra.mxu0 0.0
    %3898 = vmatprep.subr.mxu0 0.0
    %3899 = vmatpush1.msra.mxu0 0.0
    %3900 = vmatprep.subr.mxu0 0.0
    %3901 = vmatpush1.msra.mxu0 0.0
    %3902 = vmatprep.subr.mxu0 0.0
    %3903 = vmatpush1.msra.mxu0 0.0
    %3904 = vmatprep.subr.mxu0 0.0
    %3905 = vmatpush1.msra.mxu0 0.0
    %3906 = vmatprep.subr.mxu0 0.0
    %3907 = vmatpush1.msra.mxu0 0.0
    %3908 = vmatprep.subr.mxu0 0.0
    %3909 = vmatpush1.msra.mxu0 0.0
    %3910 = vmatprep.subr.mxu0 0.0
    %3911 = vmatpush1.msra.mxu0 0.0
    %3912 = vmatprep.subr.mxu0 0.0
    %3913 = vmatpush1.msra.mxu0 0.0
    %3914 = vmatprep.subr.mxu0 0.0
    %3915 = vmatpush1.msra.mxu0 0.0
    %3916 = vmatprep.mubr.f32.mxu0 0.0
    %3917 = vmatmul.mubr.f32.gmra.mrb[0].mxu0 %v3771
    %v3918 = vpop.f32.mrb[0].mxu0
    %v3919 = vadd.f32 %v236, %v3918
    %v3920 = vpop.f32.mrb[0].mxu0
    %3921 = vdwg.mxu0
    %v3922 = vsel %vm491, %v3919, -inf
    %3923 = vmax.xlane.f32.xlu0 %v3922
    %v3924 = vpop.xlane.xlu0 %3923
    %v3925 = vrot.slane %v3924, 4
    %v3926 = vmax.f32 %v3924, %v3925
    %v3927 = vrot.slane %v3926, 2
    %v3928 = vmax.f32 %v3926, %v3927
    %v3929 = vrot.slane %v3928, 1
    %v3930 = vmax.f32 %v3928, %v3929
    %s3931 = vtos %v3930
    %v3932 = vstv %s3931
    %v3933 = vsub.f32 %v3919, %v3932
    %v3934 = vmul.f32 %v3933, 1.442695
    %v3935 = vpow.pop %v3934
    %v3936 = vsel %vm491, %v3935, 0.0
    %3937 = vadd.xlane.f32.xlu0 %v3936
    %v3938 = vpop.xlane.xlu0 %3937
    %v3939 = vrot.slane %v3938, 4
    %v3940 = vadd.f32 %v3938, %v3939
    %v3941 = vrot.slane %v3940, 2
    %v3942 = vadd.f32 %v3940, %v3941
    %v3943 = vrot.slane %v3942, 1
    %v3944 = vadd.f32 %v3942, %v3943
    %s3945 = vtos %v3944
    %v3946 = vstv %s3945
    %v3947 = vrcp.pop %v3946
    %v3948 = vmul.f32 %v3935, %v3947
    %3949 = vst.msk [vmem:[#allocation7 + $0x1] sm:$0x1] %vm491, %v3948
    %v3950 = vld [vmem:[#allocation2] sm:$0x3f]
    %s3951 = scalar_lea.vmem %s12, 8
    %3952 = vst.msk [vmem:[%s3951] sm:$0x3f] %vm532, %v3950
    %3953 = vst.msk [vmem:[#allocation5] sm:$0x1] %vm343, %v3586
    %3954 = vst.msk [vmem:[#allocation6] sm:$0x1] %vm343, %v3595
    // Predicated region
    $region50: #{tpu_custom_call.1} parent=1 // pred_check
      _
    $region51: #{tpu_custom_call.1} parent=1 // pred_check_branch
      %3956 = sbr.rel (0) target = $region53
    $region52: #{tpu_custom_call.1} parent=1 // pred_region
      %s3958 = ssub.s32 32, 32
      %3959 = vsyncadd [#allocation8], %s3958
      %s3961 = sshll.u32 [#allocation7], 4
      %s3962 = int_to_ptr.vmem [resolvable:$true] %s3961
      %3964 = dma.vmem_to_hbm [thread:$0]  %s3962, 32, %s11, [#allocation8]
    $region53: #{tpu_custom_call.1} parent=1 // pred_fallthru
      _
    // Predicated region
    $region54: #{tpu_custom_call.1} parent=1 // pred_check
      _
    $region55: #{tpu_custom_call.1} parent=1 // pred_check_branch
      %3966 = sbr.rel (0) target = $region57
    $region56: #{tpu_custom_call.1} parent=1 // pred_region
      _
    $region57: #{tpu_custom_call.1} parent=1 // pred_fallthru
      _
    // Predicated region
    $region58: #{tpu_custom_call.1} parent=1 // pred_check
      _
    $region59: #{tpu_custom_call.1} parent=1 // pred_check_branch
      %3968 = sbr.rel (0) target = $region61
    $region60: #{tpu_custom_call.1} parent=1 // pred_region
      %3969 = dma.done [#allocation8], 32
    $region61: #{tpu_custom_call.1} parent=1 // pred_fallthru
      _
    // Predicated region
    $region62: #{tpu_custom_call.1} parent=1 // pred_check
      _
    $region63: #{tpu_custom_call.1} parent=1 // pred_check_branch
      %3971 = sbr.rel (0) target = $region65
    $region64: #{tpu_custom_call.1} parent=1 // pred_region
      _
    $region65: #{tpu_custom_call.1} parent=1 // pred_fallthru
      _
    %3972 = vsyncpa [#allocation8], 1

</llo_original>
